<compile_context>
chip_gen: v6e
topology: v6e:2x2x1
jax: 0.10.0
libtpu: 0.0.40
codegen_flags: <defaults>
</compile_context>

<pallas_src>
import math
from functools import partial

import jax
import jax.numpy as jnp
from jax import lax
from jax.experimental import pallas as pl
from jax.experimental.pallas import tpu as pltpu

TOKENS = 56          # decoder consumes exactly 56 encoder tokens (55 map + 1 ego)
TPAD = 64            # token axis padded to 64 inside the kernel
H = 64               # para['encoder_attention_size']
NUM_HEADS = 2
HEAD_DIM = H // NUM_HEADS
N_COORDS = 64        # number of candidate coordinates
B = 2                # batch == len(timestamp)
COORD_PAD = 8        # (x, y, t) zero-padded to 8 lanes for the kernel
W_ROWS = 8 * H + COORD_PAD   # rows in the packed bf16 weight slab (520)
MASK_BIAS = -1e9


# ----------------------------------------------------------------------------
# In-kernel math helpers (traced inside the Pallas program).
# ----------------------------------------------------------------------------
def _k_layernorm(x, g, b, eps=1e-5):
    mu = jnp.mean(x, axis=-1, keepdims=True)
    xc = x - mu
    var = jnp.mean(xc * xc, axis=-1, keepdims=True)
    return xc * lax.rsqrt(var + eps) * g + b


def regularize_decoder_kernel(hmae_ref, adjb_ref, cmb_ref, coords_ref,
                              wslab_ref, vecs_ref, out_ref):
    bc = adjb_ref.shape[0]          # batches handled by this program
    t = adjb_ref.shape[1]           # padded token count (64, power of two)
    hdim = hmae_ref.shape[1]        # hidden size (64)
    n = coords_ref.shape[0] // bc   # candidate coordinates per batch
    hd = hdim // NUM_HEADS

    x = hmae_ref[...]               # (bc*t, H) f32 tokens
    x_bf = x.astype(jnp.bfloat16)
    vecs = vecs_ref[...]            # (16, H) f32 biases / LN params / fc rows

    # ---- hoisted constants (emitted once; JAX does not CSE broadcasts) -------
    scale = 1.0 / math.sqrt(hd)
    lane_h = lax.broadcasted_iota(jnp.int32, (1, hdim), 1)
    hm0 = (lane_h < hd).astype(jnp.float32)                 # head-0 lanes
    hm1 = 1.0 - hm0                                         # head-1 lanes
    seg0 = lax.broadcasted_iota(jnp.int32, (1, 2 * t), 1) < t   # head-0 key segment
    neg_big = jnp.float32(-1e30)

    # ---- packed bf16 weight slab: static, sublane-aligned ref slices ---------
    W = wslab_ref
    sa_wq, sa_wk = W[0:hdim, :], W[hdim:2 * hdim, :]
    sa_wv, sa_wo = W[2 * hdim:3 * hdim, :], W[3 * hdim:4 * hdim, :]
    ca_wk, ca_wv = W[4 * hdim:5 * hdim, :], W[5 * hdim:6 * hdim, :]
    ca_wo, mlp_w = W[6 * hdim:7 * hdim, :], W[7 * hdim:8 * hdim, :]
    ca_wq = W[8 * hdim:8 * hdim + COORD_PAD, :]   # coord-embed fused into cross Wq

    def fused_head_attention(q_all, k_all, v_all, bias_list, lq, lk):
        """Both heads fused into ONE score matmul + ONE PV matmul per batch.

        K/V are head-masked over lanes and stacked along sublanes (2*lk rows),
        so the (lq, 2*lk) score matrix holds head-0 in lanes [0,lk) and head-1
        in [lk,2*lk); the softmax runs segment-wise on dense 128-lane vregs and
        the PV dot lands both heads' contexts in their own disjoint lanes."""
        kh0 = (k_all * hm0).astype(jnp.bfloat16)
        kh1 = (k_all * hm1).astype(jnp.bfloat16)
        vh0 = (v_all * hm0).astype(jnp.bfloat16)
        vh1 = (v_all * hm1).astype(jnp.bfloat16)
        q_bf = (q_all * scale).astype(jnp.bfloat16)
        outs = []
        for b, bias in enumerate(bias_list):
            qb = q_bf[b * lq:(b + 1) * lq]
            k2 = jnp.concatenate([kh0[b * lk:(b + 1) * lk],
                                  kh1[b * lk:(b + 1) * lk]], axis=0)   # (2lk, H)
            v2 = jnp.concatenate([vh0[b * lk:(b + 1) * lk],
                                  vh1[b * lk:(b + 1) * lk]], axis=0)   # (2lk, H)
            s = lax.dot_general(qb, k2, (((1,), (1,)), ((), ())),
                                preferred_element_type=jnp.float32)    # (lq, 2lk)
            s = s + bias                                  # additive -1e9 mask (f32)
            m0 = jnp.max(jnp.where(seg0, s, neg_big), axis=-1, keepdims=True)
            m1 = jnp.max(jnp.where(seg0, neg_big, s), axis=-1, keepdims=True)
            p = jnp.exp(s - jnp.where(seg0, m0, m1))
            d0 = jnp.sum(jnp.where(seg0, p, 0.0), axis=-1, keepdims=True)
            d1 = jnp.sum(jnp.where(seg0, 0.0, p), axis=-1, keepdims=True)
            r0 = pl.reciprocal(d0, approx=True)
            r1 = pl.reciprocal(d1, approx=True)
            p = p * jnp.where(seg0, r0, r1)
            outs.append(jnp.dot(p.astype(jnp.bfloat16), v2,
                                preferred_element_type=jnp.float32))   # (lq, H)
        return outs[0] if len(outs) == 1 else jnp.concatenate(outs, axis=0)

    # ---- map2ego: adjacency-masked 2-head self attention ---------------------
    q = jnp.dot(x_bf, sa_wq, preferred_element_type=jnp.float32) + vecs[0:1]
    k = jnp.dot(x_bf, sa_wk, preferred_element_type=jnp.float32) + vecs[1:2]
    v = jnp.dot(x_bf, sa_wv, preferred_element_type=jnp.float32) + vecs[2:3]
    ctx = fused_head_attention(q, k, v, [adjb_ref[b] for b in range(bc)], t, t)
    h = jnp.dot(ctx.astype(jnp.bfloat16), sa_wo,
                preferred_element_type=jnp.float32) + vecs[3:4]
    h = jnp.maximum(h, 0.0) + x                      # self.act = ReLU, residual
    h = _k_layernorm(h, vecs[4:5], vecs[5:6])

    # h = cat(h[:, :55], hmae[:, 55:56]): in every t-row block, row 55 <- hmae.
    row = lax.broadcasted_iota(jnp.int32, (bc * t, 1), 0)
    is_ego = (row & (t - 1)) == (TOKENS - 1)         # t == 64 (power of two)
    h = jnp.where(is_ego, x, h)

    # ---- heatmapdecoder: coordinate queries cross-attend over the tokens ------
    qc = jnp.dot(coords_ref[...].astype(jnp.bfloat16), ca_wq,
                 preferred_element_type=jnp.float32) + vecs[6:7]       # (bc*n, H)
    h_bf = h.astype(jnp.bfloat16)
    kc = jnp.dot(h_bf, ca_wk, preferred_element_type=jnp.float32) + vecs[7:8]
    vc = jnp.dot(h_bf, ca_wv, preferred_element_type=jnp.float32) + vecs[8:9]
    ctx_c = fused_head_attention(qc, kc, vc, [cmb_ref[b] for b in range(bc)], n, t)
    ca = jnp.dot(ctx_c.astype(jnp.bfloat16), ca_wo,
                 preferred_element_type=jnp.float32) + vecs[9:10]      # (bc*n, H)

    # ---- convert = DecoderResCat(H, H, 1): fc(cat(ca, relu(LN(Linear(ca))))) --
    ca_bf = ca.astype(jnp.bfloat16)
    m = jnp.dot(ca_bf, mlp_w, preferred_element_type=jnp.float32) + vecs[10:11]
    m = jnp.maximum(_k_layernorm(m, vecs[11:12], vecs[12:13]), 0.0)
    fc_ca = vecs[13:14].astype(jnp.bfloat16)
    fc_m = vecs[14:15].astype(jnp.bfloat16)
    # lane-dense (1, bc*n) logits row via two 64-lane contractions.
    row_a = lax.dot_general(fc_ca, ca_bf, (((1,), (1,)), ((), ())),
                            preferred_element_type=jnp.float32)
    row_m = lax.dot_general(fc_m, m.astype(jnp.bfloat16), (((1,), (1,)), ((), ())),
                            preferred_element_type=jnp.float32)
    logits = row_a + row_m + vecs[15:16, 0:1]        # fc bias folded into vecs
    out_ref[...] = logits[None]                      # (1, 1, bc*n)


# ----------------------------------------------------------------------------
# Parameter packing (done ONCE, outside the per-call path).
# ----------------------------------------------------------------------------
def pack_params(p):
    """Pack module parameters: one bf16 MXU-weight slab + one f32 bias slab."""
    hi = jax.lax.Precision.HIGHEST
    # Coordinate embedding Linear(3->H) fused into the cross-attn Q projection.
    # NOTE: rows 3..7 of ce_w must be zero (true for init_params); a real
    # checkpoint's (3,H) weight must be zero-padded before fusing.
    ca_wq = jnp.matmul(p["ce_w"], p["ca_w"][0], precision=hi)                # (8, H)
    ca_bq = jnp.matmul(p["ce_b"], p["ca_w"][0], precision=hi) + p["ca_b"][0:1]
    wslab = jnp.concatenate(
        [p["sa_w"][0], p["sa_w"][1], p["sa_w"][2], p["sa_w"][3],
         p["ca_w"][1], p["ca_w"][2], p["ca_w"][3], p["mlp_w"], ca_wq],
        axis=0).astype(jnp.bfloat16)                                         # (520, H)
    fcb_row = jnp.full((1, H), p["fc_b"][0, 0], jnp.float32)
    vecs = jnp.concatenate([
        p["sa_b"][0:1], p["sa_b"][1:2], p["sa_b"][2:3], p["sa_b"][3:4],      # 0..3
        p["ln1"][0:1], p["ln1"][1:2],                                        # 4,5
        ca_bq, p["ca_b"][1:2], p["ca_b"][2:3], p["ca_b"][3:4],               # 6..9
        p["mlp_b"], p["mlp_ln"][0:1], p["mlp_ln"][1:2],                      # 10..12
        p["fc_w"][:, :H], p["fc_w"][:, H:],                                  # 13,14
        fcb_row,                                                             # 15
    ], axis=0).astype(jnp.float32)                                           # (16, H)
    return dict(wslab=wslab, vecs=vecs)


def _grid_splits(bsz):
    """v7x has 2 TensorCores per chip: shard the batch across cores. Single-TC
    v5e/v6e keep the whole batch fused in one grid step (saves per-step cost)."""
    try:
        kind = jax.devices()[0].device_kind.lower()
    except Exception:
        return 1
    if "v7" in kind and bsz % 2 == 0:
        return 2
    return 1


# ----------------------------------------------------------------------------
# Wrapper: PyTorch-forward tensor plumbing (glue) + pallas_call.  Jitted so the
# plumbing fuses; packed weights are produced once outside this function.
# ----------------------------------------------------------------------------
@partial(jax.jit, static_argnames=("timestamp",))
def regularize_decoder(hmae, coordinates, c_mask, adj, packed, *, timestamp):
    bsz, t_in, hdim = hmae.shape
    n = coordinates.shape[0]
    assert t_in == TOKENS and hdim == H and TPAD == 64

    # s_order / coords plumbing, as in the PyTorch forward.
    s_order = jnp.stack([jnp.ones_like(coordinates[..., :1]) * s for s in timestamp])
    coords = jnp.broadcast_to(coordinates[None], (bsz,) + coordinates.shape)
    coords = jnp.concatenate([coords, s_order], axis=-1)                     # (B, N, 3)
    coords = jnp.pad(coords, ((0, 0), (0, 0), (0, COORD_PAD - 3)))           # (B, N, 8)
    coords2 = coords.reshape(bsz * n, COORD_PAD).astype(jnp.float32)

    # Token axis padded 56 -> 64 so every attention tile is 8/64/128-aligned.
    hmae2 = jnp.pad(hmae.astype(jnp.float32),
                    ((0, 0), (0, TPAD - TOKENS), (0, 0))).reshape(bsz * TPAD, hdim)

    # Additive masks (0 / -1e9), padded keys masked out, lane-tiled x2 so they
    # align with the head-fused (lq, 128) score tiles.
    adjp = jnp.pad(adj[:, :TOKENS, :TOKENS],
                   ((0, 0), (0, TPAD - TOKENS), (0, TPAD - TOKENS)))
    adj_bias = jnp.where(adjp > 0, 0.0, MASK_BIAS).astype(jnp.float32)
    adj_bias = jnp.concatenate([adj_bias, adj_bias], axis=-1)                # (B, 64, 128)
    cmp_ = jnp.pad(c_mask[:, :TOKENS], ((0, 0), (0, TPAD - TOKENS)))
    cm_bias = jnp.where(cmp_ > 0, 0.0, MASK_BIAS).astype(jnp.float32)[:, None, :]
    cm_bias = jnp.concatenate([cm_bias, cm_bias], axis=-1)                   # (B, 1, 128)

    nc = _grid_splits(bsz)           # 2 on v7x (one batch per TensorCore), else 1
    bc = bsz // nc
    out = pl.pallas_call(
        regularize_decoder_kernel,
        out_shape=jax.ShapeDtypeStruct((nc, 1, bc * n), jnp.float32),
        grid_spec=pltpu.PrefetchScalarGridSpec(
            num_scalar_prefetch=0,
            grid=(nc,),
            in_specs=[
                pl.BlockSpec((bc * TPAD, hdim), lambda i: (i, 0)),           # tokens
                pl.BlockSpec((bc, TPAD, 2 * TPAD), lambda i: (i, 0, 0)),     # adj bias
                pl.BlockSpec((bc, 1, 2 * TPAD), lambda i: (i, 0, 0)),        # key-mask bias
                pl.BlockSpec((bc * n, COORD_PAD), lambda i: (i, 0)),         # coords
                pl.BlockSpec((W_ROWS, hdim), lambda i: (0, 0)),              # bf16 weights
                pl.BlockSpec((16, hdim), lambda i: (0, 0)),                  # f32 vec slab
            ],
            out_specs=pl.BlockSpec((1, 1, bc * n), lambda i: (i, 0, 0)),     # lane-dense
        ),
        compiler_params=pltpu.CompilerParams(
            dimension_semantics=("parallel",) if nc > 1 else ("arbitrary",)),
    )(hmae2, adj_bias, cm_bias, coords2, packed["wslab"], packed["vecs"])
    return out.reshape(bsz, n)       # .squeeze() -> (B, N) heatmap logits


# ----------------------------------------------------------------------------
# Pure-JAX f32 reference (same reconstructed module semantics) for verification.
# ----------------------------------------------------------------------------
def reference_forward(hmae, coordinates, c_mask, adj, timestamp, params):
    bsz = hmae.shape[0]
    s_order = jnp.stack([jnp.ones_like(coordinates[..., :1]) * s for s in timestamp])
    coords = jnp.broadcast_to(coordinates[None], (bsz,) + coordinates.shape)
    coords = jnp.concatenate([coords, s_order], axis=-1)                    # (B, N, 3)
    adj56 = adj[:, :TOKENS, :TOKENS]
    cmask56 = c_mask[:, :TOKENS]

    def mha(q_in, kv_in, w, b, mask):
        q = q_in @ w[0] + b[0]
        k = kv_in @ w[1] + b[1]
        v = kv_in @ w[2] + b[2]
        qh = q.reshape(q.shape[0], NUM_HEADS, HEAD_DIM)
        kh = k.reshape(k.shape[0], NUM_HEADS, HEAD_DIM)
        vh = v.reshape(v.shape[0], NUM_HEADS, HEAD_DIM)
        s = jnp.einsum("qhd,khd->hqk", qh, kh) / math.sqrt(HEAD_DIM)
        s = jnp.where(mask[None] > 0, s, -1e9)
        p = jax.nn.softmax(s, axis=-1)
        ctx = jnp.einsum("hqk,khd->qhd", p, vh).reshape(q.shape[0], H)
        return ctx @ w[3] + b[3]

    def layernorm(x, g, b, eps=1e-5):
        mu = x.mean(-1, keepdims=True)
        var = ((x - mu) ** 2).mean(-1, keepdims=True)
        return (x - mu) / jnp.sqrt(var + eps) * g + b

    def one(x, a, cm, crd):
        h = mha(x, x, params["sa_w"], params["sa_b"], a)
        h = jax.nn.relu(h) + x
        h = layernorm(h, params["ln1"][0], params["ln1"][1])
        h = jnp.concatenate([h[:55], x[55:56]], axis=0)
        cemb = crd @ params["ce_w"][:3] + params["ce_b"][0]
        ca = mha(cemb, h, params["ca_w"], params["ca_b"], cm[None, :])
        m = layernorm(ca @ params["mlp_w"] + params["mlp_b"][0],
                      params["mlp_ln"][0], params["mlp_ln"][1])
        m = jax.nn.relu(m)
        cat = jnp.concatenate([ca, m], axis=-1)
        return cat @ params["fc_w"][0] + params["fc_b"][0, 0]

    return jax.vmap(one)(hmae, adj56, cmask56, coords)


def init_params(key):
    ks = jax.random.split(key, 10)
    sc = 0.02
    ce_w = jnp.zeros((COORD_PAD, H), jnp.float32).at[:3].set(
        sc * jax.random.normal(ks[2], (3, H), jnp.float32))
    return {
        "sa_w": sc * jax.random.normal(ks[0], (4, H, H), jnp.float32),
        "sa_b": sc * jax.random.normal(ks[1], (4, H), jnp.float32),
        "ln1": jnp.stack([jnp.ones(H, jnp.float32), jnp.zeros(H, jnp.float32)]),
        "ce_w": ce_w,
        "ce_b": sc * jax.random.normal(ks[3], (1, H), jnp.float32),
        "ca_w": sc * jax.random.normal(ks[4], (4, H, H), jnp.float32),
        "ca_b": sc * jax.random.normal(ks[5], (4, H), jnp.float32),
        "mlp_w": sc * jax.random.normal(ks[6], (H, H), jnp.float32),
        "mlp_b": sc * jax.random.normal(ks[7], (1, H), jnp.float32),
        "mlp_ln": jnp.stack([jnp.ones(H, jnp.float32), jnp.zeros(H, jnp.float32)]),
        "fc_w": sc * jax.random.normal(ks[8], (1, 2 * H), jnp.float32),
        "fc_b": sc * jax.random.normal(ks[9], (1, 1), jnp.float32),
    }


if __name__ == "__main__":
    key = jax.random.PRNGKey(0)
    k_p, k_h, k_c, k_a, k_m = jax.random.split(key, 5)

    params = init_params(k_p)
    packed = pack_params(params)       # hoisted out of the per-call path

    hmae = 0.5 * jax.random.normal(k_h, (B, TOKENS, H), jnp.float32)
    coordinates = 5.0 * jax.random.normal(k_c, (N_COORDS, 2), jnp.float32)
    adj = (jax.random.uniform(k_a, (B, 64, 64)) > 0.4).astype(jnp.float32)
    adj = adj.at[:, jnp.arange(TOKENS), jnp.arange(TOKENS)].set(1.0)  # self edges
    c_mask = (jax.random.uniform(k_m, (B, 64)) > 0.1).astype(jnp.float32)
    c_mask = c_mask.at[:, 0].set(1.0)
    timestamp = (0.5, 1.5)             # len == B (static under jit)

    heatmap = regularize_decoder(hmae, coordinates, c_mask, adj, packed,
                                 timestamp=timestamp)
    heatmap = jax.block_until_ready(heatmap)

    with jax.default_matmul_precision("float32"):
        ref = reference_forward(hmae, coordinates, c_mask, adj, list(timestamp), params)
    ref = jax.block_until_ready(ref)

    assert heatmap.shape == (B, N_COORDS), heatmap.shape
    # Kernel uses bf16 MXU operands (f32 accumulation) + approx reciprocal vs a
    # pure-f32 reference, hence the 1e-2 tolerance.
    err = float(jnp.max(jnp.abs(heatmap - ref)))
    assert jnp.allclose(heatmap, ref, rtol=1e-2, atol=1e-2), err
    print("KERNEL_OK")
</pallas_src>

<mosaic_0001>
module attributes {stable_mosaic.version = 11 : i64} {
  func.func @regularize_decoder_kernel(%arg0: i32, %arg1: memref<128x64xf32, #tpu.memory_space<vmem>>, %arg2: memref<2x64x128xf32, #tpu.memory_space<vmem>>, %arg3: memref<2x1x128xf32, #tpu.memory_space<vmem>>, %arg4: memref<128x8xf32, #tpu.memory_space<vmem>>, %arg5: memref<520x64xbf16, #tpu.memory_space<vmem>>, %arg6: memref<16x64xf32, #tpu.memory_space<vmem>>, %arg7: memref<1x1x128xf32, #tpu.memory_space<vmem>>) attributes {dimension_semantics = [#tpu.dimension_semantics<arbitrary>], iteration_bounds = array<i64: 1>, scalar_prefetch = 0 : i64, scratch_operands = 0 : i64, tpu.core_type = #tpu.core_type<tc>, window_params = [{transform_indices = @transform_0, window_bounds = array<i64: 128, 64>}, {transform_indices = @transform_1, window_bounds = array<i64: 2, 64, 128>}, {transform_indices = @transform_2, window_bounds = array<i64: 2, 1, 128>}, {transform_indices = @transform_3, window_bounds = array<i64: 128, 8>}, {pipeline_mode = #tpu.pipeline_mode<synchronous>, transform_indices = @transform_4, window_bounds = array<i64: 520, 64>}, {pipeline_mode = #tpu.pipeline_mode<synchronous>, transform_indices = @transform_5, window_bounds = array<i64: 16, 64>}, {transform_indices = @transform_6, window_bounds = array<i64: 1, 1, 128>}]} {
    %c0 = arith.constant 0 : index
    %c0_0 = arith.constant 0 : index
    %0 = vector.load %arg1[%c0, %c0_0] : memref<128x64xf32, #tpu.memory_space<vmem>>, vector<128x64xf32>
    %1 = arith.truncf %0 : vector<128x64xf32> to vector<128x64xbf16>
    %c0_1 = arith.constant 0 : index
    %c0_2 = arith.constant 0 : index
    %2 = vector.load %arg6[%c0_1, %c0_2] : memref<16x64xf32, #tpu.memory_space<vmem>>, vector<16x64xf32>
    %3 = tpu.iota {dimensions = array<i32: 1>} : vector<1x64xi32>
    %c32_i32 = arith.constant 32 : i32
    %4 = vector.broadcast %c32_i32 : i32 to vector<1x64xi32>
    %5 = arith.cmpi slt, %3, %4 : vector<1x64xi32>
    %6 = arith.extui %5 : vector<1x64xi1> to vector<1x64xi32>
    %7 = arith.sitofp %6 : vector<1x64xi32> to vector<1x64xf32>
    %cst = arith.constant 1.000000e+00 : f32
    %8 = vector.broadcast %cst : f32 to vector<1x64xf32>
    %9 = arith.subf %8, %7 : vector<1x64xf32>
    %10 = tpu.iota {dimensions = array<i32: 1>} : vector<1x128xi32>
    %c64_i32 = arith.constant 64 : i32
    %11 = vector.broadcast %c64_i32 : i32 to vector<1x128xi32>
    %12 = arith.cmpi slt, %10, %11 : vector<1x128xi32>
    %c0_3 = arith.constant 0 : index
    %c0_4 = arith.constant 0 : index
    %13 = vector.load %arg5[%c0_3, %c0_4] : memref<520x64xbf16, #tpu.memory_space<vmem>>, vector<64x64xbf16>
    %c64 = arith.constant 64 : index
    %c0_5 = arith.constant 0 : index
    %14 = vector.load %arg5[%c64, %c0_5] : memref<520x64xbf16, #tpu.memory_space<vmem>>, vector<64x64xbf16>
    %c128 = arith.constant 128 : index
    %c0_6 = arith.constant 0 : index
    %15 = vector.load %arg5[%c128, %c0_6] : memref<520x64xbf16, #tpu.memory_space<vmem>>, vector<64x64xbf16>
    %c192 = arith.constant 192 : index
    %c0_7 = arith.constant 0 : index
    %16 = vector.load %arg5[%c192, %c0_7] : memref<520x64xbf16, #tpu.memory_space<vmem>>, vector<64x64xbf16>
    %c256 = arith.constant 256 : index
    %c0_8 = arith.constant 0 : index
    %17 = vector.load %arg5[%c256, %c0_8] : memref<520x64xbf16, #tpu.memory_space<vmem>>, vector<64x64xbf16>
    %c320 = arith.constant 320 : index
    %c0_9 = arith.constant 0 : index
    %18 = vector.load %arg5[%c320, %c0_9] : memref<520x64xbf16, #tpu.memory_space<vmem>>, vector<64x64xbf16>
    %c384 = arith.constant 384 : index
    %c0_10 = arith.constant 0 : index
    %19 = vector.load %arg5[%c384, %c0_10] : memref<520x64xbf16, #tpu.memory_space<vmem>>, vector<64x64xbf16>
    %c448 = arith.constant 448 : index
    %c0_11 = arith.constant 0 : index
    %20 = vector.load %arg5[%c448, %c0_11] : memref<520x64xbf16, #tpu.memory_space<vmem>>, vector<64x64xbf16>
    %c512 = arith.constant 512 : index
    %c0_12 = arith.constant 0 : index
    %21 = vector.load %arg5[%c512, %c0_12] : memref<520x64xbf16, #tpu.memory_space<vmem>>, vector<8x64xbf16>
    %cst_13 = arith.constant dense<0.000000e+00> : vector<128x64xf32>
    %22 = tpu.matmul %1, %13, %cst_13 {dimension_numbers = #tpu.dot_dimension_numbers<[1], [0], [0], [1], [0, 0, 1, 1], [], []>} : vector<128x64xbf16>, vector<64x64xbf16>, vector<128x64xf32> -> vector<128x64xf32>
    %23 = vector.extract_strided_slice %2 {offsets = [0, 0], sizes = [1, 64], strides = [1, 1]} : vector<16x64xf32> to vector<1x64xf32>
    %24 = vector.broadcast %23 : vector<1x64xf32> to vector<128x64xf32>
    %25 = arith.addf %22, %24 : vector<128x64xf32>
    %cst_14 = arith.constant dense<0.000000e+00> : vector<128x64xf32>
    %26 = tpu.matmul %1, %14, %cst_14 {dimension_numbers = #tpu.dot_dimension_numbers<[1], [0], [0], [1], [0, 0, 1, 1], [], []>} : vector<128x64xbf16>, vector<64x64xbf16>, vector<128x64xf32> -> vector<128x64xf32>
    %27 = vector.extract_strided_slice %2 {offsets = [1, 0], sizes = [1, 64], strides = [1, 1]} : vector<16x64xf32> to vector<1x64xf32>
    %28 = vector.broadcast %27 : vector<1x64xf32> to vector<128x64xf32>
    %29 = arith.addf %26, %28 : vector<128x64xf32>
    %cst_15 = arith.constant dense<0.000000e+00> : vector<128x64xf32>
    %30 = tpu.matmul %1, %15, %cst_15 {dimension_numbers = #tpu.dot_dimension_numbers<[1], [0], [0], [1], [0, 0, 1, 1], [], []>} : vector<128x64xbf16>, vector<64x64xbf16>, vector<128x64xf32> -> vector<128x64xf32>
    %31 = vector.extract_strided_slice %2 {offsets = [2, 0], sizes = [1, 64], strides = [1, 1]} : vector<16x64xf32> to vector<1x64xf32>
    %32 = vector.broadcast %31 : vector<1x64xf32> to vector<128x64xf32>
    %33 = arith.addf %30, %32 : vector<128x64xf32>
    %c0_16 = arith.constant 0 : index
    %c0_17 = arith.constant 0 : index
    %c0_18 = arith.constant 0 : index
    %34 = vector.load %arg2[%c0_16, %c0_17, %c0_18] : memref<2x64x128xf32, #tpu.memory_space<vmem>>, vector<1x64x128xf32>
    %35 = vector.shape_cast %34 : vector<1x64x128xf32> to vector<64x128xf32>
    %c1 = arith.constant 1 : index
    %c0_19 = arith.constant 0 : index
    %c0_20 = arith.constant 0 : index
    %36 = vector.load %arg2[%c1, %c0_19, %c0_20] : memref<2x64x128xf32, #tpu.memory_space<vmem>>, vector<1x64x128xf32>
    %37 = vector.shape_cast %36 : vector<1x64x128xf32> to vector<64x128xf32>
    %38 = vector.broadcast %7 : vector<1x64xf32> to vector<128x64xf32>
    %39 = arith.mulf %29, %38 : vector<128x64xf32>
    %40 = arith.truncf %39 : vector<128x64xf32> to vector<128x64xbf16>
    %41 = vector.broadcast %9 : vector<1x64xf32> to vector<128x64xf32>
    %42 = arith.mulf %29, %41 : vector<128x64xf32>
    %43 = arith.truncf %42 : vector<128x64xf32> to vector<128x64xbf16>
    %44 = vector.broadcast %7 : vector<1x64xf32> to vector<128x64xf32>
    %45 = arith.mulf %33, %44 : vector<128x64xf32>
    %46 = arith.truncf %45 : vector<128x64xf32> to vector<128x64xbf16>
    %47 = vector.broadcast %9 : vector<1x64xf32> to vector<128x64xf32>
    %48 = arith.mulf %33, %47 : vector<128x64xf32>
    %49 = arith.truncf %48 : vector<128x64xf32> to vector<128x64xbf16>
    %cst_21 = arith.constant 0.176776692 : f32
    %50 = vector.broadcast %cst_21 : f32 to vector<128x64xf32>
    %51 = arith.mulf %25, %50 : vector<128x64xf32>
    %52 = arith.truncf %51 : vector<128x64xf32> to vector<128x64xbf16>
    %53 = vector.extract_strided_slice %52 {offsets = [0, 0], sizes = [64, 64], strides = [1, 1]} : vector<128x64xbf16> to vector<64x64xbf16>
    %54 = vector.extract_strided_slice %40 {offsets = [0, 0], sizes = [64, 64], strides = [1, 1]} : vector<128x64xbf16> to vector<64x64xbf16>
    %55 = vector.extract_strided_slice %43 {offsets = [0, 0], sizes = [64, 64], strides = [1, 1]} : vector<128x64xbf16> to vector<64x64xbf16>
    %56 = tpu.concatenate %54, %55 in 0 : vector<64x64xbf16>, vector<64x64xbf16> -> vector<128x64xbf16>
    %57 = vector.extract_strided_slice %46 {offsets = [0, 0], sizes = [64, 64], strides = [1, 1]} : vector<128x64xbf16> to vector<64x64xbf16>
    %58 = vector.extract_strided_slice %49 {offsets = [0, 0], sizes = [64, 64], strides = [1, 1]} : vector<128x64xbf16> to vector<64x64xbf16>
    %59 = tpu.concatenate %57, %58 in 0 : vector<64x64xbf16>, vector<64x64xbf16> -> vector<128x64xbf16>
    %cst_22 = arith.constant dense<0.000000e+00> : vector<64x128xf32>
    %60 = tpu.matmul %53, %56, %cst_22 {dimension_numbers = #tpu.dot_dimension_numbers<[1], [1], [0], [0], [0, 0, 1, 0], [], []>} : vector<64x64xbf16>, vector<128x64xbf16>, vector<64x128xf32> -> vector<64x128xf32>
    %61 = arith.addf %60, %35 : vector<64x128xf32>
    %cst_23 = arith.constant -1.000000e+30 : f32
    %62 = vector.shape_cast %12 : vector<1x128xi1> to vector<1x128xi1>
    %63 = vector.broadcast %62 : vector<1x128xi1> to vector<64x128xi1>
    %64 = vector.broadcast %cst_23 : f32 to vector<64x128xf32>
    %65 = arith.select %63, %61, %64 : vector<64x128xi1>, vector<64x128xf32>
    %cst_24 = arith.constant dense<0xFF800000> : vector<64xf32>
    %66 = vector.multi_reduction <maximumf>, %65, %cst_24 [1] : vector<64x128xf32> to vector<64xf32>
    %67 = vector.shape_cast %66 : vector<64xf32> to vector<64x1xf32>
    %cst_25 = arith.constant -1.000000e+30 : f32
    %68 = vector.shape_cast %12 : vector<1x128xi1> to vector<1x128xi1>
    %69 = vector.broadcast %68 : vector<1x128xi1> to vector<64x128xi1>
    %70 = vector.broadcast %cst_25 : f32 to vector<64x128xf32>
    %71 = arith.select %69, %70, %61 : vector<64x128xi1>, vector<64x128xf32>
    %cst_26 = arith.constant dense<0xFF800000> : vector<64xf32>
    %72 = vector.multi_reduction <maximumf>, %71, %cst_26 [1] : vector<64x128xf32> to vector<64xf32>
    %73 = vector.shape_cast %72 : vector<64xf32> to vector<64x1xf32>
    %74 = vector.shape_cast %12 : vector<1x128xi1> to vector<1x128xi1>
    %75 = vector.broadcast %74 : vector<1x128xi1> to vector<64x128xi1>
    %76 = vector.shape_cast %67 : vector<64x1xf32> to vector<64x1xf32>
    %77 = vector.broadcast %76 : vector<64x1xf32> to vector<64x128xf32>
    %78 = vector.shape_cast %73 : vector<64x1xf32> to vector<64x1xf32>
    %79 = vector.broadcast %78 : vector<64x1xf32> to vector<64x128xf32>
    %80 = arith.select %75, %77, %79 : vector<64x128xi1>, vector<64x128xf32>
    %81 = arith.subf %61, %80 : vector<64x128xf32>
    %82 = math.exp %81 : vector<64x128xf32>
    %cst_27 = arith.constant 0.000000e+00 : f32
    %83 = vector.shape_cast %12 : vector<1x128xi1> to vector<1x128xi1>
    %84 = vector.broadcast %83 : vector<1x128xi1> to vector<64x128xi1>
    %85 = vector.broadcast %cst_27 : f32 to vector<64x128xf32>
    %86 = arith.select %84, %82, %85 : vector<64x128xi1>, vector<64x128xf32>
    %cst_28 = arith.constant dense<0.000000e+00> : vector<64xf32>
    %87 = vector.multi_reduction <add>, %86, %cst_28 [1] : vector<64x128xf32> to vector<64xf32>
    %88 = vector.shape_cast %87 : vector<64xf32> to vector<64x1xf32>
    %cst_29 = arith.constant 0.000000e+00 : f32
    %89 = vector.shape_cast %12 : vector<1x128xi1> to vector<1x128xi1>
    %90 = vector.broadcast %89 : vector<1x128xi1> to vector<64x128xi1>
    %91 = vector.broadcast %cst_29 : f32 to vector<64x128xf32>
    %92 = arith.select %90, %91, %82 : vector<64x128xi1>, vector<64x128xf32>
    %cst_30 = arith.constant dense<0.000000e+00> : vector<64xf32>
    %93 = vector.multi_reduction <add>, %92, %cst_30 [1] : vector<64x128xf32> to vector<64xf32>
    %94 = vector.shape_cast %93 : vector<64xf32> to vector<64x1xf32>
    %95 = tpu.reciprocal %88 {approx = true} : vector<64x1xf32> -> vector<64x1xf32>
    %96 = tpu.reciprocal %94 {approx = true} : vector<64x1xf32> -> vector<64x1xf32>
    %97 = vector.shape_cast %12 : vector<1x128xi1> to vector<1x128xi1>
    %98 = vector.broadcast %97 : vector<1x128xi1> to vector<64x128xi1>
    %99 = vector.shape_cast %95 : vector<64x1xf32> to vector<64x1xf32>
    %100 = vector.broadcast %99 : vector<64x1xf32> to vector<64x128xf32>
    %101 = vector.shape_cast %96 : vector<64x1xf32> to vector<64x1xf32>
    %102 = vector.broadcast %101 : vector<64x1xf32> to vector<64x128xf32>
    %103 = arith.select %98, %100, %102 : vector<64x128xi1>, vector<64x128xf32>
    %104 = arith.mulf %82, %103 : vector<64x128xf32>
    %105 = arith.truncf %104 : vector<64x128xf32> to vector<64x128xbf16>
    %cst_31 = arith.constant dense<0.000000e+00> : vector<64x64xf32>
    %106 = tpu.matmul %105, %59, %cst_31 {dimension_numbers = #tpu.dot_dimension_numbers<[1], [0], [0], [1], [0, 0, 1, 1], [], []>} : vector<64x128xbf16>, vector<128x64xbf16>, vector<64x64xf32> -> vector<64x64xf32>
    %107 = vector.extract_strided_slice %52 {offsets = [64, 0], sizes = [64, 64], strides = [1, 1]} : vector<128x64xbf16> to vector<64x64xbf16>
    %108 = vector.extract_strided_slice %40 {offsets = [64, 0], sizes = [64, 64], strides = [1, 1]} : vector<128x64xbf16> to vector<64x64xbf16>
    %109 = vector.extract_strided_slice %43 {offsets = [64, 0], sizes = [64, 64], strides = [1, 1]} : vector<128x64xbf16> to vector<64x64xbf16>
    %110 = tpu.concatenate %108, %109 in 0 : vector<64x64xbf16>, vector<64x64xbf16> -> vector<128x64xbf16>
    %111 = vector.extract_strided_slice %46 {offsets = [64, 0], sizes = [64, 64], strides = [1, 1]} : vector<128x64xbf16> to vector<64x64xbf16>
    %112 = vector.extract_strided_slice %49 {offsets = [64, 0], sizes = [64, 64], strides = [1, 1]} : vector<128x64xbf16> to vector<64x64xbf16>
    %113 = tpu.concatenate %111, %112 in 0 : vector<64x64xbf16>, vector<64x64xbf16> -> vector<128x64xbf16>
    %cst_32 = arith.constant dense<0.000000e+00> : vector<64x128xf32>
    %114 = tpu.matmul %107, %110, %cst_32 {dimension_numbers = #tpu.dot_dimension_numbers<[1], [1], [0], [0], [0, 0, 1, 0], [], []>} : vector<64x64xbf16>, vector<128x64xbf16>, vector<64x128xf32> -> vector<64x128xf32>
    %115 = arith.addf %114, %37 : vector<64x128xf32>
    %cst_33 = arith.constant -1.000000e+30 : f32
    %116 = vector.shape_cast %12 : vector<1x128xi1> to vector<1x128xi1>
    %117 = vector.broadcast %116 : vector<1x128xi1> to vector<64x128xi1>
    %118 = vector.broadcast %cst_33 : f32 to vector<64x128xf32>
    %119 = arith.select %117, %115, %118 : vector<64x128xi1>, vector<64x128xf32>
    %cst_34 = arith.constant dense<0xFF800000> : vector<64xf32>
    %120 = vector.multi_reduction <maximumf>, %119, %cst_34 [1] : vector<64x128xf32> to vector<64xf32>
    %121 = vector.shape_cast %120 : vector<64xf32> to vector<64x1xf32>
    %cst_35 = arith.constant -1.000000e+30 : f32
    %122 = vector.shape_cast %12 : vector<1x128xi1> to vector<1x128xi1>
    %123 = vector.broadcast %122 : vector<1x128xi1> to vector<64x128xi1>
    %124 = vector.broadcast %cst_35 : f32 to vector<64x128xf32>
    %125 = arith.select %123, %124, %115 : vector<64x128xi1>, vector<64x128xf32>
    %cst_36 = arith.constant dense<0xFF800000> : vector<64xf32>
    %126 = vector.multi_reduction <maximumf>, %125, %cst_36 [1] : vector<64x128xf32> to vector<64xf32>
    %127 = vector.shape_cast %126 : vector<64xf32> to vector<64x1xf32>
    %128 = vector.shape_cast %12 : vector<1x128xi1> to vector<1x128xi1>
    %129 = vector.broadcast %128 : vector<1x128xi1> to vector<64x128xi1>
    %130 = vector.shape_cast %121 : vector<64x1xf32> to vector<64x1xf32>
    %131 = vector.broadcast %130 : vector<64x1xf32> to vector<64x128xf32>
    %132 = vector.shape_cast %127 : vector<64x1xf32> to vector<64x1xf32>
    %133 = vector.broadcast %132 : vector<64x1xf32> to vector<64x128xf32>
    %134 = arith.select %129, %131, %133 : vector<64x128xi1>, vector<64x128xf32>
    %135 = arith.subf %115, %134 : vector<64x128xf32>
    %136 = math.exp %135 : vector<64x128xf32>
    %cst_37 = arith.constant 0.000000e+00 : f32
    %137 = vector.shape_cast %12 : vector<1x128xi1> to vector<1x128xi1>
    %138 = vector.broadcast %137 : vector<1x128xi1> to vector<64x128xi1>
    %139 = vector.broadcast %cst_37 : f32 to vector<64x128xf32>
    %140 = arith.select %138, %136, %139 : vector<64x128xi1>, vector<64x128xf32>
    %cst_38 = arith.constant dense<0.000000e+00> : vector<64xf32>
    %141 = vector.multi_reduction <add>, %140, %cst_38 [1] : vector<64x128xf32> to vector<64xf32>
    %142 = vector.shape_cast %141 : vector<64xf32> to vector<64x1xf32>
    %cst_39 = arith.constant 0.000000e+00 : f32
    %143 = vector.shape_cast %12 : vector<1x128xi1> to vector<1x128xi1>
    %144 = vector.broadcast %143 : vector<1x128xi1> to vector<64x128xi1>
    %145 = vector.broadcast %cst_39 : f32 to vector<64x128xf32>
    %146 = arith.select %144, %145, %136 : vector<64x128xi1>, vector<64x128xf32>
    %cst_40 = arith.constant dense<0.000000e+00> : vector<64xf32>
    %147 = vector.multi_reduction <add>, %146, %cst_40 [1] : vector<64x128xf32> to vector<64xf32>
    %148 = vector.shape_cast %147 : vector<64xf32> to vector<64x1xf32>
    %149 = tpu.reciprocal %142 {approx = true} : vector<64x1xf32> -> vector<64x1xf32>
    %150 = tpu.reciprocal %148 {approx = true} : vector<64x1xf32> -> vector<64x1xf32>
    %151 = vector.shape_cast %12 : vector<1x128xi1> to vector<1x128xi1>
    %152 = vector.broadcast %151 : vector<1x128xi1> to vector<64x128xi1>
    %153 = vector.shape_cast %149 : vector<64x1xf32> to vector<64x1xf32>
    %154 = vector.broadcast %153 : vector<64x1xf32> to vector<64x128xf32>
    %155 = vector.shape_cast %150 : vector<64x1xf32> to vector<64x1xf32>
    %156 = vector.broadcast %155 : vector<64x1xf32> to vector<64x128xf32>
    %157 = arith.select %152, %154, %156 : vector<64x128xi1>, vector<64x128xf32>
    %158 = arith.mulf %136, %157 : vector<64x128xf32>
    %159 = arith.truncf %158 : vector<64x128xf32> to vector<64x128xbf16>
    %cst_41 = arith.constant dense<0.000000e+00> : vector<64x64xf32>
    %160 = tpu.matmul %159, %113, %cst_41 {dimension_numbers = #tpu.dot_dimension_numbers<[1], [0], [0], [1], [0, 0, 1, 1], [], []>} : vector<64x128xbf16>, vector<128x64xbf16>, vector<64x64xf32> -> vector<64x64xf32>
    %161 = tpu.concatenate %106, %160 in 0 : vector<64x64xf32>, vector<64x64xf32> -> vector<128x64xf32>
    %162 = arith.truncf %161 : vector<128x64xf32> to vector<128x64xbf16>
    %cst_42 = arith.constant dense<0.000000e+00> : vector<128x64xf32>
    %163 = tpu.matmul %162, %16, %cst_42 {dimension_numbers = #tpu.dot_dimension_numbers<[1], [0], [0], [1], [0, 0, 1, 1], [], []>} : vector<128x64xbf16>, vector<64x64xbf16>, vector<128x64xf32> -> vector<128x64xf32>
    %164 = vector.extract_strided_slice %2 {offsets = [3, 0], sizes = [1, 64], strides = [1, 1]} : vector<16x64xf32> to vector<1x64xf32>
    %165 = vector.broadcast %164 : vector<1x64xf32> to vector<128x64xf32>
    %166 = arith.addf %163, %165 : vector<128x64xf32>
    %cst_43 = arith.constant 0.000000e+00 : f32
    %167 = vector.broadcast %cst_43 : f32 to vector<128x64xf32>
    %168 = arith.maximumf %166, %167 : vector<128x64xf32>
    %169 = arith.addf %168, %0 : vector<128x64xf32>
    %170 = vector.extract_strided_slice %2 {offsets = [4, 0], sizes = [1, 64], strides = [1, 1]} : vector<16x64xf32> to vector<1x64xf32>
    %171 = vector.extract_strided_slice %2 {offsets = [5, 0], sizes = [1, 64], strides = [1, 1]} : vector<16x64xf32> to vector<1x64xf32>
    %cst_44 = arith.constant dense<0.000000e+00> : vector<128xf32>
    %172 = vector.multi_reduction <add>, %169, %cst_44 [1] : vector<128x64xf32> to vector<128xf32>
    %173 = vector.shape_cast %172 : vector<128xf32> to vector<128x1xf32>
    %cst_45 = arith.constant 6.400000e+01 : f32
    %174 = vector.broadcast %cst_45 : f32 to vector<128x1xf32>
    %175 = arith.divf %173, %174 : vector<128x1xf32>
    %176 = vector.broadcast %175 : vector<128x1xf32> to vector<128x64xf32>
    %177 = arith.subf %169, %176 : vector<128x64xf32>
    %178 = arith.mulf %177, %177 : vector<128x64xf32>
    %cst_46 = arith.constant dense<0.000000e+00> : vector<128xf32>
    %179 = vector.multi_reduction <add>, %178, %cst_46 [1] : vector<128x64xf32> to vector<128xf32>
    %180 = vector.shape_cast %179 : vector<128xf32> to vector<128x1xf32>
    %cst_47 = arith.constant 6.400000e+01 : f32
    %181 = vector.broadcast %cst_47 : f32 to vector<128x1xf32>
    %182 = arith.divf %180, %181 : vector<128x1xf32>
    %cst_48 = arith.constant 9.99999974E-6 : f32
    %183 = vector.broadcast %cst_48 : f32 to vector<128x1xf32>
    %184 = arith.addf %182, %183 : vector<128x1xf32>
    %185 = math.rsqrt %184 : vector<128x1xf32>
    %186 = vector.broadcast %185 : vector<128x1xf32> to vector<128x64xf32>
    %187 = arith.mulf %177, %186 : vector<128x64xf32>
    %188 = vector.broadcast %170 : vector<1x64xf32> to vector<128x64xf32>
    %189 = arith.mulf %187, %188 : vector<128x64xf32>
    %190 = vector.broadcast %171 : vector<1x64xf32> to vector<128x64xf32>
    %191 = arith.addf %189, %190 : vector<128x64xf32>
    %192 = tpu.iota {dimensions = array<i32: 0>} : vector<128x1xi32>
    %c63_i32 = arith.constant 63 : i32
    %193 = vector.broadcast %c63_i32 : i32 to vector<128x1xi32>
    %194 = arith.andi %192, %193 : vector<128x1xi32>
    %c55_i32 = arith.constant 55 : i32
    %195 = vector.broadcast %c55_i32 : i32 to vector<128x1xi32>
    %196 = arith.cmpi eq, %194, %195 : vector<128x1xi32>
    %197 = vector.shape_cast %196 : vector<128x1xi1> to vector<128x1xi1>
    %198 = vector.broadcast %197 : vector<128x1xi1> to vector<128x64xi1>
    %199 = arith.select %198, %0, %191 : vector<128x64xi1>, vector<128x64xf32>
    %c0_49 = arith.constant 0 : index
    %c0_50 = arith.constant 0 : index
    %200 = vector.load %arg4[%c0_49, %c0_50] : memref<128x8xf32, #tpu.memory_space<vmem>>, vector<128x8xf32>
    %201 = arith.truncf %200 : vector<128x8xf32> to vector<128x8xbf16>
    %cst_51 = arith.constant dense<0.000000e+00> : vector<128x64xf32>
    %202 = tpu.matmul %201, %21, %cst_51 {dimension_numbers = #tpu.dot_dimension_numbers<[1], [0], [0], [1], [0, 0, 1, 1], [], []>} : vector<128x8xbf16>, vector<8x64xbf16>, vector<128x64xf32> -> vector<128x64xf32>
    %203 = vector.extract_strided_slice %2 {offsets = [6, 0], sizes = [1, 64], strides = [1, 1]} : vector<16x64xf32> to vector<1x64xf32>
    %204 = vector.broadcast %203 : vector<1x64xf32> to vector<128x64xf32>
    %205 = arith.addf %202, %204 : vector<128x64xf32>
    %206 = arith.truncf %199 : vector<128x64xf32> to vector<128x64xbf16>
    %cst_52 = arith.constant dense<0.000000e+00> : vector<128x64xf32>
    %207 = tpu.matmul %206, %17, %cst_52 {dimension_numbers = #tpu.dot_dimension_numbers<[1], [0], [0], [1], [0, 0, 1, 1], [], []>} : vector<128x64xbf16>, vector<64x64xbf16>, vector<128x64xf32> -> vector<128x64xf32>
    %208 = vector.extract_strided_slice %2 {offsets = [7, 0], sizes = [1, 64], strides = [1, 1]} : vector<16x64xf32> to vector<1x64xf32>
    %209 = vector.broadcast %208 : vector<1x64xf32> to vector<128x64xf32>
    %210 = arith.addf %207, %209 : vector<128x64xf32>
    %cst_53 = arith.constant dense<0.000000e+00> : vector<128x64xf32>
    %211 = tpu.matmul %206, %18, %cst_53 {dimension_numbers = #tpu.dot_dimension_numbers<[1], [0], [0], [1], [0, 0, 1, 1], [], []>} : vector<128x64xbf16>, vector<64x64xbf16>, vector<128x64xf32> -> vector<128x64xf32>
    %212 = vector.extract_strided_slice %2 {offsets = [8, 0], sizes = [1, 64], strides = [1, 1]} : vector<16x64xf32> to vector<1x64xf32>
    %213 = vector.broadcast %212 : vector<1x64xf32> to vector<128x64xf32>
    %214 = arith.addf %211, %213 : vector<128x64xf32>
    %c0_54 = arith.constant 0 : index
    %c0_55 = arith.constant 0 : index
    %c0_56 = arith.constant 0 : index
    %215 = vector.load %arg3[%c0_54, %c0_55, %c0_56] : memref<2x1x128xf32, #tpu.memory_space<vmem>>, vector<1x1x128xf32>
    %216 = vector.shape_cast %215 : vector<1x1x128xf32> to vector<1x128xf32>
    %c1_57 = arith.constant 1 : index
    %c0_58 = arith.constant 0 : index
    %c0_59 = arith.constant 0 : index
    %217 = vector.load %arg3[%c1_57, %c0_58, %c0_59] : memref<2x1x128xf32, #tpu.memory_space<vmem>>, vector<1x1x128xf32>
    %218 = vector.shape_cast %217 : vector<1x1x128xf32> to vector<1x128xf32>
    %219 = vector.broadcast %7 : vector<1x64xf32> to vector<128x64xf32>
    %220 = arith.mulf %210, %219 : vector<128x64xf32>
    %221 = arith.truncf %220 : vector<128x64xf32> to vector<128x64xbf16>
    %222 = vector.broadcast %9 : vector<1x64xf32> to vector<128x64xf32>
    %223 = arith.mulf %210, %222 : vector<128x64xf32>
    %224 = arith.truncf %223 : vector<128x64xf32> to vector<128x64xbf16>
    %225 = vector.broadcast %7 : vector<1x64xf32> to vector<128x64xf32>
    %226 = arith.mulf %214, %225 : vector<128x64xf32>
    %227 = arith.truncf %226 : vector<128x64xf32> to vector<128x64xbf16>
    %228 = vector.broadcast %9 : vector<1x64xf32> to vector<128x64xf32>
    %229 = arith.mulf %214, %228 : vector<128x64xf32>
    %230 = arith.truncf %229 : vector<128x64xf32> to vector<128x64xbf16>
    %cst_60 = arith.constant 0.176776692 : f32
    %231 = vector.broadcast %cst_60 : f32 to vector<128x64xf32>
    %232 = arith.mulf %205, %231 : vector<128x64xf32>
    %233 = arith.truncf %232 : vector<128x64xf32> to vector<128x64xbf16>
    %234 = vector.extract_strided_slice %233 {offsets = [0, 0], sizes = [64, 64], strides = [1, 1]} : vector<128x64xbf16> to vector<64x64xbf16>
    %235 = vector.extract_strided_slice %221 {offsets = [0, 0], sizes = [64, 64], strides = [1, 1]} : vector<128x64xbf16> to vector<64x64xbf16>
    %236 = vector.extract_strided_slice %224 {offsets = [0, 0], sizes = [64, 64], strides = [1, 1]} : vector<128x64xbf16> to vector<64x64xbf16>
    %237 = tpu.concatenate %235, %236 in 0 : vector<64x64xbf16>, vector<64x64xbf16> -> vector<128x64xbf16>
    %238 = vector.extract_strided_slice %227 {offsets = [0, 0], sizes = [64, 64], strides = [1, 1]} : vector<128x64xbf16> to vector<64x64xbf16>
    %239 = vector.extract_strided_slice %230 {offsets = [0, 0], sizes = [64, 64], strides = [1, 1]} : vector<128x64xbf16> to vector<64x64xbf16>
    %240 = tpu.concatenate %238, %239 in 0 : vector<64x64xbf16>, vector<64x64xbf16> -> vector<128x64xbf16>
    %cst_61 = arith.constant dense<0.000000e+00> : vector<64x128xf32>
    %241 = tpu.matmul %234, %237, %cst_61 {dimension_numbers = #tpu.dot_dimension_numbers<[1], [1], [0], [0], [0, 0, 1, 0], [], []>} : vector<64x64xbf16>, vector<128x64xbf16>, vector<64x128xf32> -> vector<64x128xf32>
    %242 = vector.broadcast %216 : vector<1x128xf32> to vector<64x128xf32>
    %243 = arith.addf %241, %242 : vector<64x128xf32>
    %cst_62 = arith.constant -1.000000e+30 : f32
    %244 = vector.shape_cast %12 : vector<1x128xi1> to vector<1x128xi1>
    %245 = vector.broadcast %244 : vector<1x128xi1> to vector<64x128xi1>
    %246 = vector.broadcast %cst_62 : f32 to vector<64x128xf32>
    %247 = arith.select %245, %243, %246 : vector<64x128xi1>, vector<64x128xf32>
    %cst_63 = arith.constant dense<0xFF800000> : vector<64xf32>
    %248 = vector.multi_reduction <maximumf>, %247, %cst_63 [1] : vector<64x128xf32> to vector<64xf32>
    %249 = vector.shape_cast %248 : vector<64xf32> to vector<64x1xf32>
    %cst_64 = arith.constant -1.000000e+30 : f32
    %250 = vector.shape_cast %12 : vector<1x128xi1> to vector<1x128xi1>
    %251 = vector.broadcast %250 : vector<1x128xi1> to vector<64x128xi1>
    %252 = vector.broadcast %cst_64 : f32 to vector<64x128xf32>
    %253 = arith.select %251, %252, %243 : vector<64x128xi1>, vector<64x128xf32>
    %cst_65 = arith.constant dense<0xFF800000> : vector<64xf32>
    %254 = vector.multi_reduction <maximumf>, %253, %cst_65 [1] : vector<64x128xf32> to vector<64xf32>
    %255 = vector.shape_cast %254 : vector<64xf32> to vector<64x1xf32>
    %256 = vector.shape_cast %12 : vector<1x128xi1> to vector<1x128xi1>
    %257 = vector.broadcast %256 : vector<1x128xi1> to vector<64x128xi1>
    %258 = vector.shape_cast %249 : vector<64x1xf32> to vector<64x1xf32>
    %259 = vector.broadcast %258 : vector<64x1xf32> to vector<64x128xf32>
    %260 = vector.shape_cast %255 : vector<64x1xf32> to vector<64x1xf32>
    %261 = vector.broadcast %260 : vector<64x1xf32> to vector<64x128xf32>
    %262 = arith.select %257, %259, %261 : vector<64x128xi1>, vector<64x128xf32>
    %263 = arith.subf %243, %262 : vector<64x128xf32>
    %264 = math.exp %263 : vector<64x128xf32>
    %cst_66 = arith.constant 0.000000e+00 : f32
    %265 = vector.shape_cast %12 : vector<1x128xi1> to vector<1x128xi1>
    %266 = vector.broadcast %265 : vector<1x128xi1> to vector<64x128xi1>
    %267 = vector.broadcast %cst_66 : f32 to vector<64x128xf32>
    %268 = arith.select %266, %264, %267 : vector<64x128xi1>, vector<64x128xf32>
    %cst_67 = arith.constant dense<0.000000e+00> : vector<64xf32>
    %269 = vector.multi_reduction <add>, %268, %cst_67 [1] : vector<64x128xf32> to vector<64xf32>
    %270 = vector.shape_cast %269 : vector<64xf32> to vector<64x1xf32>
    %cst_68 = arith.constant 0.000000e+00 : f32
    %271 = vector.shape_cast %12 : vector<1x128xi1> to vector<1x128xi1>
    %272 = vector.broadcast %271 : vector<1x128xi1> to vector<64x128xi1>
    %273 = vector.broadcast %cst_68 : f32 to vector<64x128xf32>
    %274 = arith.select %272, %273, %264 : vector<64x128xi1>, vector<64x128xf32>
    %cst_69 = arith.constant dense<0.000000e+00> : vector<64xf32>
    %275 = vector.multi_reduction <add>, %274, %cst_69 [1] : vector<64x128xf32> to vector<64xf32>
    %276 = vector.shape_cast %275 : vector<64xf32> to vector<64x1xf32>
    %277 = tpu.reciprocal %270 {approx = true} : vector<64x1xf32> -> vector<64x1xf32>
    %278 = tpu.reciprocal %276 {approx = true} : vector<64x1xf32> -> vector<64x1xf32>
    %279 = vector.shape_cast %12 : vector<1x128xi1> to vector<1x128xi1>
    %280 = vector.broadcast %279 : vector<1x128xi1> to vector<64x128xi1>
    %281 = vector.shape_cast %277 : vector<64x1xf32> to vector<64x1xf32>
    %282 = vector.broadcast %281 : vector<64x1xf32> to vector<64x128xf32>
    %283 = vector.shape_cast %278 : vector<64x1xf32> to vector<64x1xf32>
    %284 = vector.broadcast %283 : vector<64x1xf32> to vector<64x128xf32>
    %285 = arith.select %280, %282, %284 : vector<64x128xi1>, vector<64x128xf32>
    %286 = arith.mulf %264, %285 : vector<64x128xf32>
    %287 = arith.truncf %286 : vector<64x128xf32> to vector<64x128xbf16>
    %cst_70 = arith.constant dense<0.000000e+00> : vector<64x64xf32>
    %288 = tpu.matmul %287, %240, %cst_70 {dimension_numbers = #tpu.dot_dimension_numbers<[1], [0], [0], [1], [0, 0, 1, 1], [], []>} : vector<64x128xbf16>, vector<128x64xbf16>, vector<64x64xf32> -> vector<64x64xf32>
    %289 = vector.extract_strided_slice %233 {offsets = [64, 0], sizes = [64, 64], strides = [1, 1]} : vector<128x64xbf16> to vector<64x64xbf16>
    %290 = vector.extract_strided_slice %221 {offsets = [64, 0], sizes = [64, 64], strides = [1, 1]} : vector<128x64xbf16> to vector<64x64xbf16>
    %291 = vector.extract_strided_slice %224 {offsets = [64, 0], sizes = [64, 64], strides = [1, 1]} : vector<128x64xbf16> to vector<64x64xbf16>
    %292 = tpu.concatenate %290, %291 in 0 : vector<64x64xbf16>, vector<64x64xbf16> -> vector<128x64xbf16>
    %293 = vector.extract_strided_slice %227 {offsets = [64, 0], sizes = [64, 64], strides = [1, 1]} : vector<128x64xbf16> to vector<64x64xbf16>
    %294 = vector.extract_strided_slice %230 {offsets = [64, 0], sizes = [64, 64], strides = [1, 1]} : vector<128x64xbf16> to vector<64x64xbf16>
    %295 = tpu.concatenate %293, %294 in 0 : vector<64x64xbf16>, vector<64x64xbf16> -> vector<128x64xbf16>
    %cst_71 = arith.constant dense<0.000000e+00> : vector<64x128xf32>
    %296 = tpu.matmul %289, %292, %cst_71 {dimension_numbers = #tpu.dot_dimension_numbers<[1], [1], [0], [0], [0, 0, 1, 0], [], []>} : vector<64x64xbf16>, vector<128x64xbf16>, vector<64x128xf32> -> vector<64x128xf32>
    %297 = vector.broadcast %218 : vector<1x128xf32> to vector<64x128xf32>
    %298 = arith.addf %296, %297 : vector<64x128xf32>
    %cst_72 = arith.constant -1.000000e+30 : f32
    %299 = vector.shape_cast %12 : vector<1x128xi1> to vector<1x128xi1>
    %300 = vector.broadcast %299 : vector<1x128xi1> to vector<64x128xi1>
    %301 = vector.broadcast %cst_72 : f32 to vector<64x128xf32>
    %302 = arith.select %300, %298, %301 : vector<64x128xi1>, vector<64x128xf32>
    %cst_73 = arith.constant dense<0xFF800000> : vector<64xf32>
    %303 = vector.multi_reduction <maximumf>, %302, %cst_73 [1] : vector<64x128xf32> to vector<64xf32>
    %304 = vector.shape_cast %303 : vector<64xf32> to vector<64x1xf32>
    %cst_74 = arith.constant -1.000000e+30 : f32
    %305 = vector.shape_cast %12 : vector<1x128xi1> to vector<1x128xi1>
    %306 = vector.broadcast %305 : vector<1x128xi1> to vector<64x128xi1>
    %307 = vector.broadcast %cst_74 : f32 to vector<64x128xf32>
    %308 = arith.select %306, %307, %298 : vector<64x128xi1>, vector<64x128xf32>
    %cst_75 = arith.constant dense<0xFF800000> : vector<64xf32>
    %309 = vector.multi_reduction <maximumf>, %308, %cst_75 [1] : vector<64x128xf32> to vector<64xf32>
    %310 = vector.shape_cast %309 : vector<64xf32> to vector<64x1xf32>
    %311 = vector.shape_cast %12 : vector<1x128xi1> to vector<1x128xi1>
    %312 = vector.broadcast %311 : vector<1x128xi1> to vector<64x128xi1>
    %313 = vector.shape_cast %304 : vector<64x1xf32> to vector<64x1xf32>
    %314 = vector.broadcast %313 : vector<64x1xf32> to vector<64x128xf32>
    %315 = vector.shape_cast %310 : vector<64x1xf32> to vector<64x1xf32>
    %316 = vector.broadcast %315 : vector<64x1xf32> to vector<64x128xf32>
    %317 = arith.select %312, %314, %316 : vector<64x128xi1>, vector<64x128xf32>
    %318 = arith.subf %298, %317 : vector<64x128xf32>
    %319 = math.exp %318 : vector<64x128xf32>
    %cst_76 = arith.constant 0.000000e+00 : f32
    %320 = vector.shape_cast %12 : vector<1x128xi1> to vector<1x128xi1>
    %321 = vector.broadcast %320 : vector<1x128xi1> to vector<64x128xi1>
    %322 = vector.broadcast %cst_76 : f32 to vector<64x128xf32>
    %323 = arith.select %321, %319, %322 : vector<64x128xi1>, vector<64x128xf32>
    %cst_77 = arith.constant dense<0.000000e+00> : vector<64xf32>
    %324 = vector.multi_reduction <add>, %323, %cst_77 [1] : vector<64x128xf32> to vector<64xf32>
    %325 = vector.shape_cast %324 : vector<64xf32> to vector<64x1xf32>
    %cst_78 = arith.constant 0.000000e+00 : f32
    %326 = vector.shape_cast %12 : vector<1x128xi1> to vector<1x128xi1>
    %327 = vector.broadcast %326 : vector<1x128xi1> to vector<64x128xi1>
    %328 = vector.broadcast %cst_78 : f32 to vector<64x128xf32>
    %329 = arith.select %327, %328, %319 : vector<64x128xi1>, vector<64x128xf32>
    %cst_79 = arith.constant dense<0.000000e+00> : vector<64xf32>
    %330 = vector.multi_reduction <add>, %329, %cst_79 [1] : vector<64x128xf32> to vector<64xf32>
    %331 = vector.shape_cast %330 : vector<64xf32> to vector<64x1xf32>
    %332 = tpu.reciprocal %325 {approx = true} : vector<64x1xf32> -> vector<64x1xf32>
    %333 = tpu.reciprocal %331 {approx = true} : vector<64x1xf32> -> vector<64x1xf32>
    %334 = vector.shape_cast %12 : vector<1x128xi1> to vector<1x128xi1>
    %335 = vector.broadcast %334 : vector<1x128xi1> to vector<64x128xi1>
    %336 = vector.shape_cast %332 : vector<64x1xf32> to vector<64x1xf32>
    %337 = vector.broadcast %336 : vector<64x1xf32> to vector<64x128xf32>
    %338 = vector.shape_cast %333 : vector<64x1xf32> to vector<64x1xf32>
    %339 = vector.broadcast %338 : vector<64x1xf32> to vector<64x128xf32>
    %340 = arith.select %335, %337, %339 : vector<64x128xi1>, vector<64x128xf32>
    %341 = arith.mulf %319, %340 : vector<64x128xf32>
    %342 = arith.truncf %341 : vector<64x128xf32> to vector<64x128xbf16>
    %cst_80 = arith.constant dense<0.000000e+00> : vector<64x64xf32>
    %343 = tpu.matmul %342, %295, %cst_80 {dimension_numbers = #tpu.dot_dimension_numbers<[1], [0], [0], [1], [0, 0, 1, 1], [], []>} : vector<64x128xbf16>, vector<128x64xbf16>, vector<64x64xf32> -> vector<64x64xf32>
    %344 = tpu.concatenate %288, %343 in 0 : vector<64x64xf32>, vector<64x64xf32> -> vector<128x64xf32>
    %345 = arith.truncf %344 : vector<128x64xf32> to vector<128x64xbf16>
    %cst_81 = arith.constant dense<0.000000e+00> : vector<128x64xf32>
    %346 = tpu.matmul %345, %19, %cst_81 {dimension_numbers = #tpu.dot_dimension_numbers<[1], [0], [0], [1], [0, 0, 1, 1], [], []>} : vector<128x64xbf16>, vector<64x64xbf16>, vector<128x64xf32> -> vector<128x64xf32>
    %347 = vector.extract_strided_slice %2 {offsets = [9, 0], sizes = [1, 64], strides = [1, 1]} : vector<16x64xf32> to vector<1x64xf32>
    %348 = vector.broadcast %347 : vector<1x64xf32> to vector<128x64xf32>
    %349 = arith.addf %346, %348 : vector<128x64xf32>
    %350 = arith.truncf %349 : vector<128x64xf32> to vector<128x64xbf16>
    %cst_82 = arith.constant dense<0.000000e+00> : vector<128x64xf32>
    %351 = tpu.matmul %350, %20, %cst_82 {dimension_numbers = #tpu.dot_dimension_numbers<[1], [0], [0], [1], [0, 0, 1, 1], [], []>} : vector<128x64xbf16>, vector<64x64xbf16>, vector<128x64xf32> -> vector<128x64xf32>
    %352 = vector.extract_strided_slice %2 {offsets = [10, 0], sizes = [1, 64], strides = [1, 1]} : vector<16x64xf32> to vector<1x64xf32>
    %353 = vector.broadcast %352 : vector<1x64xf32> to vector<128x64xf32>
    %354 = arith.addf %351, %353 : vector<128x64xf32>
    %355 = vector.extract_strided_slice %2 {offsets = [11, 0], sizes = [1, 64], strides = [1, 1]} : vector<16x64xf32> to vector<1x64xf32>
    %356 = vector.extract_strided_slice %2 {offsets = [12, 0], sizes = [1, 64], strides = [1, 1]} : vector<16x64xf32> to vector<1x64xf32>
    %cst_83 = arith.constant dense<0.000000e+00> : vector<128xf32>
    %357 = vector.multi_reduction <add>, %354, %cst_83 [1] : vector<128x64xf32> to vector<128xf32>
    %358 = vector.shape_cast %357 : vector<128xf32> to vector<128x1xf32>
    %cst_84 = arith.constant 6.400000e+01 : f32
    %359 = vector.broadcast %cst_84 : f32 to vector<128x1xf32>
    %360 = arith.divf %358, %359 : vector<128x1xf32>
    %361 = vector.broadcast %360 : vector<128x1xf32> to vector<128x64xf32>
    %362 = arith.subf %354, %361 : vector<128x64xf32>
    %363 = arith.mulf %362, %362 : vector<128x64xf32>
    %cst_85 = arith.constant dense<0.000000e+00> : vector<128xf32>
    %364 = vector.multi_reduction <add>, %363, %cst_85 [1] : vector<128x64xf32> to vector<128xf32>
    %365 = vector.shape_cast %364 : vector<128xf32> to vector<128x1xf32>
    %cst_86 = arith.constant 6.400000e+01 : f32
    %366 = vector.broadcast %cst_86 : f32 to vector<128x1xf32>
    %367 = arith.divf %365, %366 : vector<128x1xf32>
    %cst_87 = arith.constant 9.99999974E-6 : f32
    %368 = vector.broadcast %cst_87 : f32 to vector<128x1xf32>
    %369 = arith.addf %367, %368 : vector<128x1xf32>
    %370 = math.rsqrt %369 : vector<128x1xf32>
    %371 = vector.broadcast %370 : vector<128x1xf32> to vector<128x64xf32>
    %372 = arith.mulf %362, %371 : vector<128x64xf32>
    %373 = vector.broadcast %355 : vector<1x64xf32> to vector<128x64xf32>
    %374 = arith.mulf %372, %373 : vector<128x64xf32>
    %375 = vector.broadcast %356 : vector<1x64xf32> to vector<128x64xf32>
    %376 = arith.addf %374, %375 : vector<128x64xf32>
    %cst_88 = arith.constant 0.000000e+00 : f32
    %377 = vector.broadcast %cst_88 : f32 to vector<128x64xf32>
    %378 = arith.maximumf %376, %377 : vector<128x64xf32>
    %379 = vector.extract_strided_slice %2 {offsets = [13, 0], sizes = [1, 64], strides = [1, 1]} : vector<16x64xf32> to vector<1x64xf32>
    %380 = arith.truncf %379 : vector<1x64xf32> to vector<1x64xbf16>
    %381 = vector.extract_strided_slice %2 {offsets = [14, 0], sizes = [1, 64], strides = [1, 1]} : vector<16x64xf32> to vector<1x64xf32>
    %382 = arith.truncf %381 : vector<1x64xf32> to vector<1x64xbf16>
    %cst_89 = arith.constant dense<0.000000e+00> : vector<1x128xf32>
    %383 = tpu.matmul %380, %350, %cst_89 {dimension_numbers = #tpu.dot_dimension_numbers<[1], [1], [0], [0], [0, 0, 1, 0], [], []>} : vector<1x64xbf16>, vector<128x64xbf16>, vector<1x128xf32> -> vector<1x128xf32>
    %384 = arith.truncf %378 : vector<128x64xf32> to vector<128x64xbf16>
    %cst_90 = arith.constant dense<0.000000e+00> : vector<1x128xf32>
    %385 = tpu.matmul %382, %384, %cst_90 {dimension_numbers = #tpu.dot_dimension_numbers<[1], [1], [0], [0], [0, 0, 1, 0], [], []>} : vector<1x64xbf16>, vector<128x64xbf16>, vector<1x128xf32> -> vector<1x128xf32>
    %386 = arith.addf %383, %385 : vector<1x128xf32>
    %387 = vector.extract_strided_slice %2 {offsets = [15, 0], sizes = [1, 1], strides = [1, 1]} : vector<16x64xf32> to vector<1x1xf32>
    %388 = vector.broadcast %387 : vector<1x1xf32> to vector<1x128xf32>
    %389 = arith.addf %386, %388 : vector<1x128xf32>
    %390 = vector.shape_cast %389 : vector<1x128xf32> to vector<1x1x128xf32>
    %c0_91 = arith.constant 0 : index
    %c0_92 = arith.constant 0 : index
    %c0_93 = arith.constant 0 : index
    %391 = vector.load %arg7[%c0_91, %c0_92, %c0_93] : memref<1x1x128xf32, #tpu.memory_space<vmem>>, vector<1x1x128xf32>
    tpu.vector_store %arg7[%c0_91, %c0_92, %c0_93], %390 {strides = array<i32>} : memref<1x1x128xf32, #tpu.memory_space<vmem>>, vector<1x1x128xf32>,
    return
  }
  func.func @transform_0(%arg0: i32) -> (i32, i32) {
    %c0_i32 = arith.constant 0 : i32
    %c0_i32_0 = arith.constant 0 : i32
    return %arg0, %c0_i32 : i32, i32
  }
  func.func @transform_1(%arg0: i32) -> (i32, i32, i32) {
    %c0_i32 = arith.constant 0 : i32
    %c0_i32_0 = arith.constant 0 : i32
    %c0_i32_1 = arith.constant 0 : i32
    return %arg0, %c0_i32, %c0_i32_0 : i32, i32, i32
  }
  func.func @transform_2(%arg0: i32) -> (i32, i32, i32) {
    %c0_i32 = arith.constant 0 : i32
    %c0_i32_0 = arith.constant 0 : i32
    %c0_i32_1 = arith.constant 0 : i32
    return %arg0, %c0_i32, %c0_i32_0 : i32, i32, i32
  }
  func.func @transform_3(%arg0: i32) -> (i32, i32) {
    %c0_i32 = arith.constant 0 : i32
    %c0_i32_0 = arith.constant 0 : i32
    return %arg0, %c0_i32 : i32, i32
  }
  func.func @transform_4(%arg0: i32) -> (i32, i32) {
    %c0_i32 = arith.constant 0 : i32
    %c0_i32_0 = arith.constant 0 : i32
    %c0_i32_1 = arith.constant 0 : i32
    return %c0_i32, %c0_i32_0 : i32, i32
  }
  func.func @transform_5(%arg0: i32) -> (i32, i32) {
    %c0_i32 = arith.constant 0 : i32
    %c0_i32_0 = arith.constant 0 : i32
    %c0_i32_1 = arith.constant 0 : i32
    return %c0_i32, %c0_i32_0 : i32, i32
  }
  func.func @transform_6(%arg0: i32) -> (i32, i32, i32) {
    %c0_i32 = arith.constant 0 : i32
    %c0_i32_0 = arith.constant 0 : i32
    %c0_i32_1 = arith.constant 0 : i32
    return %arg0, %c0_i32, %c0_i32_0 : i32, i32, i32
  }
}

</mosaic_0001>

<llo_original>
// kernel: regularize_decoder.1
$region0: #{regularize_decoder.1}
  #allocation0 [shape = 'u32[]', space=smem, size = 0x4, offset = 0x4, fixed_abs, tag = 'smem constant byte address 0x4 - core index']
  #allocation1 [shape = 'u32[144,128]{1,0:T(1,128)}', space=vmem, size = 0x12000, scoped, tag = 'internal scratch']
  %s0 = inlined_call_operand.vmem [shape: f32[128,64], index: 0, kind: input, shape index: {}]
  %s1 = inlined_call_operand.vmem [shape: f32[2,64,128], index: 1, kind: input, shape index: {}]
  %s2 = inlined_call_operand.vmem [shape: f32[2,1,128], index: 2, kind: input, shape index: {}]
  %s3 = inlined_call_operand.vmem [shape: f32[128,8], index: 3, kind: input, shape index: {}]
  %s4 = inlined_call_operand.vmem [shape: bf16[520,64], index: 4, kind: input, shape index: {}]
  %s5 = inlined_call_operand.vmem [shape: f32[16,64], index: 5, kind: input, shape index: {}]
  %s6 = inlined_call_operand.vmem [shape: f32[1,1,128], index: 6, kind: output, shape index: {}]
  %s7 = sld [smem:[#allocation0]]
  $region34: #{regularize_decoder.1} parent=0
    _
  %s9 = ssub.s32 1, %s7
  %s10 = scalar_select 0, %s9, %s7
  // Predicated region
  $region2: #{regularize_decoder.1} parent=0 // pred_check
    _
  $region3: #{regularize_decoder.1} parent=0 // pred_check_branch
    %12 = sbr.rel (0) target = $region5
  $region4: #{regularize_decoder.1} parent=0 // pred_region
    _
  $region5: #{regularize_decoder.1} parent=0 // pred_fallthru
    _
  // Predicated region
  $region6: #{regularize_decoder.1} parent=0 // pred_check
    _
  $region7: #{regularize_decoder.1} parent=0 // pred_check_branch
    %14 = sbr.rel (0) target = $region9
  $region8: #{regularize_decoder.1} parent=0 // pred_region
    _
  $region9: #{regularize_decoder.1} parent=0 // pred_fallthru
    _
  // Predicated region
  $region10: #{regularize_decoder.1} parent=0 // pred_check
    _
  $region11: #{regularize_decoder.1} parent=0 // pred_check_branch
    %16 = sbr.rel (0) target = $region13
  $region12: #{regularize_decoder.1} parent=0 // pred_region
    _
  $region13: #{regularize_decoder.1} parent=0 // pred_fallthru
    _
  // Predicated region
  $region14: #{regularize_decoder.1} parent=0 // pred_check
    _
  $region15: #{regularize_decoder.1} parent=0 // pred_check_branch
    %18 = sbr.rel (0) target = $region17
  $region16: #{regularize_decoder.1} parent=0 // pred_region
    _
  $region17: #{regularize_decoder.1} parent=0 // pred_fallthru
    _
  // Predicated region
  $region18: #{regularize_decoder.1} parent=0 // pred_check
    _
  $region19: #{regularize_decoder.1} parent=0 // pred_check_branch
    %20 = sbr.rel (0) target = $region21
  $region20: #{regularize_decoder.1} parent=0 // pred_region
    _
  $region21: #{regularize_decoder.1} parent=0 // pred_fallthru
    _
  // Predicated region
  $region22: #{regularize_decoder.1} parent=0 // pred_check
    _
  $region23: #{regularize_decoder.1} parent=0 // pred_check_branch
    %22 = sbr.rel (0) target = $region25
  $region24: #{regularize_decoder.1} parent=0 // pred_region
    _
  $region25: #{regularize_decoder.1} parent=0 // pred_fallthru
    _
  %v24 = vld [vmem:[%s0] sm:$0xff]
  %v25 = vld [vmem:[%s0 + $0x8] sm:$0xff]
  %v26 = vld [vmem:[%s0 + $0x10] sm:$0xff]
  %v27 = vld [vmem:[%s0 + $0x18] sm:$0xff]
  %v28 = vld [vmem:[%s0 + $0x20] sm:$0xff]
  %v29 = vld [vmem:[%s0 + $0x28] sm:$0xff]
  %v30 = vld [vmem:[%s0 + $0x30] sm:$0xff]
  %v31 = vld [vmem:[%s0 + $0x38] sm:$0xff]
  %v32 = vld [vmem:[%s0 + $0x40] sm:$0xff]
  %v33 = vld [vmem:[%s0 + $0x48] sm:$0xff]
  %v34 = vld [vmem:[%s0 + $0x50] sm:$0xff]
  %v35 = vld [vmem:[%s0 + $0x58] sm:$0xff]
  %v36 = vld [vmem:[%s0 + $0x60] sm:$0xff]
  %v37 = vld [vmem:[%s0 + $0x68] sm:$0xff]
  %v38 = vld [vmem:[%s0 + $0x70] sm:$0xff]
  %v39 = vld [vmem:[%s0 + $0x78] sm:$0xff]
  %v40 = vpack.c.bf16 %v25, %v24
  %v41 = vpack.c.bf16 %v27, %v26
  %v42 = vpack.c.bf16 %v29, %v28
  %v43 = vpack.c.bf16 %v31, %v30
  %v44 = vpack.c.bf16 %v33, %v32
  %v45 = vpack.c.bf16 %v35, %v34
  %v46 = vpack.c.bf16 %v37, %v36
  %v47 = vpack.c.bf16 %v39, %v38
  %v48 = vld [vmem:[%s5] sm:$0xff]
  %v49 = vld [vmem:[%s5 + $0x8] sm:$0xff]
  %v50 = vlaneseq
  %v51 = vand.u32 %v50, 127
  %vm52 = vcmp.lt.s32.totalorder %v51, 32
  %v53 = vsel %vm52, 1, 0
  %v54 = vcvt.s32.f32 %v53
  %v55 = vsub.f32 1.0, %v54
  %vm56 = vcmp.lt.s32.totalorder %v51, 64
  %v57 = vld [vmem:[%s4] sm:$0xf]
  %v58 = vld [vmem:[%s4 + $0x4] sm:$0xf]
  %v59 = vld [vmem:[%s4 + $0x8] sm:$0xf]
  %v60 = vld [vmem:[%s4 + $0xc] sm:$0xf]
  %v61 = vld [vmem:[%s4 + $0x10] sm:$0xf]
  %v62 = vld [vmem:[%s4 + $0x14] sm:$0xf]
  %v63 = vld [vmem:[%s4 + $0x18] sm:$0xf]
  %v64 = vld [vmem:[%s4 + $0x1c] sm:$0xf]
  %v65 = vld [vmem:[%s4 + $0x20] sm:$0xf]
  %v66 = vld [vmem:[%s4 + $0x24] sm:$0xf]
  %v67 = vld [vmem:[%s4 + $0x28] sm:$0xf]
  %v68 = vld [vmem:[%s4 + $0x2c] sm:$0xf]
  %v69 = vld [vmem:[%s4 + $0x30] sm:$0xf]
  %v70 = vld [vmem:[%s4 + $0x34] sm:$0xf]
  %v71 = vld [vmem:[%s4 + $0x38] sm:$0xf]
  %v72 = vld [vmem:[%s4 + $0x3c] sm:$0xf]
  %v73 = vld [vmem:[%s4 + $0x40] sm:$0xf]
  %v74 = vld [vmem:[%s4 + $0x44] sm:$0xf]
  %v75 = vld [vmem:[%s4 + $0x48] sm:$0xf]
  %v76 = vld [vmem:[%s4 + $0x4c] sm:$0xf]
  %v77 = vld [vmem:[%s4 + $0x50] sm:$0xf]
  %v78 = vld [vmem:[%s4 + $0x54] sm:$0xf]
  %v79 = vld [vmem:[%s4 + $0x58] sm:$0xf]
  %v80 = vld [vmem:[%s4 + $0x5c] sm:$0xf]
  %v81 = vld [vmem:[%s4 + $0x60] sm:$0xf]
  %v82 = vld [vmem:[%s4 + $0x64] sm:$0xf]
  %v83 = vld [vmem:[%s4 + $0x68] sm:$0xf]
  %v84 = vld [vmem:[%s4 + $0x6c] sm:$0xf]
  %v85 = vld [vmem:[%s4 + $0x70] sm:$0xf]
  %v86 = vld [vmem:[%s4 + $0x74] sm:$0xf]
  %v87 = vld [vmem:[%s4 + $0x78] sm:$0xf]
  %v88 = vld [vmem:[%s4 + $0x7c] sm:$0xf]
  %v89 = vld [vmem:[%s4 + $0x80] sm:$0xf]
  %v90 = vld [vmem:[%s4 + $0x84] sm:$0xf]
  %v91 = vld [vmem:[%s4 + $0x88] sm:$0xf]
  %v92 = vld [vmem:[%s4 + $0x8c] sm:$0xf]
  %v93 = vld [vmem:[%s4 + $0x90] sm:$0xf]
  %v94 = vld [vmem:[%s4 + $0x94] sm:$0xf]
  %v95 = vld [vmem:[%s4 + $0x98] sm:$0xf]
  %v96 = vld [vmem:[%s4 + $0x9c] sm:$0xf]
  %v97 = vld [vmem:[%s4 + $0xa0] sm:$0xf]
  %v98 = vld [vmem:[%s4 + $0xa4] sm:$0xf]
  %v99 = vld [vmem:[%s4 + $0xa8] sm:$0xf]
  %v100 = vld [vmem:[%s4 + $0xac] sm:$0xf]
  %v101 = vld [vmem:[%s4 + $0xb0] sm:$0xf]
  %v102 = vld [vmem:[%s4 + $0xb4] sm:$0xf]
  %v103 = vld [vmem:[%s4 + $0xb8] sm:$0xf]
  %v104 = vld [vmem:[%s4 + $0xbc] sm:$0xf]
  %v105 = vld [vmem:[%s4 + $0xc0] sm:$0xf]
  %v106 = vld [vmem:[%s4 + $0xc4] sm:$0xf]
  %v107 = vld [vmem:[%s4 + $0xc8] sm:$0xf]
  %v108 = vld [vmem:[%s4 + $0xcc] sm:$0xf]
  %v109 = vld [vmem:[%s4 + $0xd0] sm:$0xf]
  %v110 = vld [vmem:[%s4 + $0xd4] sm:$0xf]
  %v111 = vld [vmem:[%s4 + $0xd8] sm:$0xf]
  %v112 = vld [vmem:[%s4 + $0xdc] sm:$0xf]
  %v113 = vld [vmem:[%s4 + $0xe0] sm:$0xf]
  %v114 = vld [vmem:[%s4 + $0xe4] sm:$0xf]
  %v115 = vld [vmem:[%s4 + $0xe8] sm:$0xf]
  %v116 = vld [vmem:[%s4 + $0xec] sm:$0xf]
  %v117 = vld [vmem:[%s4 + $0xf0] sm:$0xf]
  %v118 = vld [vmem:[%s4 + $0xf4] sm:$0xf]
  %v119 = vld [vmem:[%s4 + $0xf8] sm:$0xf]
  %v120 = vld [vmem:[%s4 + $0xfc] sm:$0xf]
  %v121 = vld [vmem:[%s4 + $0x100] sm:$0xf]
  %v122 = vlaneseq
  %v123 = vshrl.u32 %v122, 7
  %v124 = vsub.s32 0, %v123
  %v125 = vrot.slane %v48, %v124
  %v134 = vunpack.c.l.b16 %v57
  %v135 = vunpack.c.l.b16 %v58
  %v136 = vunpack.c.l.b16 %v59
  %v137 = vunpack.c.l.b16 %v60
  %v138 = vunpack.c.l.b16 %v61
  %v139 = vunpack.c.l.b16 %v62
  %v140 = vunpack.c.l.b16 %v63
  %v141 = vunpack.c.l.b16 %v64
  %v142 = vpack.c.b16 %v135, %v134
  %v143 = vpack.c.b16 %v137, %v136
  %v144 = vpack.c.b16 %v139, %v138
  %v145 = vpack.c.b16 %v141, %v140
  %vm150 = vcmask 523264
  %v152 = vsel %vm150, %v40, 0
  %v155 = vsel %vm150, %v41, 0
  %v158 = vsel %vm150, %v42, 0
  %v161 = vsel %vm150, %v43, 0
  %v164 = vsel %vm150, %v44, 0
  %v167 = vsel %vm150, %v45, 0
  %v170 = vsel %vm150, %v46, 0
  %v173 = vsel %vm150, %v47, 0
  %175 = vmatprep.subr.bf16.mxu0 0
  %176 = vmatpush1.bf16.msra.mxu0 0
  %177 = vmatprep.subr.bf16.mxu0 0
  %178 = vmatpush1.bf16.msra.mxu0 0
  %179 = vmatprep.subr.bf16.mxu0 0
  %180 = vmatpush1.bf16.msra.mxu0 0
  %181 = vmatprep.subr.bf16.mxu0 0
  %182 = vmatpush1.bf16.msra.mxu0 0
  %183 = vmatprep.subr.bf16.mxu0 0
  %184 = vmatpush1.bf16.msra.mxu0 %v145
  %185 = vmatprep.subr.bf16.mxu0 0
  %186 = vmatpush1.bf16.msra.mxu0 %v144
  %187 = vmatprep.subr.bf16.mxu0 0
  %188 = vmatpush1.bf16.msra.mxu0 %v143
  %189 = vmatprep.subr.bf16.mxu0 0
  %190 = vmatpush1.bf16.msra.mxu0 %v142
  %191 = vmatprep.subr.bf16.mxu0 0
  %192 = vmatpush2.bf16.msra.mxu0 0
  %193 = vmatprep.subr.bf16.mxu0 0
  %194 = vmatpush2.bf16.msra.mxu0 0
  %195 = vmatprep.subr.bf16.mxu0 0
  %196 = vmatpush2.bf16.msra.mxu0 0
  %197 = vmatprep.subr.bf16.mxu0 0
  %198 = vmatpush2.bf16.msra.mxu0 0
  %199 = vmatprep.subr.bf16.mxu0 0
  %200 = vmatpush2.bf16.msra.mxu0 0
  %201 = vmatprep.subr.bf16.mxu0 0
  %202 = vmatpush2.bf16.msra.mxu0 0
  %203 = vmatprep.subr.bf16.mxu0 0
  %204 = vmatpush2.bf16.msra.mxu0 0
  %205 = vmatprep.subr.bf16.mxu0 0
  %206 = vmatpush2.bf16.msra.mxu0 0
  %207 = vmatprep.mubr.bf16.mxu0 0
  %208 = vmatmul.mubr.bf16.gmra.mxu0 %v152
  %v209 = vpop.f32.mrf.mxu0
  %v210 = vadd.f32 %v125, %v209
  %v211 = vpop.f32.mrf.mxu0
  %v212 = vpop.f32.mrf.mxu0
  %v213 = vadd.f32 %v125, %v212
  %v214 = vpop.f32.mrf.mxu0
  %215 = vmatprep.mubr.bf16.mxu0 0
  %216 = vmatmul.mubr.bf16.gmra.mxu0 %v155
  %v217 = vpop.f32.mrf.mxu0
  %v218 = vadd.f32 %v125, %v217
  %v219 = vpop.f32.mrf.mxu0
  %v220 = vpop.f32.mrf.mxu0
  %v221 = vadd.f32 %v125, %v220
  %v222 = vpop.f32.mrf.mxu0
  %223 = vmatprep.mubr.bf16.mxu0 0
  %224 = vmatmul.mubr.bf16.gmra.mxu0 %v158
  %v225 = vpop.f32.mrf.mxu0
  %v226 = vadd.f32 %v125, %v225
  %v227 = vpop.f32.mrf.mxu0
  %v228 = vpop.f32.mrf.mxu0
  %v229 = vadd.f32 %v125, %v228
  %v230 = vpop.f32.mrf.mxu0
  %231 = vmatprep.mubr.bf16.mxu0 0
  %232 = vmatmul.mubr.bf16.gmra.mxu0 %v161
  %v233 = vpop.f32.mrf.mxu0
  %v234 = vadd.f32 %v125, %v233
  %v235 = vpop.f32.mrf.mxu0
  %v236 = vpop.f32.mrf.mxu0
  %v237 = vadd.f32 %v125, %v236
  %v238 = vpop.f32.mrf.mxu0
  %239 = vmatprep.mubr.bf16.mxu0 0
  %240 = vmatmul.mubr.bf16.gmra.mxu0 %v164
  %v241 = vpop.f32.mrf.mxu0
  %v242 = vadd.f32 %v125, %v241
  %v243 = vpop.f32.mrf.mxu0
  %v244 = vpop.f32.mrf.mxu0
  %v245 = vadd.f32 %v125, %v244
  %v246 = vpop.f32.mrf.mxu0
  %247 = vmatprep.mubr.bf16.mxu0 0
  %248 = vmatmul.mubr.bf16.gmra.mxu0 %v167
  %v249 = vpop.f32.mrf.mxu0
  %v250 = vadd.f32 %v125, %v249
  %v251 = vpop.f32.mrf.mxu0
  %v252 = vpop.f32.mrf.mxu0
  %v253 = vadd.f32 %v125, %v252
  %v254 = vpop.f32.mrf.mxu0
  %255 = vmatprep.mubr.bf16.mxu0 0
  %256 = vmatmul.mubr.bf16.gmra.mxu0 %v170
  %v257 = vpop.f32.mrf.mxu0
  %v258 = vadd.f32 %v125, %v257
  %v259 = vpop.f32.mrf.mxu0
  %v260 = vpop.f32.mrf.mxu0
  %v261 = vadd.f32 %v125, %v260
  %v262 = vpop.f32.mrf.mxu0
  %263 = vmatprep.mubr.bf16.mxu0 0
  %264 = vmatmul.mubr.bf16.gmra.mxu0 %v173
  %v265 = vpop.f32.mrf.mxu0
  %v266 = vadd.f32 %v125, %v265
  %v267 = vpop.f32.mrf.mxu0
  %v268 = vpop.f32.mrf.mxu0
  %v269 = vadd.f32 %v125, %v268
  %v270 = vpop.f32.mrf.mxu0
  %271 = vdwg.mxu0
  %v272 = vlaneseq
  %v273 = vshrl.u32 %v272, 7
  %v274 = vsub.s32 1, %v273
  %v275 = vrot.slane %v48, %v274
  %v284 = vunpack.c.l.b16 %v65
  %v285 = vunpack.c.l.b16 %v66
  %v286 = vunpack.c.l.b16 %v67
  %v287 = vunpack.c.l.b16 %v68
  %v288 = vunpack.c.l.b16 %v69
  %v289 = vunpack.c.l.b16 %v70
  %v290 = vunpack.c.l.b16 %v71
  %v291 = vunpack.c.l.b16 %v72
  %v292 = vpack.c.b16 %v285, %v284
  %v293 = vpack.c.b16 %v287, %v286
  %v294 = vpack.c.b16 %v289, %v288
  %v295 = vpack.c.b16 %v291, %v290
  %300 = vmatprep.subr.bf16.mxu0 0
  %301 = vmatpush1.bf16.msra.mxu0 0
  %302 = vmatprep.subr.bf16.mxu0 0
  %303 = vmatpush1.bf16.msra.mxu0 0
  %304 = vmatprep.subr.bf16.mxu0 0
  %305 = vmatpush1.bf16.msra.mxu0 0
  %306 = vmatprep.subr.bf16.mxu0 0
  %307 = vmatpush1.bf16.msra.mxu0 0
  %308 = vmatprep.subr.bf16.mxu0 0
  %309 = vmatpush1.bf16.msra.mxu0 %v295
  %310 = vmatprep.subr.bf16.mxu0 0
  %311 = vmatpush1.bf16.msra.mxu0 %v294
  %312 = vmatprep.subr.bf16.mxu0 0
  %313 = vmatpush1.bf16.msra.mxu0 %v293
  %314 = vmatprep.subr.bf16.mxu0 0
  %315 = vmatpush1.bf16.msra.mxu0 %v292
  %316 = vmatprep.subr.bf16.mxu0 0
  %317 = vmatpush2.bf16.msra.mxu0 0
  %318 = vmatprep.subr.bf16.mxu0 0
  %319 = vmatpush2.bf16.msra.mxu0 0
  %320 = vmatprep.subr.bf16.mxu0 0
  %321 = vmatpush2.bf16.msra.mxu0 0
  %322 = vmatprep.subr.bf16.mxu0 0
  %323 = vmatpush2.bf16.msra.mxu0 0
  %324 = vmatprep.subr.bf16.mxu0 0
  %325 = vmatpush2.bf16.msra.mxu0 0
  %326 = vmatprep.subr.bf16.mxu0 0
  %327 = vmatpush2.bf16.msra.mxu0 0
  %328 = vmatprep.subr.bf16.mxu0 0
  %329 = vmatpush2.bf16.msra.mxu0 0
  %330 = vmatprep.subr.bf16.mxu0 0
  %331 = vmatpush2.bf16.msra.mxu0 0
  %332 = vmatprep.mubr.bf16.mxu0 0
  %333 = vmatmul.mubr.bf16.gmra.mxu0 %v152
  %v334 = vpop.f32.mrf.mxu0
  %v335 = vadd.f32 %v275, %v334
  %v336 = vpop.f32.mrf.mxu0
  %v337 = vpop.f32.mrf.mxu0
  %v338 = vadd.f32 %v275, %v337
  %v339 = vpop.f32.mrf.mxu0
  %340 = vmatprep.mubr.bf16.mxu0 0
  %341 = vmatmul.mubr.bf16.gmra.mxu0 %v155
  %v342 = vpop.f32.mrf.mxu0
  %v343 = vadd.f32 %v275, %v342
  %v344 = vpop.f32.mrf.mxu0
  %v345 = vpop.f32.mrf.mxu0
  %v346 = vadd.f32 %v275, %v345
  %v347 = vpop.f32.mrf.mxu0
  %348 = vmatprep.mubr.bf16.mxu0 0
  %349 = vmatmul.mubr.bf16.gmra.mxu0 %v158
  %v350 = vpop.f32.mrf.mxu0
  %v351 = vadd.f32 %v275, %v350
  %v352 = vpop.f32.mrf.mxu0
  %v353 = vpop.f32.mrf.mxu0
  %v354 = vadd.f32 %v275, %v353
  %v355 = vpop.f32.mrf.mxu0
  %356 = vmatprep.mubr.bf16.mxu0 0
  %357 = vmatmul.mubr.bf16.gmra.mxu0 %v161
  %v358 = vpop.f32.mrf.mxu0
  %v359 = vadd.f32 %v275, %v358
  %v360 = vpop.f32.mrf.mxu0
  %v361 = vpop.f32.mrf.mxu0
  %v362 = vadd.f32 %v275, %v361
  %v363 = vpop.f32.mrf.mxu0
  %364 = vmatprep.mubr.bf16.mxu0 0
  %365 = vmatmul.mubr.bf16.gmra.mxu0 %v164
  %v366 = vpop.f32.mrf.mxu0
  %v367 = vadd.f32 %v275, %v366
  %v368 = vpop.f32.mrf.mxu0
  %v369 = vpop.f32.mrf.mxu0
  %v370 = vadd.f32 %v275, %v369
  %v371 = vpop.f32.mrf.mxu0
  %372 = vmatprep.mubr.bf16.mxu0 0
  %373 = vmatmul.mubr.bf16.gmra.mxu0 %v167
  %v374 = vpop.f32.mrf.mxu0
  %v375 = vadd.f32 %v275, %v374
  %v376 = vpop.f32.mrf.mxu0
  %v377 = vpop.f32.mrf.mxu0
  %v378 = vadd.f32 %v275, %v377
  %v379 = vpop.f32.mrf.mxu0
  %380 = vmatprep.mubr.bf16.mxu0 0
  %381 = vmatmul.mubr.bf16.gmra.mxu0 %v170
  %v382 = vpop.f32.mrf.mxu0
  %v383 = vadd.f32 %v275, %v382
  %v384 = vpop.f32.mrf.mxu0
  %v385 = vpop.f32.mrf.mxu0
  %v386 = vadd.f32 %v275, %v385
  %v387 = vpop.f32.mrf.mxu0
  %388 = vmatprep.mubr.bf16.mxu0 0
  %389 = vmatmul.mubr.bf16.gmra.mxu0 %v173
  %v390 = vpop.f32.mrf.mxu0
  %v391 = vadd.f32 %v275, %v390
  %v392 = vpop.f32.mrf.mxu0
  %v393 = vpop.f32.mrf.mxu0
  %v394 = vadd.f32 %v275, %v393
  %v395 = vpop.f32.mrf.mxu0
  %396 = vdwg.mxu0
  %v397 = vlaneseq
  %v398 = vshrl.u32 %v397, 7
  %v399 = vsub.s32 2, %v398
  %v400 = vrot.slane %v48, %v399
  %v409 = vunpack.c.l.b16 %v73
  %v410 = vunpack.c.l.b16 %v74
  %v411 = vunpack.c.l.b16 %v75
  %v412 = vunpack.c.l.b16 %v76
  %v413 = vunpack.c.l.b16 %v77
  %v414 = vunpack.c.l.b16 %v78
  %v415 = vunpack.c.l.b16 %v79
  %v416 = vunpack.c.l.b16 %v80
  %v417 = vpack.c.b16 %v410, %v409
  %v418 = vpack.c.b16 %v412, %v411
  %v419 = vpack.c.b16 %v414, %v413
  %v420 = vpack.c.b16 %v416, %v415
  %425 = vmatprep.subr.bf16.mxu0 0
  %426 = vmatpush1.bf16.msra.mxu0 0
  %427 = vmatprep.subr.bf16.mxu0 0
  %428 = vmatpush1.bf16.msra.mxu0 0
  %429 = vmatprep.subr.bf16.mxu0 0
  %430 = vmatpush1.bf16.msra.mxu0 0
  %431 = vmatprep.subr.bf16.mxu0 0
  %432 = vmatpush1.bf16.msra.mxu0 0
  %433 = vmatprep.subr.bf16.mxu0 0
  %434 = vmatpush1.bf16.msra.mxu0 %v420
  %435 = vmatprep.subr.bf16.mxu0 0
  %436 = vmatpush1.bf16.msra.mxu0 %v419
  %437 = vmatprep.subr.bf16.mxu0 0
  %438 = vmatpush1.bf16.msra.mxu0 %v418
  %439 = vmatprep.subr.bf16.mxu0 0
  %440 = vmatpush1.bf16.msra.mxu0 %v417
  %441 = vmatprep.subr.bf16.mxu0 0
  %442 = vmatpush2.bf16.msra.mxu0 0
  %443 = vmatprep.subr.bf16.mxu0 0
  %444 = vmatpush2.bf16.msra.mxu0 0
  %445 = vmatprep.subr.bf16.mxu0 0
  %446 = vmatpush2.bf16.msra.mxu0 0
  %447 = vmatprep.subr.bf16.mxu0 0
  %448 = vmatpush2.bf16.msra.mxu0 0
  %449 = vmatprep.subr.bf16.mxu0 0
  %450 = vmatpush2.bf16.msra.mxu0 0
  %451 = vmatprep.subr.bf16.mxu0 0
  %452 = vmatpush2.bf16.msra.mxu0 0
  %453 = vmatprep.subr.bf16.mxu0 0
  %454 = vmatpush2.bf16.msra.mxu0 0
  %455 = vmatprep.subr.bf16.mxu0 0
  %456 = vmatpush2.bf16.msra.mxu0 0
  %457 = vmatprep.mubr.bf16.mxu0 0
  %458 = vmatmul.mubr.bf16.gmra.mxu0 %v152
  %v459 = vpop.f32.mrf.mxu0
  %v460 = vadd.f32 %v400, %v459
  %v461 = vpop.f32.mrf.mxu0
  %v462 = vpop.f32.mrf.mxu0
  %v463 = vadd.f32 %v400, %v462
  %v464 = vpop.f32.mrf.mxu0
  %465 = vmatprep.mubr.bf16.mxu0 0
  %466 = vmatmul.mubr.bf16.gmra.mxu0 %v155
  %v467 = vpop.f32.mrf.mxu0
  %v468 = vadd.f32 %v400, %v467
  %v469 = vpop.f32.mrf.mxu0
  %v470 = vpop.f32.mrf.mxu0
  %v471 = vadd.f32 %v400, %v470
  %v472 = vpop.f32.mrf.mxu0
  %473 = vmatprep.mubr.bf16.mxu0 0
  %474 = vmatmul.mubr.bf16.gmra.mxu0 %v158
  %v475 = vpop.f32.mrf.mxu0
  %v476 = vadd.f32 %v400, %v475
  %v477 = vpop.f32.mrf.mxu0
  %v478 = vpop.f32.mrf.mxu0
  %v479 = vadd.f32 %v400, %v478
  %v480 = vpop.f32.mrf.mxu0
  %481 = vmatprep.mubr.bf16.mxu0 0
  %482 = vmatmul.mubr.bf16.gmra.mxu0 %v161
  %v483 = vpop.f32.mrf.mxu0
  %v484 = vadd.f32 %v400, %v483
  %v485 = vpop.f32.mrf.mxu0
  %v486 = vpop.f32.mrf.mxu0
  %v487 = vadd.f32 %v400, %v486
  %v488 = vpop.f32.mrf.mxu0
  %489 = vmatprep.mubr.bf16.mxu0 0
  %490 = vmatmul.mubr.bf16.gmra.mxu0 %v164
  %v491 = vpop.f32.mrf.mxu0
  %v492 = vadd.f32 %v400, %v491
  %v493 = vpop.f32.mrf.mxu0
  %v494 = vpop.f32.mrf.mxu0
  %v495 = vadd.f32 %v400, %v494
  %v496 = vpop.f32.mrf.mxu0
  %497 = vmatprep.mubr.bf16.mxu0 0
  %498 = vmatmul.mubr.bf16.gmra.mxu0 %v167
  %v499 = vpop.f32.mrf.mxu0
  %v500 = vadd.f32 %v400, %v499
  %v501 = vpop.f32.mrf.mxu0
  %v502 = vpop.f32.mrf.mxu0
  %v503 = vadd.f32 %v400, %v502
  %v504 = vpop.f32.mrf.mxu0
  %505 = vmatprep.mubr.bf16.mxu0 0
  %506 = vmatmul.mubr.bf16.gmra.mxu0 %v170
  %v507 = vpop.f32.mrf.mxu0
  %v508 = vadd.f32 %v400, %v507
  %v509 = vpop.f32.mrf.mxu0
  %v510 = vpop.f32.mrf.mxu0
  %v511 = vadd.f32 %v400, %v510
  %v512 = vpop.f32.mrf.mxu0
  %513 = vmatprep.mubr.bf16.mxu0 0
  %514 = vmatmul.mubr.bf16.gmra.mxu0 %v173
  %v515 = vpop.f32.mrf.mxu0
  %v516 = vadd.f32 %v400, %v515
  %v517 = vpop.f32.mrf.mxu0
  %v518 = vpop.f32.mrf.mxu0
  %v519 = vadd.f32 %v400, %v518
  %v520 = vpop.f32.mrf.mxu0
  %521 = vdwg.mxu0
  %v522 = vld [vmem:[%s1] sm:$0xff]
  %v523 = vld [vmem:[%s1 + $0x8] sm:$0xff]
  %v524 = vld [vmem:[%s1 + $0x10] sm:$0xff]
  %v525 = vld [vmem:[%s1 + $0x18] sm:$0xff]
  %v526 = vld [vmem:[%s1 + $0x20] sm:$0xff]
  %v527 = vld [vmem:[%s1 + $0x28] sm:$0xff]
  %v528 = vld [vmem:[%s1 + $0x30] sm:$0xff]
  %v529 = vld [vmem:[%s1 + $0x38] sm:$0xff]
  %s530 = scalar_lea.vmem %s1, 64
  %v531 = vld [vmem:[%s530] sm:$0xff]
  %v532 = vld [vmem:[%s530 + $0x8] sm:$0xff]
  %v533 = vld [vmem:[%s530 + $0x10] sm:$0xff]
  %v534 = vld [vmem:[%s530 + $0x18] sm:$0xff]
  %v535 = vld [vmem:[%s530 + $0x20] sm:$0xff]
  %v536 = vld [vmem:[%s530 + $0x28] sm:$0xff]
  %v537 = vld [vmem:[%s530 + $0x30] sm:$0xff]
  %v538 = vld [vmem:[%s530 + $0x38] sm:$0xff]
  %v539 = vmul.f32 %v335, %v54
  %v540 = vmul.f32 %v338, %v54
  %v541 = vmul.f32 %v343, %v54
  %v542 = vmul.f32 %v346, %v54
  %v543 = vmul.f32 %v351, %v54
  %v544 = vmul.f32 %v354, %v54
  %v545 = vmul.f32 %v359, %v54
  %v546 = vmul.f32 %v362, %v54
  %v547 = vmul.f32 %v367, %v54
  %v548 = vmul.f32 %v370, %v54
  %v549 = vmul.f32 %v375, %v54
  %v550 = vmul.f32 %v378, %v54
  %v551 = vmul.f32 %v383, %v54
  %v552 = vmul.f32 %v386, %v54
  %v553 = vmul.f32 %v391, %v54
  %v554 = vmul.f32 %v394, %v54
  %v555 = vpack.c.bf16 %v540, %v539
  %v556 = vpack.c.bf16 %v542, %v541
  %v557 = vpack.c.bf16 %v544, %v543
  %v558 = vpack.c.bf16 %v546, %v545
  %v559 = vpack.c.bf16 %v548, %v547
  %v560 = vpack.c.bf16 %v550, %v549
  %v561 = vpack.c.bf16 %v552, %v551
  %v562 = vpack.c.bf16 %v554, %v553
  %v563 = vmul.f32 %v335, %v55
  %v564 = vmul.f32 %v338, %v55
  %v565 = vmul.f32 %v343, %v55
  %v566 = vmul.f32 %v346, %v55
  %v567 = vmul.f32 %v351, %v55
  %v568 = vmul.f32 %v354, %v55
  %v569 = vmul.f32 %v359, %v55
  %v570 = vmul.f32 %v362, %v55
  %v571 = vmul.f32 %v367, %v55
  %v572 = vmul.f32 %v370, %v55
  %v573 = vmul.f32 %v375, %v55
  %v574 = vmul.f32 %v378, %v55
  %v575 = vmul.f32 %v383, %v55
  %v576 = vmul.f32 %v386, %v55
  %v577 = vmul.f32 %v391, %v55
  %v578 = vmul.f32 %v394, %v55
  %v579 = vpack.c.bf16 %v564, %v563
  %v580 = vpack.c.bf16 %v566, %v565
  %v581 = vpack.c.bf16 %v568, %v567
  %v582 = vpack.c.bf16 %v570, %v569
  %v583 = vpack.c.bf16 %v572, %v571
  %v584 = vpack.c.bf16 %v574, %v573
  %v585 = vpack.c.bf16 %v576, %v575
  %v586 = vpack.c.bf16 %v578, %v577
  %v587 = vmul.f32 %v460, %v54
  %v588 = vmul.f32 %v463, %v54
  %v589 = vmul.f32 %v468, %v54
  %v590 = vmul.f32 %v471, %v54
  %v591 = vmul.f32 %v476, %v54
  %v592 = vmul.f32 %v479, %v54
  %v593 = vmul.f32 %v484, %v54
  %v594 = vmul.f32 %v487, %v54
  %v595 = vmul.f32 %v492, %v54
  %v596 = vmul.f32 %v495, %v54
  %v597 = vmul.f32 %v500, %v54
  %v598 = vmul.f32 %v503, %v54
  %v599 = vmul.f32 %v508, %v54
  %v600 = vmul.f32 %v511, %v54
  %v601 = vmul.f32 %v516, %v54
  %v602 = vmul.f32 %v519, %v54
  %v603 = vpack.c.bf16 %v588, %v587
  %v604 = vpack.c.bf16 %v590, %v589
  %v605 = vpack.c.bf16 %v592, %v591
  %v606 = vpack.c.bf16 %v594, %v593
  %v607 = vpack.c.bf16 %v596, %v595
  %v608 = vpack.c.bf16 %v598, %v597
  %v609 = vpack.c.bf16 %v600, %v599
  %v610 = vpack.c.bf16 %v602, %v601
  %v611 = vmul.f32 %v460, %v55
  %v612 = vmul.f32 %v463, %v55
  %v613 = vmul.f32 %v468, %v55
  %v614 = vmul.f32 %v471, %v55
  %v615 = vmul.f32 %v476, %v55
  %v616 = vmul.f32 %v479, %v55
  %v617 = vmul.f32 %v484, %v55
  %v618 = vmul.f32 %v487, %v55
  %v619 = vmul.f32 %v492, %v55
  %v620 = vmul.f32 %v495, %v55
  %v621 = vmul.f32 %v500, %v55
  %v622 = vmul.f32 %v503, %v55
  %v623 = vmul.f32 %v508, %v55
  %v624 = vmul.f32 %v511, %v55
  %v625 = vmul.f32 %v516, %v55
  %v626 = vmul.f32 %v519, %v55
  %v627 = vpack.c.bf16 %v612, %v611
  %v628 = vpack.c.bf16 %v614, %v613
  %v629 = vpack.c.bf16 %v616, %v615
  %v630 = vpack.c.bf16 %v618, %v617
  %v631 = vpack.c.bf16 %v620, %v619
  %v632 = vpack.c.bf16 %v622, %v621
  %v633 = vpack.c.bf16 %v624, %v623
  %v634 = vpack.c.bf16 %v626, %v625
  %v635 = vmul.f32 %v210, 0.17677669
  %v636 = vmul.f32 %v213, 0.17677669
  %v637 = vmul.f32 %v218, 0.17677669
  %v638 = vmul.f32 %v221, 0.17677669
  %v639 = vmul.f32 %v226, 0.17677669
  %v640 = vmul.f32 %v229, 0.17677669
  %v641 = vmul.f32 %v234, 0.17677669
  %v642 = vmul.f32 %v237, 0.17677669
  %v643 = vmul.f32 %v242, 0.17677669
  %v644 = vmul.f32 %v245, 0.17677669
  %v645 = vmul.f32 %v250, 0.17677669
  %v646 = vmul.f32 %v253, 0.17677669
  %v647 = vmul.f32 %v258, 0.17677669
  %v648 = vmul.f32 %v261, 0.17677669
  %v649 = vmul.f32 %v266, 0.17677669
  %v650 = vmul.f32 %v269, 0.17677669
  %v651 = vpack.c.bf16 %v636, %v635
  %v652 = vpack.c.bf16 %v638, %v637
  %v653 = vpack.c.bf16 %v640, %v639
  %v654 = vpack.c.bf16 %v642, %v641
  %v655 = vpack.c.bf16 %v644, %v643
  %v656 = vpack.c.bf16 %v646, %v645
  %v657 = vpack.c.bf16 %v648, %v647
  %v658 = vpack.c.bf16 %v650, %v649
  %v660 = vsel %vm150, %v651, 0
  %v663 = vsel %vm150, %v652, 0
  %v666 = vsel %vm150, %v653, 0
  %v669 = vsel %vm150, %v654, 0
  %v672 = vsel %vm150, %v555, 0
  %v675 = vsel %vm150, %v556, 0
  %v678 = vsel %vm150, %v557, 0
  %v681 = vsel %vm150, %v558, 0
  %v684 = vsel %vm150, %v579, 0
  %v687 = vsel %vm150, %v580, 0
  %v690 = vsel %vm150, %v581, 0
  %v693 = vsel %vm150, %v582, 0
  %695 = vmatprep.subr.bf16.mxu0 0
  %696 = vmatpush1.bf16.xpose.msra.mxu0 %v693
  %697 = vmatprep.subr.bf16.mxu0 0
  %698 = vmatpush1.bf16.xpose.msra.mxu0 %v690
  %699 = vmatprep.subr.bf16.mxu0 0
  %700 = vmatpush1.bf16.xpose.msra.mxu0 %v687
  %701 = vmatprep.subr.bf16.mxu0 0
  %702 = vmatpush1.bf16.xpose.msra.mxu0 %v684
  %703 = vmatprep.subr.bf16.mxu0 0
  %704 = vmatpush1.bf16.xpose.msra.mxu0 %v681
  %705 = vmatprep.subr.bf16.mxu0 0
  %706 = vmatpush1.bf16.xpose.msra.mxu0 %v678
  %707 = vmatprep.subr.bf16.mxu0 0
  %708 = vmatpush1.bf16.xpose.msra.mxu0 %v675
  %709 = vmatprep.subr.bf16.mxu0 0
  %710 = vmatpush1.bf16.xpose.msra.mxu0 %v672
  %711 = vmatprep.subr.bf16.mxu0 0
  %712 = vmatpush2.bf16.xpose.msra.mxu0 0
  %713 = vmatprep.subr.bf16.mxu0 0
  %714 = vmatpush2.bf16.xpose.msra.mxu0 0
  %715 = vmatprep.subr.bf16.mxu0 0
  %716 = vmatpush2.bf16.xpose.msra.mxu0 0
  %717 = vmatprep.subr.bf16.mxu0 0
  %718 = vmatpush2.bf16.xpose.msra.mxu0 0
  %719 = vmatprep.subr.bf16.mxu0 0
  %720 = vmatpush2.bf16.xpose.msra.mxu0 0
  %721 = vmatprep.subr.bf16.mxu0 0
  %722 = vmatpush2.bf16.xpose.msra.mxu0 0
  %723 = vmatprep.subr.bf16.mxu0 0
  %724 = vmatpush2.bf16.xpose.msra.mxu0 0
  %725 = vmatprep.subr.bf16.mxu0 0
  %726 = vmatpush2.bf16.xpose.msra.mxu0 0
  %727 = vmatprep.mubr.bf16.mxu0 0
  %728 = vmatmul.mubr.bf16.gmra.mxu0 %v660
  %v729 = vpop.f32.mrf.mxu0
  %v730 = vadd.f32 %v522, %v729
  %v731 = vpop.f32.mrf.mxu0
  %v732 = vpop.f32.mrf.mxu0
  %v733 = vadd.f32 %v523, %v732
  %v734 = vpop.f32.mrf.mxu0
  %735 = vmatprep.mubr.bf16.mxu0 0
  %736 = vmatmul.mubr.bf16.gmra.mxu0 %v663
  %v737 = vpop.f32.mrf.mxu0
  %v738 = vadd.f32 %v524, %v737
  %v739 = vpop.f32.mrf.mxu0
  %v740 = vpop.f32.mrf.mxu0
  %v741 = vadd.f32 %v525, %v740
  %v742 = vpop.f32.mrf.mxu0
  %743 = vmatprep.mubr.bf16.mxu0 0
  %744 = vmatmul.mubr.bf16.gmra.mxu0 %v666
  %v745 = vpop.f32.mrf.mxu0
  %v746 = vadd.f32 %v526, %v745
  %v747 = vpop.f32.mrf.mxu0
  %v748 = vpop.f32.mrf.mxu0
  %v749 = vadd.f32 %v527, %v748
  %v750 = vpop.f32.mrf.mxu0
  %751 = vmatprep.mubr.bf16.mxu0 0
  %752 = vmatmul.mubr.bf16.gmra.mxu0 %v669
  %v753 = vpop.f32.mrf.mxu0
  %v754 = vadd.f32 %v528, %v753
  %v755 = vpop.f32.mrf.mxu0
  %v756 = vpop.f32.mrf.mxu0
  %v757 = vadd.f32 %v529, %v756
  %v758 = vpop.f32.mrf.mxu0
  %759 = vdwg.mxu0
  %v760 = vsel %vm56, 1, 0
  %vm761 = vcmp.eq.s32.totalorder %v760, 1
  %v762 = vsel %vm761, %v730, -1e+30
  %v763 = vsel %vm761, %v733, -1e+30
  %v764 = vsel %vm761, %v738, -1e+30
  %v765 = vsel %vm761, %v741, -1e+30
  %v766 = vsel %vm761, %v746, -1e+30
  %v767 = vsel %vm761, %v749, -1e+30
  %v768 = vsel %vm761, %v754, -1e+30
  %v769 = vsel %vm761, %v757, -1e+30
  %770 = vmax.xlane.f32.xlu0 %v762
  %v771 = vpop.xlane.xlu0 %770
  %772 = vmax.xlane.f32.xlu0 %v763
  %v773 = vpop.xlane.xlu0 %772
  %774 = vmax.xlane.f32.xlu0 %v764
  %v775 = vpop.xlane.xlu0 %774
  %776 = vmax.xlane.f32.xlu0 %v765
  %v777 = vpop.xlane.xlu0 %776
  %778 = vmax.xlane.f32.xlu0 %v766
  %v779 = vpop.xlane.xlu0 %778
  %780 = vmax.xlane.f32.xlu0 %v767
  %v781 = vpop.xlane.xlu0 %780
  %782 = vmax.xlane.f32.xlu0 %v768
  %v783 = vpop.xlane.xlu0 %782
  %784 = vmax.xlane.f32.xlu0 %v769
  %v785 = vpop.xlane.xlu0 %784
  %v786 = vsel %vm761, -1e+30, %v730
  %v787 = vsel %vm761, -1e+30, %v733
  %v788 = vsel %vm761, -1e+30, %v738
  %v789 = vsel %vm761, -1e+30, %v741
  %v790 = vsel %vm761, -1e+30, %v746
  %v791 = vsel %vm761, -1e+30, %v749
  %v792 = vsel %vm761, -1e+30, %v754
  %v793 = vsel %vm761, -1e+30, %v757
  %794 = vmax.xlane.f32.xlu0 %v786
  %v795 = vpop.xlane.xlu0 %794
  %796 = vmax.xlane.f32.xlu0 %v787
  %v797 = vpop.xlane.xlu0 %796
  %798 = vmax.xlane.f32.xlu0 %v788
  %v799 = vpop.xlane.xlu0 %798
  %800 = vmax.xlane.f32.xlu0 %v789
  %v801 = vpop.xlane.xlu0 %800
  %802 = vmax.xlane.f32.xlu0 %v790
  %v803 = vpop.xlane.xlu0 %802
  %804 = vmax.xlane.f32.xlu0 %v791
  %v805 = vpop.xlane.xlu0 %804
  %806 = vmax.xlane.f32.xlu0 %v792
  %v807 = vpop.xlane.xlu0 %806
  %808 = vmax.xlane.f32.xlu0 %v793
  %v809 = vpop.xlane.xlu0 %808
  %v810 = vsel %vm761, %v771, %v795
  %v811 = vsel %vm761, %v773, %v797
  %v812 = vsel %vm761, %v775, %v799
  %v813 = vsel %vm761, %v777, %v801
  %v814 = vsel %vm761, %v779, %v803
  %v815 = vsel %vm761, %v781, %v805
  %v816 = vsel %vm761, %v783, %v807
  %v817 = vsel %vm761, %v785, %v809
  %v818 = vsub.f32 %v730, %v810
  %v819 = vsub.f32 %v733, %v811
  %v820 = vsub.f32 %v738, %v812
  %v821 = vsub.f32 %v741, %v813
  %v822 = vsub.f32 %v746, %v814
  %v823 = vsub.f32 %v749, %v815
  %v824 = vsub.f32 %v754, %v816
  %v825 = vsub.f32 %v757, %v817
  %v826 = vmul.f32 %v818, 1.442695
  %v827 = vpow.pop %v826
  %v828 = vmul.f32 %v819, 1.442695
  %v829 = vpow.pop %v828
  %v830 = vmul.f32 %v820, 1.442695
  %v831 = vpow.pop %v830
  %v832 = vmul.f32 %v821, 1.442695
  %v833 = vpow.pop %v832
  %v834 = vmul.f32 %v822, 1.442695
  %v835 = vpow.pop %v834
  %v836 = vmul.f32 %v823, 1.442695
  %v837 = vpow.pop %v836
  %v838 = vmul.f32 %v824, 1.442695
  %v839 = vpow.pop %v838
  %v840 = vmul.f32 %v825, 1.442695
  %v841 = vpow.pop %v840
  %v842 = vsel %vm761, %v827, 0.0
  %v843 = vsel %vm761, %v829, 0.0
  %v844 = vsel %vm761, %v831, 0.0
  %v845 = vsel %vm761, %v833, 0.0
  %v846 = vsel %vm761, %v835, 0.0
  %v847 = vsel %vm761, %v837, 0.0
  %v848 = vsel %vm761, %v839, 0.0
  %v849 = vsel %vm761, %v841, 0.0
  %850 = vadd.xlane.f32.xlu0 %v842
  %v851 = vpop.xlane.xlu0 %850
  %852 = vadd.xlane.f32.xlu0 %v843
  %v853 = vpop.xlane.xlu0 %852
  %854 = vadd.xlane.f32.xlu0 %v844
  %v855 = vpop.xlane.xlu0 %854
  %856 = vadd.xlane.f32.xlu0 %v845
  %v857 = vpop.xlane.xlu0 %856
  %858 = vadd.xlane.f32.xlu0 %v846
  %v859 = vpop.xlane.xlu0 %858
  %860 = vadd.xlane.f32.xlu0 %v847
  %v861 = vpop.xlane.xlu0 %860
  %862 = vadd.xlane.f32.xlu0 %v848
  %v863 = vpop.xlane.xlu0 %862
  %864 = vadd.xlane.f32.xlu0 %v849
  %v865 = vpop.xlane.xlu0 %864
  %v866 = vsel %vm761, 0.0, %v827
  %v867 = vsel %vm761, 0.0, %v829
  %v868 = vsel %vm761, 0.0, %v831
  %v869 = vsel %vm761, 0.0, %v833
  %v870 = vsel %vm761, 0.0, %v835
  %v871 = vsel %vm761, 0.0, %v837
  %v872 = vsel %vm761, 0.0, %v839
  %v873 = vsel %vm761, 0.0, %v841
  %874 = vadd.xlane.f32.xlu0 %v866
  %v875 = vpop.xlane.xlu0 %874
  %876 = vadd.xlane.f32.xlu0 %v867
  %v877 = vpop.xlane.xlu0 %876
  %878 = vadd.xlane.f32.xlu0 %v868
  %v879 = vpop.xlane.xlu0 %878
  %880 = vadd.xlane.f32.xlu0 %v869
  %v881 = vpop.xlane.xlu0 %880
  %882 = vadd.xlane.f32.xlu0 %v870
  %v883 = vpop.xlane.xlu0 %882
  %884 = vadd.xlane.f32.xlu0 %v871
  %v885 = vpop.xlane.xlu0 %884
  %886 = vadd.xlane.f32.xlu0 %v872
  %v887 = vpop.xlane.xlu0 %886
  %888 = vadd.xlane.f32.xlu0 %v873
  %v889 = vpop.xlane.xlu0 %888
  %v890 = vrcp.pop %v851
  %v891 = vrcp.pop %v853
  %v892 = vrcp.pop %v855
  %v893 = vrcp.pop %v857
  %v894 = vrcp.pop %v859
  %v895 = vrcp.pop %v861
  %v896 = vrcp.pop %v863
  %v897 = vrcp.pop %v865
  %v898 = vrcp.pop %v875
  %v899 = vrcp.pop %v877
  %v900 = vrcp.pop %v879
  %v901 = vrcp.pop %v881
  %v902 = vrcp.pop %v883
  %v903 = vrcp.pop %v885
  %v904 = vrcp.pop %v887
  %v905 = vrcp.pop %v889
  %v906 = vsel %vm761, %v890, %v898
  %v907 = vsel %vm761, %v891, %v899
  %v908 = vsel %vm761, %v892, %v900
  %v909 = vsel %vm761, %v893, %v901
  %v910 = vsel %vm761, %v894, %v902
  %v911 = vsel %vm761, %v895, %v903
  %v912 = vsel %vm761, %v896, %v904
  %v913 = vsel %vm761, %v897, %v905
  %v914 = vmul.f32 %v827, %v906
  %v915 = vmul.f32 %v829, %v907
  %v916 = vmul.f32 %v831, %v908
  %v917 = vmul.f32 %v833, %v909
  %v918 = vmul.f32 %v835, %v910
  %v919 = vmul.f32 %v837, %v911
  %v920 = vmul.f32 %v839, %v912
  %v921 = vmul.f32 %v841, %v913
  %v922 = vpack.c.bf16 %v915, %v914
  %v923 = vpack.c.bf16 %v917, %v916
  %v924 = vpack.c.bf16 %v919, %v918
  %v925 = vpack.c.bf16 %v921, %v920
  %926 = vmatprep.subr.bf16.mxu0 0
  %927 = vmatpush1.bf16.msra.mxu0 %v630
  %928 = vmatprep.subr.bf16.mxu0 0
  %929 = vmatpush1.bf16.msra.mxu0 %v629
  %930 = vmatprep.subr.bf16.mxu0 0
  %931 = vmatpush1.bf16.msra.mxu0 %v628
  %932 = vmatprep.subr.bf16.mxu0 0
  %933 = vmatpush1.bf16.msra.mxu0 %v627
  %934 = vmatprep.subr.bf16.mxu0 0
  %935 = vmatpush1.bf16.msra.mxu0 %v606
  %936 = vmatprep.subr.bf16.mxu0 0
  %937 = vmatpush1.bf16.msra.mxu0 %v605
  %938 = vmatprep.subr.bf16.mxu0 0
  %939 = vmatpush1.bf16.msra.mxu0 %v604
  %940 = vmatprep.subr.bf16.mxu0 0
  %941 = vmatpush1.bf16.msra.mxu0 %v603
  %942 = vmatprep.subr.bf16.mxu0 0
  %943 = vmatpush2.bf16.msra.mxu0 0
  %944 = vmatprep.subr.bf16.mxu0 0
  %945 = vmatpush2.bf16.msra.mxu0 0
  %946 = vmatprep.subr.bf16.mxu0 0
  %947 = vmatpush2.bf16.msra.mxu0 0
  %948 = vmatprep.subr.bf16.mxu0 0
  %949 = vmatpush2.bf16.msra.mxu0 0
  %950 = vmatprep.subr.bf16.mxu0 0
  %951 = vmatpush2.bf16.msra.mxu0 0
  %952 = vmatprep.subr.bf16.mxu0 0
  %953 = vmatpush2.bf16.msra.mxu0 0
  %954 = vmatprep.subr.bf16.mxu0 0
  %955 = vmatpush2.bf16.msra.mxu0 0
  %956 = vmatprep.subr.bf16.mxu0 0
  %957 = vmatpush2.bf16.msra.mxu0 0
  %958 = vmatprep.mubr.bf16.mxu0 0
  %959 = vmatmul.mubr.bf16.gmra.mxu0 %v922
  %v960 = vpop.f32.mrf.mxu0
  %v961 = vadd.f32 0.0, %v960
  %v962 = vpop.f32.mrf.mxu0
  %v963 = vpop.f32.mrf.mxu0
  %v964 = vadd.f32 0.0, %v963
  %v965 = vpop.f32.mrf.mxu0
  %966 = vmatprep.mubr.bf16.mxu0 0
  %967 = vmatmul.mubr.bf16.gmra.mxu0 %v923
  %v968 = vpop.f32.mrf.mxu0
  %v969 = vadd.f32 0.0, %v968
  %v970 = vpop.f32.mrf.mxu0
  %v971 = vpop.f32.mrf.mxu0
  %v972 = vadd.f32 0.0, %v971
  %v973 = vpop.f32.mrf.mxu0
  %974 = vmatprep.mubr.bf16.mxu0 0
  %975 = vmatmul.mubr.bf16.gmra.mxu0 %v924
  %v976 = vpop.f32.mrf.mxu0
  %v977 = vadd.f32 0.0, %v976
  %v978 = vpop.f32.mrf.mxu0
  %v979 = vpop.f32.mrf.mxu0
  %v980 = vadd.f32 0.0, %v979
  %v981 = vpop.f32.mrf.mxu0
  %982 = vmatprep.mubr.bf16.mxu0 0
  %983 = vmatmul.mubr.bf16.gmra.mxu0 %v925
  %v984 = vpop.f32.mrf.mxu0
  %v985 = vadd.f32 0.0, %v984
  %v986 = vpop.f32.mrf.mxu0
  %v987 = vpop.f32.mrf.mxu0
  %v988 = vadd.f32 0.0, %v987
  %v989 = vpop.f32.mrf.mxu0
  %990 = vdwg.mxu0
  %v992 = vsel %vm150, %v655, 0
  %v995 = vsel %vm150, %v656, 0
  %v998 = vsel %vm150, %v657, 0
  %v1001 = vsel %vm150, %v658, 0
  %v1004 = vsel %vm150, %v559, 0
  %v1007 = vsel %vm150, %v560, 0
  %v1010 = vsel %vm150, %v561, 0
  %v1013 = vsel %vm150, %v562, 0
  %v1016 = vsel %vm150, %v583, 0
  %v1019 = vsel %vm150, %v584, 0
  %v1022 = vsel %vm150, %v585, 0
  %v1025 = vsel %vm150, %v586, 0
  %1027 = vmatprep.subr.bf16.mxu0 0
  %1028 = vmatpush1.bf16.xpose.msra.mxu0 %v1025
  %1029 = vmatprep.subr.bf16.mxu0 0
  %1030 = vmatpush1.bf16.xpose.msra.mxu0 %v1022
  %1031 = vmatprep.subr.bf16.mxu0 0
  %1032 = vmatpush1.bf16.xpose.msra.mxu0 %v1019
  %1033 = vmatprep.subr.bf16.mxu0 0
  %1034 = vmatpush1.bf16.xpose.msra.mxu0 %v1016
  %1035 = vmatprep.subr.bf16.mxu0 0
  %1036 = vmatpush1.bf16.xpose.msra.mxu0 %v1013
  %1037 = vmatprep.subr.bf16.mxu0 0
  %1038 = vmatpush1.bf16.xpose.msra.mxu0 %v1010
  %1039 = vmatprep.subr.bf16.mxu0 0
  %1040 = vmatpush1.bf16.xpose.msra.mxu0 %v1007
  %1041 = vmatprep.subr.bf16.mxu0 0
  %1042 = vmatpush1.bf16.xpose.msra.mxu0 %v1004
  %1043 = vmatprep.subr.bf16.mxu0 0
  %1044 = vmatpush2.bf16.xpose.msra.mxu0 0
  %1045 = vmatprep.subr.bf16.mxu0 0
  %1046 = vmatpush2.bf16.xpose.msra.mxu0 0
  %1047 = vmatprep.subr.bf16.mxu0 0
  %1048 = vmatpush2.bf16.xpose.msra.mxu0 0
  %1049 = vmatprep.subr.bf16.mxu0 0
  %1050 = vmatpush2.bf16.xpose.msra.mxu0 0
  %1051 = vmatprep.subr.bf16.mxu0 0
  %1052 = vmatpush2.bf16.xpose.msra.mxu0 0
  %1053 = vmatprep.subr.bf16.mxu0 0
  %1054 = vmatpush2.bf16.xpose.msra.mxu0 0
  %1055 = vmatprep.subr.bf16.mxu0 0
  %1056 = vmatpush2.bf16.xpose.msra.mxu0 0
  %1057 = vmatprep.subr.bf16.mxu0 0
  %1058 = vmatpush2.bf16.xpose.msra.mxu0 0
  %1059 = vmatprep.mubr.bf16.mxu0 0
  %1060 = vmatmul.mubr.bf16.gmra.mxu0 %v992
  %v1061 = vpop.f32.mrf.mxu0
  %v1062 = vadd.f32 %v531, %v1061
  %v1063 = vpop.f32.mrf.mxu0
  %v1064 = vpop.f32.mrf.mxu0
  %v1065 = vadd.f32 %v532, %v1064
  %v1066 = vpop.f32.mrf.mxu0
  %1067 = vmatprep.mubr.bf16.mxu0 0
  %1068 = vmatmul.mubr.bf16.gmra.mxu0 %v995
  %v1069 = vpop.f32.mrf.mxu0
  %v1070 = vadd.f32 %v533, %v1069
  %v1071 = vpop.f32.mrf.mxu0
  %v1072 = vpop.f32.mrf.mxu0
  %v1073 = vadd.f32 %v534, %v1072
  %v1074 = vpop.f32.mrf.mxu0
  %1075 = vmatprep.mubr.bf16.mxu0 0
  %1076 = vmatmul.mubr.bf16.gmra.mxu0 %v998
  %v1077 = vpop.f32.mrf.mxu0
  %v1078 = vadd.f32 %v535, %v1077
  %v1079 = vpop.f32.mrf.mxu0
  %v1080 = vpop.f32.mrf.mxu0
  %v1081 = vadd.f32 %v536, %v1080
  %v1082 = vpop.f32.mrf.mxu0
  %1083 = vmatprep.mubr.bf16.mxu0 0
  %1084 = vmatmul.mubr.bf16.gmra.mxu0 %v1001
  %v1085 = vpop.f32.mrf.mxu0
  %v1086 = vadd.f32 %v537, %v1085
  %v1087 = vpop.f32.mrf.mxu0
  %v1088 = vpop.f32.mrf.mxu0
  %v1089 = vadd.f32 %v538, %v1088
  %v1090 = vpop.f32.mrf.mxu0
  %1091 = vdwg.mxu0
  %v1092 = vsel %vm761, %v1062, -1e+30
  %v1093 = vsel %vm761, %v1065, -1e+30
  %v1094 = vsel %vm761, %v1070, -1e+30
  %v1095 = vsel %vm761, %v1073, -1e+30
  %v1096 = vsel %vm761, %v1078, -1e+30
  %v1097 = vsel %vm761, %v1081, -1e+30
  %v1098 = vsel %vm761, %v1086, -1e+30
  %v1099 = vsel %vm761, %v1089, -1e+30
  %1100 = vmax.xlane.f32.xlu0 %v1092
  %v1101 = vpop.xlane.xlu0 %1100
  %1102 = vmax.xlane.f32.xlu0 %v1093
  %v1103 = vpop.xlane.xlu0 %1102
  %1104 = vmax.xlane.f32.xlu0 %v1094
  %v1105 = vpop.xlane.xlu0 %1104
  %1106 = vmax.xlane.f32.xlu0 %v1095
  %v1107 = vpop.xlane.xlu0 %1106
  %1108 = vmax.xlane.f32.xlu0 %v1096
  %v1109 = vpop.xlane.xlu0 %1108
  %1110 = vmax.xlane.f32.xlu0 %v1097
  %v1111 = vpop.xlane.xlu0 %1110
  %1112 = vmax.xlane.f32.xlu0 %v1098
  %v1113 = vpop.xlane.xlu0 %1112
  %1114 = vmax.xlane.f32.xlu0 %v1099
  %v1115 = vpop.xlane.xlu0 %1114
  %v1116 = vsel %vm761, -1e+30, %v1062
  %v1117 = vsel %vm761, -1e+30, %v1065
  %v1118 = vsel %vm761, -1e+30, %v1070
  %v1119 = vsel %vm761, -1e+30, %v1073
  %v1120 = vsel %vm761, -1e+30, %v1078
  %v1121 = vsel %vm761, -1e+30, %v1081
  %v1122 = vsel %vm761, -1e+30, %v1086
  %v1123 = vsel %vm761, -1e+30, %v1089
  %1124 = vmax.xlane.f32.xlu0 %v1116
  %v1125 = vpop.xlane.xlu0 %1124
  %1126 = vmax.xlane.f32.xlu0 %v1117
  %v1127 = vpop.xlane.xlu0 %1126
  %1128 = vmax.xlane.f32.xlu0 %v1118
  %v1129 = vpop.xlane.xlu0 %1128
  %1130 = vmax.xlane.f32.xlu0 %v1119
  %v1131 = vpop.xlane.xlu0 %1130
  %1132 = vmax.xlane.f32.xlu0 %v1120
  %v1133 = vpop.xlane.xlu0 %1132
  %1134 = vmax.xlane.f32.xlu0 %v1121
  %v1135 = vpop.xlane.xlu0 %1134
  %1136 = vmax.xlane.f32.xlu0 %v1122
  %v1137 = vpop.xlane.xlu0 %1136
  %1138 = vmax.xlane.f32.xlu0 %v1123
  %v1139 = vpop.xlane.xlu0 %1138
  %v1140 = vsel %vm761, %v1101, %v1125
  %v1141 = vsel %vm761, %v1103, %v1127
  %v1142 = vsel %vm761, %v1105, %v1129
  %v1143 = vsel %vm761, %v1107, %v1131
  %v1144 = vsel %vm761, %v1109, %v1133
  %v1145 = vsel %vm761, %v1111, %v1135
  %v1146 = vsel %vm761, %v1113, %v1137
  %v1147 = vsel %vm761, %v1115, %v1139
  %v1148 = vsub.f32 %v1062, %v1140
  %v1149 = vsub.f32 %v1065, %v1141
  %v1150 = vsub.f32 %v1070, %v1142
  %v1151 = vsub.f32 %v1073, %v1143
  %v1152 = vsub.f32 %v1078, %v1144
  %v1153 = vsub.f32 %v1081, %v1145
  %v1154 = vsub.f32 %v1086, %v1146
  %v1155 = vsub.f32 %v1089, %v1147
  %v1156 = vmul.f32 %v1148, 1.442695
  %v1157 = vpow.pop %v1156
  %v1158 = vmul.f32 %v1149, 1.442695
  %v1159 = vpow.pop %v1158
  %v1160 = vmul.f32 %v1150, 1.442695
  %v1161 = vpow.pop %v1160
  %v1162 = vmul.f32 %v1151, 1.442695
  %v1163 = vpow.pop %v1162
  %v1164 = vmul.f32 %v1152, 1.442695
  %v1165 = vpow.pop %v1164
  %v1166 = vmul.f32 %v1153, 1.442695
  %v1167 = vpow.pop %v1166
  %v1168 = vmul.f32 %v1154, 1.442695
  %v1169 = vpow.pop %v1168
  %v1170 = vmul.f32 %v1155, 1.442695
  %v1171 = vpow.pop %v1170
  %v1172 = vsel %vm761, %v1157, 0.0
  %v1173 = vsel %vm761, %v1159, 0.0
  %v1174 = vsel %vm761, %v1161, 0.0
  %v1175 = vsel %vm761, %v1163, 0.0
  %v1176 = vsel %vm761, %v1165, 0.0
  %v1177 = vsel %vm761, %v1167, 0.0
  %v1178 = vsel %vm761, %v1169, 0.0
  %v1179 = vsel %vm761, %v1171, 0.0
  %1180 = vadd.xlane.f32.xlu0 %v1172
  %v1181 = vpop.xlane.xlu0 %1180
  %1182 = vadd.xlane.f32.xlu0 %v1173
  %v1183 = vpop.xlane.xlu0 %1182
  %1184 = vadd.xlane.f32.xlu0 %v1174
  %v1185 = vpop.xlane.xlu0 %1184
  %1186 = vadd.xlane.f32.xlu0 %v1175
  %v1187 = vpop.xlane.xlu0 %1186
  %1188 = vadd.xlane.f32.xlu0 %v1176
  %v1189 = vpop.xlane.xlu0 %1188
  %1190 = vadd.xlane.f32.xlu0 %v1177
  %v1191 = vpop.xlane.xlu0 %1190
  %1192 = vadd.xlane.f32.xlu0 %v1178
  %v1193 = vpop.xlane.xlu0 %1192
  %1194 = vadd.xlane.f32.xlu0 %v1179
  %v1195 = vpop.xlane.xlu0 %1194
  %v1196 = vsel %vm761, 0.0, %v1157
  %v1197 = vsel %vm761, 0.0, %v1159
  %v1198 = vsel %vm761, 0.0, %v1161
  %v1199 = vsel %vm761, 0.0, %v1163
  %v1200 = vsel %vm761, 0.0, %v1165
  %v1201 = vsel %vm761, 0.0, %v1167
  %v1202 = vsel %vm761, 0.0, %v1169
  %v1203 = vsel %vm761, 0.0, %v1171
  %1204 = vadd.xlane.f32.xlu0 %v1196
  %v1205 = vpop.xlane.xlu0 %1204
  %1206 = vadd.xlane.f32.xlu0 %v1197
  %v1207 = vpop.xlane.xlu0 %1206
  %1208 = vadd.xlane.f32.xlu0 %v1198
  %v1209 = vpop.xlane.xlu0 %1208
  %1210 = vadd.xlane.f32.xlu0 %v1199
  %v1211 = vpop.xlane.xlu0 %1210
  %1212 = vadd.xlane.f32.xlu0 %v1200
  %v1213 = vpop.xlane.xlu0 %1212
  %1214 = vadd.xlane.f32.xlu0 %v1201
  %v1215 = vpop.xlane.xlu0 %1214
  %1216 = vadd.xlane.f32.xlu0 %v1202
  %v1217 = vpop.xlane.xlu0 %1216
  %1218 = vadd.xlane.f32.xlu0 %v1203
  %v1219 = vpop.xlane.xlu0 %1218
  %v1220 = vrcp.pop %v1181
  %v1221 = vrcp.pop %v1183
  %v1222 = vrcp.pop %v1185
  %v1223 = vrcp.pop %v1187
  %v1224 = vrcp.pop %v1189
  %v1225 = vrcp.pop %v1191
  %v1226 = vrcp.pop %v1193
  %v1227 = vrcp.pop %v1195
  %v1228 = vrcp.pop %v1205
  %v1229 = vrcp.pop %v1207
  %v1230 = vrcp.pop %v1209
  %v1231 = vrcp.pop %v1211
  %v1232 = vrcp.pop %v1213
  %v1233 = vrcp.pop %v1215
  %v1234 = vrcp.pop %v1217
  %v1235 = vrcp.pop %v1219
  %v1236 = vsel %vm761, %v1220, %v1228
  %v1237 = vsel %vm761, %v1221, %v1229
  %v1238 = vsel %vm761, %v1222, %v1230
  %v1239 = vsel %vm761, %v1223, %v1231
  %v1240 = vsel %vm761, %v1224, %v1232
  %v1241 = vsel %vm761, %v1225, %v1233
  %v1242 = vsel %vm761, %v1226, %v1234
  %v1243 = vsel %vm761, %v1227, %v1235
  %v1244 = vmul.f32 %v1157, %v1236
  %v1245 = vmul.f32 %v1159, %v1237
  %v1246 = vmul.f32 %v1161, %v1238
  %v1247 = vmul.f32 %v1163, %v1239
  %v1248 = vmul.f32 %v1165, %v1240
  %v1249 = vmul.f32 %v1167, %v1241
  %v1250 = vmul.f32 %v1169, %v1242
  %v1251 = vmul.f32 %v1171, %v1243
  %v1252 = vpack.c.bf16 %v1245, %v1244
  %v1253 = vpack.c.bf16 %v1247, %v1246
  %v1254 = vpack.c.bf16 %v1249, %v1248
  %v1255 = vpack.c.bf16 %v1251, %v1250
  %1256 = vmatprep.subr.bf16.mxu0 0
  %1257 = vmatpush1.bf16.msra.mxu0 %v634
  %1258 = vmatprep.subr.bf16.mxu0 0
  %1259 = vmatpush1.bf16.msra.mxu0 %v633
  %1260 = vmatprep.subr.bf16.mxu0 0
  %1261 = vmatpush1.bf16.msra.mxu0 %v632
  %1262 = vmatprep.subr.bf16.mxu0 0
  %1263 = vmatpush1.bf16.msra.mxu0 %v631
  %1264 = vmatprep.subr.bf16.mxu0 0
  %1265 = vmatpush1.bf16.msra.mxu0 %v610
  %1266 = vmatprep.subr.bf16.mxu0 0
  %1267 = vmatpush1.bf16.msra.mxu0 %v609
  %1268 = vmatprep.subr.bf16.mxu0 0
  %1269 = vmatpush1.bf16.msra.mxu0 %v608
  %1270 = vmatprep.subr.bf16.mxu0 0
  %1271 = vmatpush1.bf16.msra.mxu0 %v607
  %1272 = vmatprep.subr.bf16.mxu0 0
  %1273 = vmatpush2.bf16.msra.mxu0 0
  %1274 = vmatprep.subr.bf16.mxu0 0
  %1275 = vmatpush2.bf16.msra.mxu0 0
  %1276 = vmatprep.subr.bf16.mxu0 0
  %1277 = vmatpush2.bf16.msra.mxu0 0
  %1278 = vmatprep.subr.bf16.mxu0 0
  %1279 = vmatpush2.bf16.msra.mxu0 0
  %1280 = vmatprep.subr.bf16.mxu0 0
  %1281 = vmatpush2.bf16.msra.mxu0 0
  %1282 = vmatprep.subr.bf16.mxu0 0
  %1283 = vmatpush2.bf16.msra.mxu0 0
  %1284 = vmatprep.subr.bf16.mxu0 0
  %1285 = vmatpush2.bf16.msra.mxu0 0
  %1286 = vmatprep.subr.bf16.mxu0 0
  %1287 = vmatpush2.bf16.msra.mxu0 0
  %1288 = vmatprep.mubr.bf16.mxu0 0
  %1289 = vmatmul.mubr.bf16.gmra.mxu0 %v1252
  %v1290 = vpop.f32.mrf.mxu0
  %v1291 = vadd.f32 0.0, %v1290
  %v1292 = vpop.f32.mrf.mxu0
  %v1293 = vpop.f32.mrf.mxu0
  %v1294 = vadd.f32 0.0, %v1293
  %v1295 = vpop.f32.mrf.mxu0
  %1296 = vmatprep.mubr.bf16.mxu0 0
  %1297 = vmatmul.mubr.bf16.gmra.mxu0 %v1253
  %v1298 = vpop.f32.mrf.mxu0
  %v1299 = vadd.f32 0.0, %v1298
  %v1300 = vpop.f32.mrf.mxu0
  %v1301 = vpop.f32.mrf.mxu0
  %v1302 = vadd.f32 0.0, %v1301
  %v1303 = vpop.f32.mrf.mxu0
  %1304 = vmatprep.mubr.bf16.mxu0 0
  %1305 = vmatmul.mubr.bf16.gmra.mxu0 %v1254
  %v1306 = vpop.f32.mrf.mxu0
  %v1307 = vadd.f32 0.0, %v1306
  %v1308 = vpop.f32.mrf.mxu0
  %v1309 = vpop.f32.mrf.mxu0
  %v1310 = vadd.f32 0.0, %v1309
  %v1311 = vpop.f32.mrf.mxu0
  %1312 = vmatprep.mubr.bf16.mxu0 0
  %1313 = vmatmul.mubr.bf16.gmra.mxu0 %v1255
  %v1314 = vpop.f32.mrf.mxu0
  %v1315 = vadd.f32 0.0, %v1314
  %v1316 = vpop.f32.mrf.mxu0
  %v1317 = vpop.f32.mrf.mxu0
  %v1318 = vadd.f32 0.0, %v1317
  %v1319 = vpop.f32.mrf.mxu0
  %1320 = vdwg.mxu0
  %v1321 = vpack.c.bf16 %v964, %v961
  %v1322 = vpack.c.bf16 %v972, %v969
  %v1323 = vpack.c.bf16 %v980, %v977
  %v1324 = vpack.c.bf16 %v988, %v985
  %v1325 = vpack.c.bf16 %v1294, %v1291
  %v1326 = vpack.c.bf16 %v1302, %v1299
  %v1327 = vpack.c.bf16 %v1310, %v1307
  %v1328 = vpack.c.bf16 %v1318, %v1315
  %v1329 = vlaneseq
  %v1330 = vshrl.u32 %v1329, 7
  %v1331 = vsub.s32 3, %v1330
  %v1332 = vrot.slane %v48, %v1331
  %v1341 = vunpack.c.l.b16 %v81
  %v1342 = vunpack.c.l.b16 %v82
  %v1343 = vunpack.c.l.b16 %v83
  %v1344 = vunpack.c.l.b16 %v84
  %v1345 = vunpack.c.l.b16 %v85
  %v1346 = vunpack.c.l.b16 %v86
  %v1347 = vunpack.c.l.b16 %v87
  %v1348 = vunpack.c.l.b16 %v88
  %v1349 = vpack.c.b16 %v1342, %v1341
  %v1350 = vpack.c.b16 %v1344, %v1343
  %v1351 = vpack.c.b16 %v1346, %v1345
  %v1352 = vpack.c.b16 %v1348, %v1347
  %v1358 = vsel %vm150, %v1321, 0
  %v1361 = vsel %vm150, %v1322, 0
  %v1364 = vsel %vm150, %v1323, 0
  %v1367 = vsel %vm150, %v1324, 0
  %v1370 = vsel %vm150, %v1325, 0
  %v1373 = vsel %vm150, %v1326, 0
  %v1376 = vsel %vm150, %v1327, 0
  %v1379 = vsel %vm150, %v1328, 0
  %1381 = vmatprep.subr.bf16.mxu0 0
  %1382 = vmatpush1.bf16.msra.mxu0 0
  %1383 = vmatprep.subr.bf16.mxu0 0
  %1384 = vmatpush1.bf16.msra.mxu0 0
  %1385 = vmatprep.subr.bf16.mxu0 0
  %1386 = vmatpush1.bf16.msra.mxu0 0
  %1387 = vmatprep.subr.bf16.mxu0 0
  %1388 = vmatpush1.bf16.msra.mxu0 0
  %1389 = vmatprep.subr.bf16.mxu0 0
  %1390 = vmatpush1.bf16.msra.mxu0 %v1352
  %1391 = vmatprep.subr.bf16.mxu0 0
  %1392 = vmatpush1.bf16.msra.mxu0 %v1351
  %1393 = vmatprep.subr.bf16.mxu0 0
  %1394 = vmatpush1.bf16.msra.mxu0 %v1350
  %1395 = vmatprep.subr.bf16.mxu0 0
  %1396 = vmatpush1.bf16.msra.mxu0 %v1349
  %1397 = vmatprep.subr.bf16.mxu0 0
  %1398 = vmatpush2.bf16.msra.mxu0 0
  %1399 = vmatprep.subr.bf16.mxu0 0
  %1400 = vmatpush2.bf16.msra.mxu0 0
  %1401 = vmatprep.subr.bf16.mxu0 0
  %1402 = vmatpush2.bf16.msra.mxu0 0
  %1403 = vmatprep.subr.bf16.mxu0 0
  %1404 = vmatpush2.bf16.msra.mxu0 0
  %1405 = vmatprep.subr.bf16.mxu0 0
  %1406 = vmatpush2.bf16.msra.mxu0 0
  %1407 = vmatprep.subr.bf16.mxu0 0
  %1408 = vmatpush2.bf16.msra.mxu0 0
  %1409 = vmatprep.subr.bf16.mxu0 0
  %1410 = vmatpush2.bf16.msra.mxu0 0
  %1411 = vmatprep.subr.bf16.mxu0 0
  %1412 = vmatpush2.bf16.msra.mxu0 0
  %1413 = vmatprep.mubr.bf16.mxu0 0
  %1414 = vmatmul.mubr.bf16.gmra.mxu0 %v1358
  %v1415 = vpop.f32.mrf.mxu0
  %v1416 = vadd.f32 %v1332, %v1415
  %v1417 = vpop.f32.mrf.mxu0
  %v1418 = vpop.f32.mrf.mxu0
  %v1419 = vadd.f32 %v1332, %v1418
  %v1420 = vpop.f32.mrf.mxu0
  %1421 = vmatprep.mubr.bf16.mxu0 0
  %1422 = vmatmul.mubr.bf16.gmra.mxu0 %v1361
  %v1423 = vpop.f32.mrf.mxu0
  %v1424 = vadd.f32 %v1332, %v1423
  %v1425 = vpop.f32.mrf.mxu0
  %v1426 = vpop.f32.mrf.mxu0
  %v1427 = vadd.f32 %v1332, %v1426
  %v1428 = vpop.f32.mrf.mxu0
  %1429 = vmatprep.mubr.bf16.mxu0 0
  %1430 = vmatmul.mubr.bf16.gmra.mxu0 %v1364
  %v1431 = vpop.f32.mrf.mxu0
  %v1432 = vadd.f32 %v1332, %v1431
  %v1433 = vpop.f32.mrf.mxu0
  %v1434 = vpop.f32.mrf.mxu0
  %v1435 = vadd.f32 %v1332, %v1434
  %v1436 = vpop.f32.mrf.mxu0
  %1437 = vmatprep.mubr.bf16.mxu0 0
  %1438 = vmatmul.mubr.bf16.gmra.mxu0 %v1367
  %v1439 = vpop.f32.mrf.mxu0
  %v1440 = vadd.f32 %v1332, %v1439
  %v1441 = vpop.f32.mrf.mxu0
  %v1442 = vpop.f32.mrf.mxu0
  %v1443 = vadd.f32 %v1332, %v1442
  %v1444 = vpop.f32.mrf.mxu0
  %1445 = vmatprep.mubr.bf16.mxu0 0
  %1446 = vmatmul.mubr.bf16.gmra.mxu0 %v1370
  %v1447 = vpop.f32.mrf.mxu0
  %v1448 = vadd.f32 %v1332, %v1447
  %v1449 = vpop.f32.mrf.mxu0
  %v1450 = vpop.f32.mrf.mxu0
  %v1451 = vadd.f32 %v1332, %v1450
  %v1452 = vpop.f32.mrf.mxu0
  %1453 = vmatprep.mubr.bf16.mxu0 0
  %1454 = vmatmul.mubr.bf16.gmra.mxu0 %v1373
  %v1455 = vpop.f32.mrf.mxu0
  %v1456 = vadd.f32 %v1332, %v1455
  %v1457 = vpop.f32.mrf.mxu0
  %v1458 = vpop.f32.mrf.mxu0
  %v1459 = vadd.f32 %v1332, %v1458
  %v1460 = vpop.f32.mrf.mxu0
  %1461 = vmatprep.mubr.bf16.mxu0 0
  %1462 = vmatmul.mubr.bf16.gmra.mxu0 %v1376
  %v1463 = vpop.f32.mrf.mxu0
  %v1464 = vadd.f32 %v1332, %v1463
  %v1465 = vpop.f32.mrf.mxu0
  %v1466 = vpop.f32.mrf.mxu0
  %v1467 = vadd.f32 %v1332, %v1466
  %v1468 = vpop.f32.mrf.mxu0
  %1469 = vmatprep.mubr.bf16.mxu0 0
  %1470 = vmatmul.mubr.bf16.gmra.mxu0 %v1379
  %v1471 = vpop.f32.mrf.mxu0
  %v1472 = vadd.f32 %v1332, %v1471
  %v1473 = vpop.f32.mrf.mxu0
  %v1474 = vpop.f32.mrf.mxu0
  %v1475 = vadd.f32 %v1332, %v1474
  %v1476 = vpop.f32.mrf.mxu0
  %1477 = vdwg.mxu0
  %v1478 = vmax.f32 %v1416, 0.0
  %v1479 = vmax.f32 %v1419, 0.0
  %v1480 = vmax.f32 %v1424, 0.0
  %v1481 = vmax.f32 %v1427, 0.0
  %v1482 = vmax.f32 %v1432, 0.0
  %v1483 = vmax.f32 %v1435, 0.0
  %v1484 = vmax.f32 %v1440, 0.0
  %v1485 = vmax.f32 %v1443, 0.0
  %v1486 = vmax.f32 %v1448, 0.0
  %v1487 = vmax.f32 %v1451, 0.0
  %v1488 = vmax.f32 %v1456, 0.0
  %v1489 = vmax.f32 %v1459, 0.0
  %v1490 = vmax.f32 %v1464, 0.0
  %v1491 = vmax.f32 %v1467, 0.0
  %v1492 = vmax.f32 %v1472, 0.0
  %v1493 = vmax.f32 %v1475, 0.0
  %v1494 = vadd.f32 %v1478, %v24
  %v1495 = vadd.f32 %v1479, %v25
  %v1496 = vadd.f32 %v1480, %v26
  %v1497 = vadd.f32 %v1481, %v27
  %v1498 = vadd.f32 %v1482, %v28
  %v1499 = vadd.f32 %v1483, %v29
  %v1500 = vadd.f32 %v1484, %v30
  %v1501 = vadd.f32 %v1485, %v31
  %v1502 = vadd.f32 %v1486, %v32
  %v1503 = vadd.f32 %v1487, %v33
  %v1504 = vadd.f32 %v1488, %v34
  %v1505 = vadd.f32 %v1489, %v35
  %v1506 = vadd.f32 %v1490, %v36
  %v1507 = vadd.f32 %v1491, %v37
  %v1508 = vadd.f32 %v1492, %v38
  %v1509 = vadd.f32 %v1493, %v39
  %v1510 = vsel %vm150, %v1494, 0.0
  %1511 = vadd.xlane.f32.xlu0 %v1510
  %v1512 = vpop.xlane.xlu0 %1511
  %v1513 = vsel %vm150, %v1495, 0.0
  %1514 = vadd.xlane.f32.xlu0 %v1513
  %v1515 = vpop.xlane.xlu0 %1514
  %v1516 = vsel %vm150, %v1496, 0.0
  %1517 = vadd.xlane.f32.xlu0 %v1516
  %v1518 = vpop.xlane.xlu0 %1517
  %v1519 = vsel %vm150, %v1497, 0.0
  %1520 = vadd.xlane.f32.xlu0 %v1519
  %v1521 = vpop.xlane.xlu0 %1520
  %v1522 = vsel %vm150, %v1498, 0.0
  %1523 = vadd.xlane.f32.xlu0 %v1522
  %v1524 = vpop.xlane.xlu0 %1523
  %v1525 = vsel %vm150, %v1499, 0.0
  %1526 = vadd.xlane.f32.xlu0 %v1525
  %v1527 = vpop.xlane.xlu0 %1526
  %v1528 = vsel %vm150, %v1500, 0.0
  %1529 = vadd.xlane.f32.xlu0 %v1528
  %v1530 = vpop.xlane.xlu0 %1529
  %v1531 = vsel %vm150, %v1501, 0.0
  %1532 = vadd.xlane.f32.xlu0 %v1531
  %v1533 = vpop.xlane.xlu0 %1532
  %v1534 = vsel %vm150, %v1502, 0.0
  %1535 = vadd.xlane.f32.xlu0 %v1534
  %v1536 = vpop.xlane.xlu0 %1535
  %v1537 = vsel %vm150, %v1503, 0.0
  %1538 = vadd.xlane.f32.xlu0 %v1537
  %v1539 = vpop.xlane.xlu0 %1538
  %v1540 = vsel %vm150, %v1504, 0.0
  %1541 = vadd.xlane.f32.xlu0 %v1540
  %v1542 = vpop.xlane.xlu0 %1541
  %v1543 = vsel %vm150, %v1505, 0.0
  %1544 = vadd.xlane.f32.xlu0 %v1543
  %v1545 = vpop.xlane.xlu0 %1544
  %v1546 = vsel %vm150, %v1506, 0.0
  %1547 = vadd.xlane.f32.xlu0 %v1546
  %v1548 = vpop.xlane.xlu0 %1547
  %v1549 = vsel %vm150, %v1507, 0.0
  %1550 = vadd.xlane.f32.xlu0 %v1549
  %v1551 = vpop.xlane.xlu0 %1550
  %v1552 = vsel %vm150, %v1508, 0.0
  %1553 = vadd.xlane.f32.xlu0 %v1552
  %v1554 = vpop.xlane.xlu0 %1553
  %v1555 = vsel %vm150, %v1509, 0.0
  %1556 = vadd.xlane.f32.xlu0 %v1555
  %v1557 = vpop.xlane.xlu0 %1556
  %v1558 = vrcp.pop 64.0
  %v1559 = vmul.f32 %v1512, %v1558
  %v1560 = vmul.f32 %v1515, %v1558
  %v1561 = vmul.f32 %v1518, %v1558
  %v1562 = vmul.f32 %v1521, %v1558
  %v1563 = vmul.f32 %v1524, %v1558
  %v1564 = vmul.f32 %v1527, %v1558
  %v1565 = vmul.f32 %v1530, %v1558
  %v1566 = vmul.f32 %v1533, %v1558
  %v1567 = vmul.f32 %v1536, %v1558
  %v1568 = vmul.f32 %v1539, %v1558
  %v1569 = vmul.f32 %v1542, %v1558
  %v1570 = vmul.f32 %v1545, %v1558
  %v1571 = vmul.f32 %v1548, %v1558
  %v1572 = vmul.f32 %v1551, %v1558
  %v1573 = vmul.f32 %v1554, %v1558
  %v1574 = vmul.f32 %v1557, %v1558
  %v1575 = vsub.f32 %v1494, %v1559
  %v1576 = vsub.f32 %v1495, %v1560
  %v1577 = vsub.f32 %v1496, %v1561
  %v1578 = vsub.f32 %v1497, %v1562
  %v1579 = vsub.f32 %v1498, %v1563
  %v1580 = vsub.f32 %v1499, %v1564
  %v1581 = vsub.f32 %v1500, %v1565
  %v1582 = vsub.f32 %v1501, %v1566
  %v1583 = vsub.f32 %v1502, %v1567
  %v1584 = vsub.f32 %v1503, %v1568
  %v1585 = vsub.f32 %v1504, %v1569
  %v1586 = vsub.f32 %v1505, %v1570
  %v1587 = vsub.f32 %v1506, %v1571
  %v1588 = vsub.f32 %v1507, %v1572
  %v1589 = vsub.f32 %v1508, %v1573
  %v1590 = vsub.f32 %v1509, %v1574
  %v1591 = vmul.f32 %v1575, %v1575
  %v1592 = vmul.f32 %v1576, %v1576
  %v1593 = vmul.f32 %v1577, %v1577
  %v1594 = vmul.f32 %v1578, %v1578
  %v1595 = vmul.f32 %v1579, %v1579
  %v1596 = vmul.f32 %v1580, %v1580
  %v1597 = vmul.f32 %v1581, %v1581
  %v1598 = vmul.f32 %v1582, %v1582
  %v1599 = vmul.f32 %v1583, %v1583
  %v1600 = vmul.f32 %v1584, %v1584
  %v1601 = vmul.f32 %v1585, %v1585
  %v1602 = vmul.f32 %v1586, %v1586
  %v1603 = vmul.f32 %v1587, %v1587
  %v1604 = vmul.f32 %v1588, %v1588
  %v1605 = vmul.f32 %v1589, %v1589
  %v1606 = vmul.f32 %v1590, %v1590
  %v1607 = vsel %vm150, %v1591, 0.0
  %1608 = vadd.xlane.f32.xlu0 %v1607
  %v1609 = vpop.xlane.xlu0 %1608
  %v1610 = vsel %vm150, %v1592, 0.0
  %1611 = vadd.xlane.f32.xlu0 %v1610
  %v1612 = vpop.xlane.xlu0 %1611
  %v1613 = vsel %vm150, %v1593, 0.0
  %1614 = vadd.xlane.f32.xlu0 %v1613
  %v1615 = vpop.xlane.xlu0 %1614
  %v1616 = vsel %vm150, %v1594, 0.0
  %1617 = vadd.xlane.f32.xlu0 %v1616
  %v1618 = vpop.xlane.xlu0 %1617
  %v1619 = vsel %vm150, %v1595, 0.0
  %1620 = vadd.xlane.f32.xlu0 %v1619
  %v1621 = vpop.xlane.xlu0 %1620
  %v1622 = vsel %vm150, %v1596, 0.0
  %1623 = vadd.xlane.f32.xlu0 %v1622
  %v1624 = vpop.xlane.xlu0 %1623
  %v1625 = vsel %vm150, %v1597, 0.0
  %1626 = vadd.xlane.f32.xlu0 %v1625
  %v1627 = vpop.xlane.xlu0 %1626
  %v1628 = vsel %vm150, %v1598, 0.0
  %1629 = vadd.xlane.f32.xlu0 %v1628
  %v1630 = vpop.xlane.xlu0 %1629
  %v1631 = vsel %vm150, %v1599, 0.0
  %1632 = vadd.xlane.f32.xlu0 %v1631
  %v1633 = vpop.xlane.xlu0 %1632
  %v1634 = vsel %vm150, %v1600, 0.0
  %1635 = vadd.xlane.f32.xlu0 %v1634
  %v1636 = vpop.xlane.xlu0 %1635
  %v1637 = vsel %vm150, %v1601, 0.0
  %1638 = vadd.xlane.f32.xlu0 %v1637
  %v1639 = vpop.xlane.xlu0 %1638
  %v1640 = vsel %vm150, %v1602, 0.0
  %1641 = vadd.xlane.f32.xlu0 %v1640
  %v1642 = vpop.xlane.xlu0 %1641
  %v1643 = vsel %vm150, %v1603, 0.0
  %1644 = vadd.xlane.f32.xlu0 %v1643
  %v1645 = vpop.xlane.xlu0 %1644
  %v1646 = vsel %vm150, %v1604, 0.0
  %1647 = vadd.xlane.f32.xlu0 %v1646
  %v1648 = vpop.xlane.xlu0 %1647
  %v1649 = vsel %vm150, %v1605, 0.0
  %1650 = vadd.xlane.f32.xlu0 %v1649
  %v1651 = vpop.xlane.xlu0 %1650
  %v1652 = vsel %vm150, %v1606, 0.0
  %1653 = vadd.xlane.f32.xlu0 %v1652
  %v1654 = vpop.xlane.xlu0 %1653
  %v1655 = vmul.f32 %v1609, %v1558
  %v1656 = vmul.f32 %v1612, %v1558
  %v1657 = vmul.f32 %v1615, %v1558
  %v1658 = vmul.f32 %v1618, %v1558
  %v1659 = vmul.f32 %v1621, %v1558
  %v1660 = vmul.f32 %v1624, %v1558
  %v1661 = vmul.f32 %v1627, %v1558
  %v1662 = vmul.f32 %v1630, %v1558
  %v1663 = vmul.f32 %v1633, %v1558
  %v1664 = vmul.f32 %v1636, %v1558
  %v1665 = vmul.f32 %v1639, %v1558
  %v1666 = vmul.f32 %v1642, %v1558
  %v1667 = vmul.f32 %v1645, %v1558
  %v1668 = vmul.f32 %v1648, %v1558
  %v1669 = vmul.f32 %v1651, %v1558
  %v1670 = vmul.f32 %v1654, %v1558
  %v1671 = vadd.f32 %v1655, 1e-05
  %v1672 = vadd.f32 %v1656, 1e-05
  %v1673 = vadd.f32 %v1657, 1e-05
  %v1674 = vadd.f32 %v1658, 1e-05
  %v1675 = vadd.f32 %v1659, 1e-05
  %v1676 = vadd.f32 %v1660, 1e-05
  %v1677 = vadd.f32 %v1661, 1e-05
  %v1678 = vadd.f32 %v1662, 1e-05
  %v1679 = vadd.f32 %v1663, 1e-05
  %v1680 = vadd.f32 %v1664, 1e-05
  %v1681 = vadd.f32 %v1665, 1e-05
  %v1682 = vadd.f32 %v1666, 1e-05
  %v1683 = vadd.f32 %v1667, 1e-05
  %v1684 = vadd.f32 %v1668, 1e-05
  %v1685 = vadd.f32 %v1669, 1e-05
  %v1686 = vadd.f32 %v1670, 1e-05
  %v1687 = vrsqrt.pop %v1671
  %v1688 = vrsqrt.pop %v1672
  %v1689 = vrsqrt.pop %v1673
  %v1690 = vrsqrt.pop %v1674
  %v1691 = vrsqrt.pop %v1675
  %v1692 = vrsqrt.pop %v1676
  %v1693 = vrsqrt.pop %v1677
  %v1694 = vrsqrt.pop %v1678
  %v1695 = vrsqrt.pop %v1679
  %v1696 = vrsqrt.pop %v1680
  %v1697 = vrsqrt.pop %v1681
  %v1698 = vrsqrt.pop %v1682
  %v1699 = vrsqrt.pop %v1683
  %v1700 = vrsqrt.pop %v1684
  %v1701 = vrsqrt.pop %v1685
  %v1702 = vrsqrt.pop %v1686
  %v1703 = vmul.f32 %v1575, %v1687
  %v1704 = vmul.f32 %v1576, %v1688
  %v1705 = vmul.f32 %v1577, %v1689
  %v1706 = vmul.f32 %v1578, %v1690
  %v1707 = vmul.f32 %v1579, %v1691
  %v1708 = vmul.f32 %v1580, %v1692
  %v1709 = vmul.f32 %v1581, %v1693
  %v1710 = vmul.f32 %v1582, %v1694
  %v1711 = vmul.f32 %v1583, %v1695
  %v1712 = vmul.f32 %v1584, %v1696
  %v1713 = vmul.f32 %v1585, %v1697
  %v1714 = vmul.f32 %v1586, %v1698
  %v1715 = vmul.f32 %v1587, %v1699
  %v1716 = vmul.f32 %v1588, %v1700
  %v1717 = vmul.f32 %v1589, %v1701
  %v1718 = vmul.f32 %v1590, %v1702
  %v1719 = vlaneseq
  %v1720 = vshrl.u32 %v1719, 7
  %v1721 = vsub.s32 4, %v1720
  %v1722 = vrot.slane %v48, %v1721
  %v1723 = vmul.f32 %v1703, %v1722
  %v1724 = vmul.f32 %v1704, %v1722
  %v1725 = vmul.f32 %v1705, %v1722
  %v1726 = vmul.f32 %v1706, %v1722
  %v1727 = vmul.f32 %v1707, %v1722
  %v1728 = vmul.f32 %v1708, %v1722
  %v1729 = vmul.f32 %v1709, %v1722
  %v1730 = vmul.f32 %v1710, %v1722
  %v1731 = vmul.f32 %v1711, %v1722
  %v1732 = vmul.f32 %v1712, %v1722
  %v1733 = vmul.f32 %v1713, %v1722
  %v1734 = vmul.f32 %v1714, %v1722
  %v1735 = vmul.f32 %v1715, %v1722
  %v1736 = vmul.f32 %v1716, %v1722
  %v1737 = vmul.f32 %v1717, %v1722
  %v1738 = vmul.f32 %v1718, %v1722
  %v1739 = vlaneseq
  %v1740 = vshrl.u32 %v1739, 7
  %v1741 = vsub.s32 5, %v1740
  %v1742 = vrot.slane %v48, %v1741
  %v1743 = vadd.f32 %v1723, %v1742
  %v1744 = vadd.f32 %v1724, %v1742
  %v1745 = vadd.f32 %v1725, %v1742
  %v1746 = vadd.f32 %v1726, %v1742
  %v1747 = vadd.f32 %v1727, %v1742
  %v1748 = vadd.f32 %v1728, %v1742
  %v1749 = vadd.f32 %v1729, %v1742
  %v1750 = vadd.f32 %v1730, %v1742
  %v1751 = vadd.f32 %v1731, %v1742
  %v1752 = vadd.f32 %v1732, %v1742
  %v1753 = vadd.f32 %v1733, %v1742
  %v1754 = vadd.f32 %v1734, %v1742
  %v1755 = vadd.f32 %v1735, %v1742
  %v1756 = vadd.f32 %v1736, %v1742
  %v1757 = vadd.f32 %v1737, %v1742
  %v1758 = vadd.f32 %v1738, %v1742
  %v1759 = vlaneseq
  %v1760 = vshrl.u32 %v1759, 7
  %v1761 = vadd.s32 %v1760, 8
  %v1762 = vadd.s32 %v1760, 16
  %v1763 = vadd.s32 %v1760, 24
  %v1764 = vadd.s32 %v1760, 32
  %v1765 = vadd.s32 %v1760, 40
  %v1766 = vadd.s32 %v1760, 48
  %v1767 = vadd.s32 %v1760, 56
  %v1768 = vadd.s32 %v1760, 64
  %v1769 = vadd.s32 %v1760, 72
  %v1770 = vadd.s32 %v1760, 80
  %v1771 = vadd.s32 %v1760, 88
  %v1772 = vadd.s32 %v1760, 96
  %v1773 = vadd.s32 %v1760, 104
  %v1774 = vadd.s32 %v1760, 112
  %v1775 = vadd.s32 %v1760, 120
  %v1776 = vand.u32 %v1760, 63
  %v1777 = vand.u32 %v1761, 63
  %v1778 = vand.u32 %v1762, 63
  %v1779 = vand.u32 %v1763, 63
  %v1780 = vand.u32 %v1764, 63
  %v1781 = vand.u32 %v1765, 63
  %v1782 = vand.u32 %v1766, 63
  %v1783 = vand.u32 %v1767, 63
  %v1784 = vand.u32 %v1768, 63
  %v1785 = vand.u32 %v1769, 63
  %v1786 = vand.u32 %v1770, 63
  %v1787 = vand.u32 %v1771, 63
  %v1788 = vand.u32 %v1772, 63
  %v1789 = vand.u32 %v1773, 63
  %v1790 = vand.u32 %v1774, 63
  %v1791 = vand.u32 %v1775, 63
  %vm1792 = vcmp.eq.s32.totalorder %v1776, 55
  %vm1793 = vcmp.eq.s32.totalorder %v1777, 55
  %vm1794 = vcmp.eq.s32.totalorder %v1778, 55
  %vm1795 = vcmp.eq.s32.totalorder %v1779, 55
  %vm1796 = vcmp.eq.s32.totalorder %v1780, 55
  %vm1797 = vcmp.eq.s32.totalorder %v1781, 55
  %vm1798 = vcmp.eq.s32.totalorder %v1782, 55
  %vm1799 = vcmp.eq.s32.totalorder %v1783, 55
  %vm1800 = vcmp.eq.s32.totalorder %v1784, 55
  %vm1801 = vcmp.eq.s32.totalorder %v1785, 55
  %vm1802 = vcmp.eq.s32.totalorder %v1786, 55
  %vm1803 = vcmp.eq.s32.totalorder %v1787, 55
  %vm1804 = vcmp.eq.s32.totalorder %v1788, 55
  %vm1805 = vcmp.eq.s32.totalorder %v1789, 55
  %vm1806 = vcmp.eq.s32.totalorder %v1790, 55
  %vm1807 = vcmp.eq.s32.totalorder %v1791, 55
  %v1808 = vsel %vm1792, 1, 0
  %v1809 = vsel %vm1793, 1, 0
  %v1810 = vsel %vm1794, 1, 0
  %v1811 = vsel %vm1795, 1, 0
  %v1812 = vsel %vm1796, 1, 0
  %v1813 = vsel %vm1797, 1, 0
  %v1814 = vsel %vm1798, 1, 0
  %v1815 = vsel %vm1799, 1, 0
  %v1816 = vsel %vm1800, 1, 0
  %v1817 = vsel %vm1801, 1, 0
  %v1818 = vsel %vm1802, 1, 0
  %v1819 = vsel %vm1803, 1, 0
  %v1820 = vsel %vm1804, 1, 0
  %v1821 = vsel %vm1805, 1, 0
  %v1822 = vsel %vm1806, 1, 0
  %v1823 = vsel %vm1807, 1, 0
  %vm1824 = vcmp.eq.s32.totalorder %v1808, 1
  %vm1825 = vcmp.eq.s32.totalorder %v1809, 1
  %vm1826 = vcmp.eq.s32.totalorder %v1810, 1
  %vm1827 = vcmp.eq.s32.totalorder %v1811, 1
  %vm1828 = vcmp.eq.s32.totalorder %v1812, 1
  %vm1829 = vcmp.eq.s32.totalorder %v1813, 1
  %vm1830 = vcmp.eq.s32.totalorder %v1814, 1
  %vm1831 = vcmp.eq.s32.totalorder %v1815, 1
  %vm1832 = vcmp.eq.s32.totalorder %v1816, 1
  %vm1833 = vcmp.eq.s32.totalorder %v1817, 1
  %vm1834 = vcmp.eq.s32.totalorder %v1818, 1
  %vm1835 = vcmp.eq.s32.totalorder %v1819, 1
  %vm1836 = vcmp.eq.s32.totalorder %v1820, 1
  %vm1837 = vcmp.eq.s32.totalorder %v1821, 1
  %vm1838 = vcmp.eq.s32.totalorder %v1822, 1
  %vm1839 = vcmp.eq.s32.totalorder %v1823, 1
  %v1840 = vsel %vm1824, %v24, %v1743
  %v1841 = vsel %vm1825, %v25, %v1744
  %v1842 = vsel %vm1826, %v26, %v1745
  %v1843 = vsel %vm1827, %v27, %v1746
  %v1844 = vsel %vm1828, %v28, %v1747
  %v1845 = vsel %vm1829, %v29, %v1748
  %v1846 = vsel %vm1830, %v30, %v1749
  %v1847 = vsel %vm1831, %v31, %v1750
  %v1848 = vsel %vm1832, %v32, %v1751
  %v1849 = vsel %vm1833, %v33, %v1752
  %v1850 = vsel %vm1834, %v34, %v1753
  %v1851 = vsel %vm1835, %v35, %v1754
  %v1852 = vsel %vm1836, %v36, %v1755
  %v1853 = vsel %vm1837, %v37, %v1756
  %v1854 = vsel %vm1838, %v38, %v1757
  %v1855 = vsel %vm1839, %v39, %v1758
  %v1856 = vld [vmem:[%s3] sm:$0xff]
  %v1857 = vld [vmem:[%s3 + $0x8] sm:$0xff]
  %v1858 = vld [vmem:[%s3 + $0x10] sm:$0xff]
  %v1859 = vld [vmem:[%s3 + $0x18] sm:$0xff]
  %v1860 = vld [vmem:[%s3 + $0x20] sm:$0xff]
  %v1861 = vld [vmem:[%s3 + $0x28] sm:$0xff]
  %v1862 = vld [vmem:[%s3 + $0x30] sm:$0xff]
  %v1863 = vld [vmem:[%s3 + $0x38] sm:$0xff]
  %v1864 = vld [vmem:[%s3 + $0x40] sm:$0xff]
  %v1865 = vld [vmem:[%s3 + $0x48] sm:$0xff]
  %v1866 = vld [vmem:[%s3 + $0x50] sm:$0xff]
  %v1867 = vld [vmem:[%s3 + $0x58] sm:$0xff]
  %v1868 = vld [vmem:[%s3 + $0x60] sm:$0xff]
  %v1869 = vld [vmem:[%s3 + $0x68] sm:$0xff]
  %v1870 = vld [vmem:[%s3 + $0x70] sm:$0xff]
  %v1871 = vld [vmem:[%s3 + $0x78] sm:$0xff]
  %v1872 = vpack.c.bf16 %v1857, %v1856
  %v1873 = vpack.c.bf16 %v1859, %v1858
  %v1874 = vpack.c.bf16 %v1861, %v1860
  %v1875 = vpack.c.bf16 %v1863, %v1862
  %v1876 = vpack.c.bf16 %v1865, %v1864
  %v1877 = vpack.c.bf16 %v1867, %v1866
  %v1878 = vpack.c.bf16 %v1869, %v1868
  %v1879 = vpack.c.bf16 %v1871, %v1870
  %v1880 = vlaneseq
  %v1881 = vshrl.u32 %v1880, 7
  %v1882 = vsub.s32 6, %v1881
  %v1883 = vrot.slane %v48, %v1882
  %vm1884 = vcmask 64512
  %v1886 = vsel %vm1884, %v1872, 0
  %v1889 = vsel %vm1884, %v1873, 0
  %v1892 = vsel %vm1884, %v1874, 0
  %v1895 = vsel %vm1884, %v1875, 0
  %v1898 = vsel %vm1884, %v1876, 0
  %v1901 = vsel %vm1884, %v1877, 0
  %v1904 = vsel %vm1884, %v1878, 0
  %v1907 = vsel %vm1884, %v1879, 0
  %vm1909 = vcmask 1043456
  %v1911 = vsel %vm1909, %v121, 0
  %1913 = vmatprep.subr.bf16.mxu0 0
  %1914 = vmatpush1.bf16.msra.mxu0 0
  %1915 = vmatprep.subr.bf16.mxu0 0
  %1916 = vmatpush1.bf16.msra.mxu0 0
  %1917 = vmatprep.subr.bf16.mxu0 0
  %1918 = vmatpush1.bf16.msra.mxu0 0
  %1919 = vmatprep.subr.bf16.mxu0 0
  %1920 = vmatpush1.bf16.msra.mxu0 0
  %1921 = vmatprep.subr.bf16.mxu0 0
  %1922 = vmatpush1.bf16.msra.mxu0 0
  %1923 = vmatprep.subr.bf16.mxu0 0
  %1924 = vmatpush1.bf16.msra.mxu0 0
  %1925 = vmatprep.subr.bf16.mxu0 0
  %1926 = vmatpush1.bf16.msra.mxu0 0
  %1927 = vmatprep.subr.bf16.mxu0 0
  %1928 = vmatpush1.bf16.msra.mxu0 %v1911
  %1929 = vmatprep.subr.bf16.mxu0 0
  %1930 = vmatpush2.bf16.msra.mxu0 0
  %1931 = vmatprep.subr.bf16.mxu0 0
  %1932 = vmatpush2.bf16.msra.mxu0 0
  %1933 = vmatprep.subr.bf16.mxu0 0
  %1934 = vmatpush2.bf16.msra.mxu0 0
  %1935 = vmatprep.subr.bf16.mxu0 0
  %1936 = vmatpush2.bf16.msra.mxu0 0
  %1937 = vmatprep.subr.bf16.mxu0 0
  %1938 = vmatpush2.bf16.msra.mxu0 0
  %1939 = vmatprep.subr.bf16.mxu0 0
  %1940 = vmatpush2.bf16.msra.mxu0 0
  %1941 = vmatprep.subr.bf16.mxu0 0
  %1942 = vmatpush2.bf16.msra.mxu0 0
  %1943 = vmatprep.subr.bf16.mxu0 0
  %1944 = vmatpush2.bf16.msra.mxu0 0
  %1945 = vmatprep.mubr.bf16.mxu0 0
  %1946 = vmatmul.mubr.bf16.gmra.mxu0 %v1886
  %v1947 = vpop.f32.mrf.mxu0
  %v1948 = vadd.f32 %v1883, %v1947
  %v1949 = vpop.f32.mrf.mxu0
  %v1950 = vpop.f32.mrf.mxu0
  %v1951 = vadd.f32 %v1883, %v1950
  %v1952 = vpop.f32.mrf.mxu0
  %1953 = vmatprep.mubr.bf16.mxu0 0
  %1954 = vmatmul.mubr.bf16.gmra.mxu0 %v1889
  %v1955 = vpop.f32.mrf.mxu0
  %v1956 = vadd.f32 %v1883, %v1955
  %v1957 = vpop.f32.mrf.mxu0
  %v1958 = vpop.f32.mrf.mxu0
  %v1959 = vadd.f32 %v1883, %v1958
  %v1960 = vpop.f32.mrf.mxu0
  %1961 = vmatprep.mubr.bf16.mxu0 0
  %1962 = vmatmul.mubr.bf16.gmra.mxu0 %v1892
  %v1963 = vpop.f32.mrf.mxu0
  %v1964 = vadd.f32 %v1883, %v1963
  %v1965 = vpop.f32.mrf.mxu0
  %v1966 = vpop.f32.mrf.mxu0
  %v1967 = vadd.f32 %v1883, %v1966
  %v1968 = vpop.f32.mrf.mxu0
  %1969 = vmatprep.mubr.bf16.mxu0 0
  %1970 = vmatmul.mubr.bf16.gmra.mxu0 %v1895
  %v1971 = vpop.f32.mrf.mxu0
  %v1972 = vadd.f32 %v1883, %v1971
  %v1973 = vpop.f32.mrf.mxu0
  %v1974 = vpop.f32.mrf.mxu0
  %v1975 = vadd.f32 %v1883, %v1974
  %v1976 = vpop.f32.mrf.mxu0
  %1977 = vmatprep.mubr.bf16.mxu0 0
  %1978 = vmatmul.mubr.bf16.gmra.mxu0 %v1898
  %v1979 = vpop.f32.mrf.mxu0
  %v1980 = vadd.f32 %v1883, %v1979
  %v1981 = vpop.f32.mrf.mxu0
  %v1982 = vpop.f32.mrf.mxu0
  %v1983 = vadd.f32 %v1883, %v1982
  %v1984 = vpop.f32.mrf.mxu0
  %1985 = vmatprep.mubr.bf16.mxu0 0
  %1986 = vmatmul.mubr.bf16.gmra.mxu0 %v1901
  %v1987 = vpop.f32.mrf.mxu0
  %v1988 = vadd.f32 %v1883, %v1987
  %v1989 = vpop.f32.mrf.mxu0
  %v1990 = vpop.f32.mrf.mxu0
  %v1991 = vadd.f32 %v1883, %v1990
  %v1992 = vpop.f32.mrf.mxu0
  %1993 = vmatprep.mubr.bf16.mxu0 0
  %1994 = vmatmul.mubr.bf16.gmra.mxu0 %v1904
  %v1995 = vpop.f32.mrf.mxu0
  %v1996 = vadd.f32 %v1883, %v1995
  %v1997 = vpop.f32.mrf.mxu0
  %v1998 = vpop.f32.mrf.mxu0
  %v1999 = vadd.f32 %v1883, %v1998
  %v2000 = vpop.f32.mrf.mxu0
  %2001 = vmatprep.mubr.bf16.mxu0 0
  %2002 = vmatmul.mubr.bf16.gmra.mxu0 %v1907
  %v2003 = vpop.f32.mrf.mxu0
  %v2004 = vadd.f32 %v1883, %v2003
  %v2005 = vpop.f32.mrf.mxu0
  %v2006 = vpop.f32.mrf.mxu0
  %v2007 = vadd.f32 %v1883, %v2006
  %v2008 = vpop.f32.mrf.mxu0
  %2009 = vdwg.mxu0
  %v2010 = vpack.c.bf16 %v1841, %v1840
  %v2011 = vpack.c.bf16 %v1843, %v1842
  %v2012 = vpack.c.bf16 %v1845, %v1844
  %v2013 = vpack.c.bf16 %v1847, %v1846
  %v2014 = vpack.c.bf16 %v1849, %v1848
  %v2015 = vpack.c.bf16 %v1851, %v1850
  %v2016 = vpack.c.bf16 %v1853, %v1852
  %v2017 = vpack.c.bf16 %v1855, %v1854
  %v2018 = vlaneseq
  %v2019 = vshrl.u32 %v2018, 7
  %v2020 = vsub.s32 7, %v2019
  %v2021 = vrot.slane %v48, %v2020
  %v2030 = vunpack.c.l.b16 %v89
  %v2031 = vunpack.c.l.b16 %v90
  %v2032 = vunpack.c.l.b16 %v91
  %v2033 = vunpack.c.l.b16 %v92
  %v2034 = vunpack.c.l.b16 %v93
  %v2035 = vunpack.c.l.b16 %v94
  %v2036 = vunpack.c.l.b16 %v95
  %v2037 = vunpack.c.l.b16 %v96
  %v2038 = vpack.c.b16 %v2031, %v2030
  %v2039 = vpack.c.b16 %v2033, %v2032
  %v2040 = vpack.c.b16 %v2035, %v2034
  %v2041 = vpack.c.b16 %v2037, %v2036
  %v2047 = vsel %vm150, %v2010, 0
  %v2050 = vsel %vm150, %v2011, 0
  %v2053 = vsel %vm150, %v2012, 0
  %v2056 = vsel %vm150, %v2013, 0
  %v2059 = vsel %vm150, %v2014, 0
  %v2062 = vsel %vm150, %v2015, 0
  %v2065 = vsel %vm150, %v2016, 0
  %v2068 = vsel %vm150, %v2017, 0
  %2070 = vmatprep.subr.bf16.mxu0 0
  %2071 = vmatpush1.bf16.msra.mxu0 0
  %2072 = vmatprep.subr.bf16.mxu0 0
  %2073 = vmatpush1.bf16.msra.mxu0 0
  %2074 = vmatprep.subr.bf16.mxu0 0
  %2075 = vmatpush1.bf16.msra.mxu0 0
  %2076 = vmatprep.subr.bf16.mxu0 0
  %2077 = vmatpush1.bf16.msra.mxu0 0
  %2078 = vmatprep.subr.bf16.mxu0 0
  %2079 = vmatpush1.bf16.msra.mxu0 %v2041
  %2080 = vmatprep.subr.bf16.mxu0 0
  %2081 = vmatpush1.bf16.msra.mxu0 %v2040
  %2082 = vmatprep.subr.bf16.mxu0 0
  %2083 = vmatpush1.bf16.msra.mxu0 %v2039
  %2084 = vmatprep.subr.bf16.mxu0 0
  %2085 = vmatpush1.bf16.msra.mxu0 %v2038
  %2086 = vmatprep.subr.bf16.mxu0 0
  %2087 = vmatpush2.bf16.msra.mxu0 0
  %2088 = vmatprep.subr.bf16.mxu0 0
  %2089 = vmatpush2.bf16.msra.mxu0 0
  %2090 = vmatprep.subr.bf16.mxu0 0
  %2091 = vmatpush2.bf16.msra.mxu0 0
  %2092 = vmatprep.subr.bf16.mxu0 0
  %2093 = vmatpush2.bf16.msra.mxu0 0
  %2094 = vmatprep.subr.bf16.mxu0 0
  %2095 = vmatpush2.bf16.msra.mxu0 0
  %2096 = vmatprep.subr.bf16.mxu0 0
  %2097 = vmatpush2.bf16.msra.mxu0 0
  %2098 = vmatprep.subr.bf16.mxu0 0
  %2099 = vmatpush2.bf16.msra.mxu0 0
  %2100 = vmatprep.subr.bf16.mxu0 0
  %2101 = vmatpush2.bf16.msra.mxu0 0
  %2102 = vmatprep.mubr.bf16.mxu0 0
  %2103 = vmatmul.mubr.bf16.gmra.mxu0 %v2047
  %v2104 = vpop.f32.mrf.mxu0
  %v2105 = vadd.f32 %v2021, %v2104
  %v2106 = vpop.f32.mrf.mxu0
  %v2107 = vpop.f32.mrf.mxu0
  %v2108 = vadd.f32 %v2021, %v2107
  %v2109 = vpop.f32.mrf.mxu0
  %2110 = vmatprep.mubr.bf16.mxu0 0
  %2111 = vmatmul.mubr.bf16.gmra.mxu0 %v2050
  %v2112 = vpop.f32.mrf.mxu0
  %v2113 = vadd.f32 %v2021, %v2112
  %v2114 = vpop.f32.mrf.mxu0
  %v2115 = vpop.f32.mrf.mxu0
  %v2116 = vadd.f32 %v2021, %v2115
  %v2117 = vpop.f32.mrf.mxu0
  %2118 = vmatprep.mubr.bf16.mxu0 0
  %2119 = vmatmul.mubr.bf16.gmra.mxu0 %v2053
  %v2120 = vpop.f32.mrf.mxu0
  %v2121 = vadd.f32 %v2021, %v2120
  %v2122 = vpop.f32.mrf.mxu0
  %v2123 = vpop.f32.mrf.mxu0
  %v2124 = vadd.f32 %v2021, %v2123
  %v2125 = vpop.f32.mrf.mxu0
  %2126 = vmatprep.mubr.bf16.mxu0 0
  %2127 = vmatmul.mubr.bf16.gmra.mxu0 %v2056
  %v2128 = vpop.f32.mrf.mxu0
  %v2129 = vadd.f32 %v2021, %v2128
  %v2130 = vpop.f32.mrf.mxu0
  %v2131 = vpop.f32.mrf.mxu0
  %v2132 = vadd.f32 %v2021, %v2131
  %v2133 = vpop.f32.mrf.mxu0
  %2134 = vmatprep.mubr.bf16.mxu0 0
  %2135 = vmatmul.mubr.bf16.gmra.mxu0 %v2059
  %v2136 = vpop.f32.mrf.mxu0
  %v2137 = vadd.f32 %v2021, %v2136
  %v2138 = vpop.f32.mrf.mxu0
  %v2139 = vpop.f32.mrf.mxu0
  %v2140 = vadd.f32 %v2021, %v2139
  %v2141 = vpop.f32.mrf.mxu0
  %2142 = vmatprep.mubr.bf16.mxu0 0
  %2143 = vmatmul.mubr.bf16.gmra.mxu0 %v2062
  %v2144 = vpop.f32.mrf.mxu0
  %v2145 = vadd.f32 %v2021, %v2144
  %v2146 = vpop.f32.mrf.mxu0
  %v2147 = vpop.f32.mrf.mxu0
  %v2148 = vadd.f32 %v2021, %v2147
  %v2149 = vpop.f32.mrf.mxu0
  %2150 = vmatprep.mubr.bf16.mxu0 0
  %2151 = vmatmul.mubr.bf16.gmra.mxu0 %v2065
  %v2152 = vpop.f32.mrf.mxu0
  %v2153 = vadd.f32 %v2021, %v2152
  %v2154 = vpop.f32.mrf.mxu0
  %v2155 = vpop.f32.mrf.mxu0
  %v2156 = vadd.f32 %v2021, %v2155
  %v2157 = vpop.f32.mrf.mxu0
  %2158 = vmatprep.mubr.bf16.mxu0 0
  %2159 = vmatmul.mubr.bf16.gmra.mxu0 %v2068
  %v2160 = vpop.f32.mrf.mxu0
  %v2161 = vadd.f32 %v2021, %v2160
  %v2162 = vpop.f32.mrf.mxu0
  %v2163 = vpop.f32.mrf.mxu0
  %v2164 = vadd.f32 %v2021, %v2163
  %v2165 = vpop.f32.mrf.mxu0
  %2166 = vdwg.mxu0
  %v2167 = vlaneseq
  %v2168 = vshrl.u32 %v2167, 7
  %v2169 = vsub.s32 0, %v2168
  %v2170 = vrot.slane %v49, %v2169
  %v2179 = vunpack.c.l.b16 %v97
  %v2180 = vunpack.c.l.b16 %v98
  %v2181 = vunpack.c.l.b16 %v99
  %v2182 = vunpack.c.l.b16 %v100
  %v2183 = vunpack.c.l.b16 %v101
  %v2184 = vunpack.c.l.b16 %v102
  %v2185 = vunpack.c.l.b16 %v103
  %v2186 = vunpack.c.l.b16 %v104
  %v2187 = vpack.c.b16 %v2180, %v2179
  %v2188 = vpack.c.b16 %v2182, %v2181
  %v2189 = vpack.c.b16 %v2184, %v2183
  %v2190 = vpack.c.b16 %v2186, %v2185
  %2195 = vmatprep.subr.bf16.mxu0 0
  %2196 = vmatpush1.bf16.msra.mxu0 0
  %2197 = vmatprep.subr.bf16.mxu0 0
  %2198 = vmatpush1.bf16.msra.mxu0 0
  %2199 = vmatprep.subr.bf16.mxu0 0
  %2200 = vmatpush1.bf16.msra.mxu0 0
  %2201 = vmatprep.subr.bf16.mxu0 0
  %2202 = vmatpush1.bf16.msra.mxu0 0
  %2203 = vmatprep.subr.bf16.mxu0 0
  %2204 = vmatpush1.bf16.msra.mxu0 %v2190
  %2205 = vmatprep.subr.bf16.mxu0 0
  %2206 = vmatpush1.bf16.msra.mxu0 %v2189
  %2207 = vmatprep.subr.bf16.mxu0 0
  %2208 = vmatpush1.bf16.msra.mxu0 %v2188
  %2209 = vmatprep.subr.bf16.mxu0 0
  %2210 = vmatpush1.bf16.msra.mxu0 %v2187
  %2211 = vmatprep.subr.bf16.mxu0 0
  %2212 = vmatpush2.bf16.msra.mxu0 0
  %2213 = vmatprep.subr.bf16.mxu0 0
  %2214 = vmatpush2.bf16.msra.mxu0 0
  %2215 = vmatprep.subr.bf16.mxu0 0
  %2216 = vmatpush2.bf16.msra.mxu0 0
  %2217 = vmatprep.subr.bf16.mxu0 0
  %2218 = vmatpush2.bf16.msra.mxu0 0
  %2219 = vmatprep.subr.bf16.mxu0 0
  %2220 = vmatpush2.bf16.msra.mxu0 0
  %2221 = vmatprep.subr.bf16.mxu0 0
  %2222 = vmatpush2.bf16.msra.mxu0 0
  %2223 = vmatprep.subr.bf16.mxu0 0
  %2224 = vmatpush2.bf16.msra.mxu0 0
  %2225 = vmatprep.subr.bf16.mxu0 0
  %2226 = vmatpush2.bf16.msra.mxu0 0
  %2227 = vmatprep.mubr.bf16.mxu0 0
  %2228 = vmatmul.mubr.bf16.gmra.mxu0 %v2047
  %v2229 = vpop.f32.mrf.mxu0
  %v2230 = vadd.f32 %v2170, %v2229
  %v2231 = vpop.f32.mrf.mxu0
  %v2232 = vpop.f32.mrf.mxu0
  %v2233 = vadd.f32 %v2170, %v2232
  %v2234 = vpop.f32.mrf.mxu0
  %2235 = vmatprep.mubr.bf16.mxu0 0
  %2236 = vmatmul.mubr.bf16.gmra.mxu0 %v2050
  %v2237 = vpop.f32.mrf.mxu0
  %v2238 = vadd.f32 %v2170, %v2237
  %v2239 = vpop.f32.mrf.mxu0
  %v2240 = vpop.f32.mrf.mxu0
  %v2241 = vadd.f32 %v2170, %v2240
  %v2242 = vpop.f32.mrf.mxu0
  %2243 = vmatprep.mubr.bf16.mxu0 0
  %2244 = vmatmul.mubr.bf16.gmra.mxu0 %v2053
  %v2245 = vpop.f32.mrf.mxu0
  %v2246 = vadd.f32 %v2170, %v2245
  %v2247 = vpop.f32.mrf.mxu0
  %v2248 = vpop.f32.mrf.mxu0
  %v2249 = vadd.f32 %v2170, %v2248
  %v2250 = vpop.f32.mrf.mxu0
  %2251 = vmatprep.mubr.bf16.mxu0 0
  %2252 = vmatmul.mubr.bf16.gmra.mxu0 %v2056
  %v2253 = vpop.f32.mrf.mxu0
  %v2254 = vadd.f32 %v2170, %v2253
  %v2255 = vpop.f32.mrf.mxu0
  %v2256 = vpop.f32.mrf.mxu0
  %v2257 = vadd.f32 %v2170, %v2256
  %v2258 = vpop.f32.mrf.mxu0
  %2259 = vmatprep.mubr.bf16.mxu0 0
  %2260 = vmatmul.mubr.bf16.gmra.mxu0 %v2059
  %v2261 = vpop.f32.mrf.mxu0
  %v2262 = vadd.f32 %v2170, %v2261
  %v2263 = vpop.f32.mrf.mxu0
  %v2264 = vpop.f32.mrf.mxu0
  %v2265 = vadd.f32 %v2170, %v2264
  %v2266 = vpop.f32.mrf.mxu0
  %2267 = vmatprep.mubr.bf16.mxu0 0
  %2268 = vmatmul.mubr.bf16.gmra.mxu0 %v2062
  %v2269 = vpop.f32.mrf.mxu0
  %v2270 = vadd.f32 %v2170, %v2269
  %v2271 = vpop.f32.mrf.mxu0
  %v2272 = vpop.f32.mrf.mxu0
  %v2273 = vadd.f32 %v2170, %v2272
  %v2274 = vpop.f32.mrf.mxu0
  %2275 = vmatprep.mubr.bf16.mxu0 0
  %2276 = vmatmul.mubr.bf16.gmra.mxu0 %v2065
  %v2277 = vpop.f32.mrf.mxu0
  %v2278 = vadd.f32 %v2170, %v2277
  %v2279 = vpop.f32.mrf.mxu0
  %v2280 = vpop.f32.mrf.mxu0
  %v2281 = vadd.f32 %v2170, %v2280
  %v2282 = vpop.f32.mrf.mxu0
  %2283 = vmatprep.mubr.bf16.mxu0 0
  %2284 = vmatmul.mubr.bf16.gmra.mxu0 %v2068
  %v2285 = vpop.f32.mrf.mxu0
  %v2286 = vadd.f32 %v2170, %v2285
  %v2287 = vpop.f32.mrf.mxu0
  %v2288 = vpop.f32.mrf.mxu0
  %v2289 = vadd.f32 %v2170, %v2288
  %v2290 = vpop.f32.mrf.mxu0
  %2291 = vdwg.mxu0
  %v2292 = vld [vmem:[%s2] sm:$0x1]
  %s2293 = scalar_lea.vmem %s2, 1
  %v2294 = vld [vmem:[%s2293] sm:$0x1]
  %v2295 = vmul.f32 %v2105, %v54
  %v2296 = vmul.f32 %v2108, %v54
  %v2297 = vmul.f32 %v2113, %v54
  %v2298 = vmul.f32 %v2116, %v54
  %v2299 = vmul.f32 %v2121, %v54
  %v2300 = vmul.f32 %v2124, %v54
  %v2301 = vmul.f32 %v2129, %v54
  %v2302 = vmul.f32 %v2132, %v54
  %v2303 = vmul.f32 %v2137, %v54
  %v2304 = vmul.f32 %v2140, %v54
  %v2305 = vmul.f32 %v2145, %v54
  %v2306 = vmul.f32 %v2148, %v54
  %v2307 = vmul.f32 %v2153, %v54
  %v2308 = vmul.f32 %v2156, %v54
  %v2309 = vmul.f32 %v2161, %v54
  %v2310 = vmul.f32 %v2164, %v54
  %v2311 = vpack.c.bf16 %v2296, %v2295
  %v2312 = vpack.c.bf16 %v2298, %v2297
  %v2313 = vpack.c.bf16 %v2300, %v2299
  %v2314 = vpack.c.bf16 %v2302, %v2301
  %v2315 = vpack.c.bf16 %v2304, %v2303
  %v2316 = vpack.c.bf16 %v2306, %v2305
  %v2317 = vpack.c.bf16 %v2308, %v2307
  %v2318 = vpack.c.bf16 %v2310, %v2309
  %v2319 = vmul.f32 %v2105, %v55
  %v2320 = vmul.f32 %v2108, %v55
  %v2321 = vmul.f32 %v2113, %v55
  %v2322 = vmul.f32 %v2116, %v55
  %v2323 = vmul.f32 %v2121, %v55
  %v2324 = vmul.f32 %v2124, %v55
  %v2325 = vmul.f32 %v2129, %v55
  %v2326 = vmul.f32 %v2132, %v55
  %v2327 = vmul.f32 %v2137, %v55
  %v2328 = vmul.f32 %v2140, %v55
  %v2329 = vmul.f32 %v2145, %v55
  %v2330 = vmul.f32 %v2148, %v55
  %v2331 = vmul.f32 %v2153, %v55
  %v2332 = vmul.f32 %v2156, %v55
  %v2333 = vmul.f32 %v2161, %v55
  %v2334 = vmul.f32 %v2164, %v55
  %v2335 = vpack.c.bf16 %v2320, %v2319
  %v2336 = vpack.c.bf16 %v2322, %v2321
  %v2337 = vpack.c.bf16 %v2324, %v2323
  %v2338 = vpack.c.bf16 %v2326, %v2325
  %v2339 = vpack.c.bf16 %v2328, %v2327
  %v2340 = vpack.c.bf16 %v2330, %v2329
  %v2341 = vpack.c.bf16 %v2332, %v2331
  %v2342 = vpack.c.bf16 %v2334, %v2333
  %v2343 = vmul.f32 %v2230, %v54
  %v2344 = vmul.f32 %v2233, %v54
  %v2345 = vmul.f32 %v2238, %v54
  %v2346 = vmul.f32 %v2241, %v54
  %v2347 = vmul.f32 %v2246, %v54
  %v2348 = vmul.f32 %v2249, %v54
  %v2349 = vmul.f32 %v2254, %v54
  %v2350 = vmul.f32 %v2257, %v54
  %v2351 = vmul.f32 %v2262, %v54
  %v2352 = vmul.f32 %v2265, %v54
  %v2353 = vmul.f32 %v2270, %v54
  %v2354 = vmul.f32 %v2273, %v54
  %v2355 = vmul.f32 %v2278, %v54
  %v2356 = vmul.f32 %v2281, %v54
  %v2357 = vmul.f32 %v2286, %v54
  %v2358 = vmul.f32 %v2289, %v54
  %v2359 = vpack.c.bf16 %v2344, %v2343
  %v2360 = vpack.c.bf16 %v2346, %v2345
  %v2361 = vpack.c.bf16 %v2348, %v2347
  %v2362 = vpack.c.bf16 %v2350, %v2349
  %v2363 = vpack.c.bf16 %v2352, %v2351
  %v2364 = vpack.c.bf16 %v2354, %v2353
  %v2365 = vpack.c.bf16 %v2356, %v2355
  %v2366 = vpack.c.bf16 %v2358, %v2357
  %v2367 = vmul.f32 %v2230, %v55
  %v2368 = vmul.f32 %v2233, %v55
  %v2369 = vmul.f32 %v2238, %v55
  %v2370 = vmul.f32 %v2241, %v55
  %v2371 = vmul.f32 %v2246, %v55
  %v2372 = vmul.f32 %v2249, %v55
  %v2373 = vmul.f32 %v2254, %v55
  %v2374 = vmul.f32 %v2257, %v55
  %v2375 = vmul.f32 %v2262, %v55
  %v2376 = vmul.f32 %v2265, %v55
  %v2377 = vmul.f32 %v2270, %v55
  %v2378 = vmul.f32 %v2273, %v55
  %v2379 = vmul.f32 %v2278, %v55
  %v2380 = vmul.f32 %v2281, %v55
  %v2381 = vmul.f32 %v2286, %v55
  %v2382 = vmul.f32 %v2289, %v55
  %v2383 = vpack.c.bf16 %v2368, %v2367
  %v2384 = vpack.c.bf16 %v2370, %v2369
  %v2385 = vpack.c.bf16 %v2372, %v2371
  %v2386 = vpack.c.bf16 %v2374, %v2373
  %v2387 = vpack.c.bf16 %v2376, %v2375
  %v2388 = vpack.c.bf16 %v2378, %v2377
  %v2389 = vpack.c.bf16 %v2380, %v2379
  %v2390 = vpack.c.bf16 %v2382, %v2381
  %v2391 = vmul.f32 %v1948, 0.17677669
  %v2392 = vmul.f32 %v1951, 0.17677669
  %v2393 = vmul.f32 %v1956, 0.17677669
  %v2394 = vmul.f32 %v1959, 0.17677669
  %v2395 = vmul.f32 %v1964, 0.17677669
  %v2396 = vmul.f32 %v1967, 0.17677669
  %v2397 = vmul.f32 %v1972, 0.17677669
  %v2398 = vmul.f32 %v1975, 0.17677669
  %v2399 = vmul.f32 %v1980, 0.17677669
  %v2400 = vmul.f32 %v1983, 0.17677669
  %v2401 = vmul.f32 %v1988, 0.17677669
  %v2402 = vmul.f32 %v1991, 0.17677669
  %v2403 = vmul.f32 %v1996, 0.17677669
  %v2404 = vmul.f32 %v1999, 0.17677669
  %v2405 = vmul.f32 %v2004, 0.17677669
  %v2406 = vmul.f32 %v2007, 0.17677669
  %v2407 = vpack.c.bf16 %v2392, %v2391
  %v2408 = vpack.c.bf16 %v2394, %v2393
  %v2409 = vpack.c.bf16 %v2396, %v2395
  %v2410 = vpack.c.bf16 %v2398, %v2397
  %v2411 = vpack.c.bf16 %v2400, %v2399
  %v2412 = vpack.c.bf16 %v2402, %v2401
  %v2413 = vpack.c.bf16 %v2404, %v2403
  %v2414 = vpack.c.bf16 %v2406, %v2405
  %v2416 = vlaneseq
  %v2417 = vshrl.u32 %v2416, 7
  %v2418 = vsub.s32 0, %v2417
  %v2419 = vrot.slane %v2292, %v2418
  %v2422 = vsel %vm150, %v2407, 0
  %v2425 = vsel %vm150, %v2408, 0
  %v2428 = vsel %vm150, %v2409, 0
  %v2431 = vsel %vm150, %v2410, 0
  %v2434 = vsel %vm150, %v2311, 0
  %v2437 = vsel %vm150, %v2312, 0
  %v2440 = vsel %vm150, %v2313, 0
  %v2443 = vsel %vm150, %v2314, 0
  %v2446 = vsel %vm150, %v2335, 0
  %v2449 = vsel %vm150, %v2336, 0
  %v2452 = vsel %vm150, %v2337, 0
  %v2455 = vsel %vm150, %v2338, 0
  %2457 = vmatprep.subr.bf16.mxu0 0
  %2458 = vmatpush1.bf16.xpose.msra.mxu0 %v2455
  %2459 = vmatprep.subr.bf16.mxu0 0
  %2460 = vmatpush1.bf16.xpose.msra.mxu0 %v2452
  %2461 = vmatprep.subr.bf16.mxu0 0
  %2462 = vmatpush1.bf16.xpose.msra.mxu0 %v2449
  %2463 = vmatprep.subr.bf16.mxu0 0
  %2464 = vmatpush1.bf16.xpose.msra.mxu0 %v2446
  %2465 = vmatprep.subr.bf16.mxu0 0
  %2466 = vmatpush1.bf16.xpose.msra.mxu0 %v2443
  %2467 = vmatprep.subr.bf16.mxu0 0
  %2468 = vmatpush1.bf16.xpose.msra.mxu0 %v2440
  %2469 = vmatprep.subr.bf16.mxu0 0
  %2470 = vmatpush1.bf16.xpose.msra.mxu0 %v2437
  %2471 = vmatprep.subr.bf16.mxu0 0
  %2472 = vmatpush1.bf16.xpose.msra.mxu0 %v2434
  %2473 = vmatprep.subr.bf16.mxu0 0
  %2474 = vmatpush2.bf16.xpose.msra.mxu0 0
  %2475 = vmatprep.subr.bf16.mxu0 0
  %2476 = vmatpush2.bf16.xpose.msra.mxu0 0
  %2477 = vmatprep.subr.bf16.mxu0 0
  %2478 = vmatpush2.bf16.xpose.msra.mxu0 0
  %2479 = vmatprep.subr.bf16.mxu0 0
  %2480 = vmatpush2.bf16.xpose.msra.mxu0 0
  %2481 = vmatprep.subr.bf16.mxu0 0
  %2482 = vmatpush2.bf16.xpose.msra.mxu0 0
  %2483 = vmatprep.subr.bf16.mxu0 0
  %2484 = vmatpush2.bf16.xpose.msra.mxu0 0
  %2485 = vmatprep.subr.bf16.mxu0 0
  %2486 = vmatpush2.bf16.xpose.msra.mxu0 0
  %2487 = vmatprep.subr.bf16.mxu0 0
  %2488 = vmatpush2.bf16.xpose.msra.mxu0 0
  %2489 = vmatprep.mubr.bf16.mxu0 0
  %2490 = vmatmul.mubr.bf16.gmra.mxu0 %v2422
  %v2491 = vpop.f32.mrf.mxu0
  %v2492 = vadd.f32 %v2419, %v2491
  %v2493 = vpop.f32.mrf.mxu0
  %v2494 = vpop.f32.mrf.mxu0
  %v2495 = vadd.f32 %v2419, %v2494
  %v2496 = vpop.f32.mrf.mxu0
  %2497 = vmatprep.mubr.bf16.mxu0 0
  %2498 = vmatmul.mubr.bf16.gmra.mxu0 %v2425
  %v2499 = vpop.f32.mrf.mxu0
  %v2500 = vadd.f32 %v2419, %v2499
  %v2501 = vpop.f32.mrf.mxu0
  %v2502 = vpop.f32.mrf.mxu0
  %v2503 = vadd.f32 %v2419, %v2502
  %v2504 = vpop.f32.mrf.mxu0
  %2505 = vmatprep.mubr.bf16.mxu0 0
  %2506 = vmatmul.mubr.bf16.gmra.mxu0 %v2428
  %v2507 = vpop.f32.mrf.mxu0
  %v2508 = vadd.f32 %v2419, %v2507
  %v2509 = vpop.f32.mrf.mxu0
  %v2510 = vpop.f32.mrf.mxu0
  %v2511 = vadd.f32 %v2419, %v2510
  %v2512 = vpop.f32.mrf.mxu0
  %2513 = vmatprep.mubr.bf16.mxu0 0
  %2514 = vmatmul.mubr.bf16.gmra.mxu0 %v2431
  %v2515 = vpop.f32.mrf.mxu0
  %v2516 = vadd.f32 %v2419, %v2515
  %v2517 = vpop.f32.mrf.mxu0
  %v2518 = vpop.f32.mrf.mxu0
  %v2519 = vadd.f32 %v2419, %v2518
  %v2520 = vpop.f32.mrf.mxu0
  %2521 = vdwg.mxu0
  %v2522 = vsel %vm761, %v2492, -1e+30
  %v2523 = vsel %vm761, %v2495, -1e+30
  %v2524 = vsel %vm761, %v2500, -1e+30
  %v2525 = vsel %vm761, %v2503, -1e+30
  %v2526 = vsel %vm761, %v2508, -1e+30
  %v2527 = vsel %vm761, %v2511, -1e+30
  %v2528 = vsel %vm761, %v2516, -1e+30
  %v2529 = vsel %vm761, %v2519, -1e+30
  %2530 = vmax.xlane.f32.xlu0 %v2522
  %v2531 = vpop.xlane.xlu0 %2530
  %2532 = vmax.xlane.f32.xlu0 %v2523
  %v2533 = vpop.xlane.xlu0 %2532
  %2534 = vmax.xlane.f32.xlu0 %v2524
  %v2535 = vpop.xlane.xlu0 %2534
  %2536 = vmax.xlane.f32.xlu0 %v2525
  %v2537 = vpop.xlane.xlu0 %2536
  %2538 = vmax.xlane.f32.xlu0 %v2526
  %v2539 = vpop.xlane.xlu0 %2538
  %2540 = vmax.xlane.f32.xlu0 %v2527
  %v2541 = vpop.xlane.xlu0 %2540
  %2542 = vmax.xlane.f32.xlu0 %v2528
  %v2543 = vpop.xlane.xlu0 %2542
  %2544 = vmax.xlane.f32.xlu0 %v2529
  %v2545 = vpop.xlane.xlu0 %2544
  %v2546 = vsel %vm761, -1e+30, %v2492
  %v2547 = vsel %vm761, -1e+30, %v2495
  %v2548 = vsel %vm761, -1e+30, %v2500
  %v2549 = vsel %vm761, -1e+30, %v2503
  %v2550 = vsel %vm761, -1e+30, %v2508
  %v2551 = vsel %vm761, -1e+30, %v2511
  %v2552 = vsel %vm761, -1e+30, %v2516
  %v2553 = vsel %vm761, -1e+30, %v2519
  %2554 = vmax.xlane.f32.xlu0 %v2546
  %v2555 = vpop.xlane.xlu0 %2554
  %2556 = vmax.xlane.f32.xlu0 %v2547
  %v2557 = vpop.xlane.xlu0 %2556
  %2558 = vmax.xlane.f32.xlu0 %v2548
  %v2559 = vpop.xlane.xlu0 %2558
  %2560 = vmax.xlane.f32.xlu0 %v2549
  %v2561 = vpop.xlane.xlu0 %2560
  %2562 = vmax.xlane.f32.xlu0 %v2550
  %v2563 = vpop.xlane.xlu0 %2562
  %2564 = vmax.xlane.f32.xlu0 %v2551
  %v2565 = vpop.xlane.xlu0 %2564
  %2566 = vmax.xlane.f32.xlu0 %v2552
  %v2567 = vpop.xlane.xlu0 %2566
  %2568 = vmax.xlane.f32.xlu0 %v2553
  %v2569 = vpop.xlane.xlu0 %2568
  %v2570 = vsel %vm761, %v2531, %v2555
  %v2571 = vsel %vm761, %v2533, %v2557
  %v2572 = vsel %vm761, %v2535, %v2559
  %v2573 = vsel %vm761, %v2537, %v2561
  %v2574 = vsel %vm761, %v2539, %v2563
  %v2575 = vsel %vm761, %v2541, %v2565
  %v2576 = vsel %vm761, %v2543, %v2567
  %v2577 = vsel %vm761, %v2545, %v2569
  %v2578 = vsub.f32 %v2492, %v2570
  %v2579 = vsub.f32 %v2495, %v2571
  %v2580 = vsub.f32 %v2500, %v2572
  %v2581 = vsub.f32 %v2503, %v2573
  %v2582 = vsub.f32 %v2508, %v2574
  %v2583 = vsub.f32 %v2511, %v2575
  %v2584 = vsub.f32 %v2516, %v2576
  %v2585 = vsub.f32 %v2519, %v2577
  %v2586 = vmul.f32 %v2578, 1.442695
  %v2587 = vpow.pop %v2586
  %v2588 = vmul.f32 %v2579, 1.442695
  %v2589 = vpow.pop %v2588
  %v2590 = vmul.f32 %v2580, 1.442695
  %v2591 = vpow.pop %v2590
  %v2592 = vmul.f32 %v2581, 1.442695
  %v2593 = vpow.pop %v2592
  %v2594 = vmul.f32 %v2582, 1.442695
  %v2595 = vpow.pop %v2594
  %v2596 = vmul.f32 %v2583, 1.442695
  %v2597 = vpow.pop %v2596
  %v2598 = vmul.f32 %v2584, 1.442695
  %v2599 = vpow.pop %v2598
  %v2600 = vmul.f32 %v2585, 1.442695
  %v2601 = vpow.pop %v2600
  %v2602 = vsel %vm761, %v2587, 0.0
  %v2603 = vsel %vm761, %v2589, 0.0
  %v2604 = vsel %vm761, %v2591, 0.0
  %v2605 = vsel %vm761, %v2593, 0.0
  %v2606 = vsel %vm761, %v2595, 0.0
  %v2607 = vsel %vm761, %v2597, 0.0
  %v2608 = vsel %vm761, %v2599, 0.0
  %v2609 = vsel %vm761, %v2601, 0.0
  %2610 = vadd.xlane.f32.xlu0 %v2602
  %v2611 = vpop.xlane.xlu0 %2610
  %2612 = vadd.xlane.f32.xlu0 %v2603
  %v2613 = vpop.xlane.xlu0 %2612
  %2614 = vadd.xlane.f32.xlu0 %v2604
  %v2615 = vpop.xlane.xlu0 %2614
  %2616 = vadd.xlane.f32.xlu0 %v2605
  %v2617 = vpop.xlane.xlu0 %2616
  %2618 = vadd.xlane.f32.xlu0 %v2606
  %v2619 = vpop.xlane.xlu0 %2618
  %2620 = vadd.xlane.f32.xlu0 %v2607
  %v2621 = vpop.xlane.xlu0 %2620
  %2622 = vadd.xlane.f32.xlu0 %v2608
  %v2623 = vpop.xlane.xlu0 %2622
  %2624 = vadd.xlane.f32.xlu0 %v2609
  %v2625 = vpop.xlane.xlu0 %2624
  %v2626 = vsel %vm761, 0.0, %v2587
  %v2627 = vsel %vm761, 0.0, %v2589
  %v2628 = vsel %vm761, 0.0, %v2591
  %v2629 = vsel %vm761, 0.0, %v2593
  %v2630 = vsel %vm761, 0.0, %v2595
  %v2631 = vsel %vm761, 0.0, %v2597
  %v2632 = vsel %vm761, 0.0, %v2599
  %v2633 = vsel %vm761, 0.0, %v2601
  %2634 = vadd.xlane.f32.xlu0 %v2626
  %v2635 = vpop.xlane.xlu0 %2634
  %2636 = vadd.xlane.f32.xlu0 %v2627
  %v2637 = vpop.xlane.xlu0 %2636
  %2638 = vadd.xlane.f32.xlu0 %v2628
  %v2639 = vpop.xlane.xlu0 %2638
  %2640 = vadd.xlane.f32.xlu0 %v2629
  %v2641 = vpop.xlane.xlu0 %2640
  %2642 = vadd.xlane.f32.xlu0 %v2630
  %v2643 = vpop.xlane.xlu0 %2642
  %2644 = vadd.xlane.f32.xlu0 %v2631
  %v2645 = vpop.xlane.xlu0 %2644
  %2646 = vadd.xlane.f32.xlu0 %v2632
  %v2647 = vpop.xlane.xlu0 %2646
  %2648 = vadd.xlane.f32.xlu0 %v2633
  %v2649 = vpop.xlane.xlu0 %2648
  %v2650 = vrcp.pop %v2611
  %v2651 = vrcp.pop %v2613
  %v2652 = vrcp.pop %v2615
  %v2653 = vrcp.pop %v2617
  %v2654 = vrcp.pop %v2619
  %v2655 = vrcp.pop %v2621
  %v2656 = vrcp.pop %v2623
  %v2657 = vrcp.pop %v2625
  %v2658 = vrcp.pop %v2635
  %v2659 = vrcp.pop %v2637
  %v2660 = vrcp.pop %v2639
  %v2661 = vrcp.pop %v2641
  %v2662 = vrcp.pop %v2643
  %v2663 = vrcp.pop %v2645
  %v2664 = vrcp.pop %v2647
  %v2665 = vrcp.pop %v2649
  %v2666 = vsel %vm761, %v2650, %v2658
  %v2667 = vsel %vm761, %v2651, %v2659
  %v2668 = vsel %vm761, %v2652, %v2660
  %v2669 = vsel %vm761, %v2653, %v2661
  %v2670 = vsel %vm761, %v2654, %v2662
  %v2671 = vsel %vm761, %v2655, %v2663
  %v2672 = vsel %vm761, %v2656, %v2664
  %v2673 = vsel %vm761, %v2657, %v2665
  %v2674 = vmul.f32 %v2587, %v2666
  %v2675 = vmul.f32 %v2589, %v2667
  %v2676 = vmul.f32 %v2591, %v2668
  %v2677 = vmul.f32 %v2593, %v2669
  %v2678 = vmul.f32 %v2595, %v2670
  %v2679 = vmul.f32 %v2597, %v2671
  %v2680 = vmul.f32 %v2599, %v2672
  %v2681 = vmul.f32 %v2601, %v2673
  %v2682 = vpack.c.bf16 %v2675, %v2674
  %v2683 = vpack.c.bf16 %v2677, %v2676
  %v2684 = vpack.c.bf16 %v2679, %v2678
  %v2685 = vpack.c.bf16 %v2681, %v2680
  %2686 = vmatprep.subr.bf16.mxu0 0
  %2687 = vmatpush1.bf16.msra.mxu0 %v2386
  %2688 = vmatprep.subr.bf16.mxu0 0
  %2689 = vmatpush1.bf16.msra.mxu0 %v2385
  %2690 = vmatprep.subr.bf16.mxu0 0
  %2691 = vmatpush1.bf16.msra.mxu0 %v2384
  %2692 = vmatprep.subr.bf16.mxu0 0
  %2693 = vmatpush1.bf16.msra.mxu0 %v2383
  %2694 = vmatprep.subr.bf16.mxu0 0
  %2695 = vmatpush1.bf16.msra.mxu0 %v2362
  %2696 = vmatprep.subr.bf16.mxu0 0
  %2697 = vmatpush1.bf16.msra.mxu0 %v2361
  %2698 = vmatprep.subr.bf16.mxu0 0
  %2699 = vmatpush1.bf16.msra.mxu0 %v2360
  %2700 = vmatprep.subr.bf16.mxu0 0
  %2701 = vmatpush1.bf16.msra.mxu0 %v2359
  %2702 = vmatprep.subr.bf16.mxu0 0
  %2703 = vmatpush2.bf16.msra.mxu0 0
  %2704 = vmatprep.subr.bf16.mxu0 0
  %2705 = vmatpush2.bf16.msra.mxu0 0
  %2706 = vmatprep.subr.bf16.mxu0 0
  %2707 = vmatpush2.bf16.msra.mxu0 0
  %2708 = vmatprep.subr.bf16.mxu0 0
  %2709 = vmatpush2.bf16.msra.mxu0 0
  %2710 = vmatprep.subr.bf16.mxu0 0
  %2711 = vmatpush2.bf16.msra.mxu0 0
  %2712 = vmatprep.subr.bf16.mxu0 0
  %2713 = vmatpush2.bf16.msra.mxu0 0
  %2714 = vmatprep.subr.bf16.mxu0 0
  %2715 = vmatpush2.bf16.msra.mxu0 0
  %2716 = vmatprep.subr.bf16.mxu0 0
  %2717 = vmatpush2.bf16.msra.mxu0 0
  %2718 = vmatprep.mubr.bf16.mxu0 0
  %2719 = vmatmul.mubr.bf16.gmra.mxu0 %v2682
  %v2720 = vpop.f32.mrf.mxu0
  %v2721 = vadd.f32 0.0, %v2720
  %v2722 = vpop.f32.mrf.mxu0
  %v2723 = vpop.f32.mrf.mxu0
  %v2724 = vadd.f32 0.0, %v2723
  %v2725 = vpop.f32.mrf.mxu0
  %2726 = vmatprep.mubr.bf16.mxu0 0
  %2727 = vmatmul.mubr.bf16.gmra.mxu0 %v2683
  %v2728 = vpop.f32.mrf.mxu0
  %v2729 = vadd.f32 0.0, %v2728
  %v2730 = vpop.f32.mrf.mxu0
  %v2731 = vpop.f32.mrf.mxu0
  %v2732 = vadd.f32 0.0, %v2731
  %v2733 = vpop.f32.mrf.mxu0
  %2734 = vmatprep.mubr.bf16.mxu0 0
  %2735 = vmatmul.mubr.bf16.gmra.mxu0 %v2684
  %v2736 = vpop.f32.mrf.mxu0
  %v2737 = vadd.f32 0.0, %v2736
  %v2738 = vpop.f32.mrf.mxu0
  %v2739 = vpop.f32.mrf.mxu0
  %v2740 = vadd.f32 0.0, %v2739
  %v2741 = vpop.f32.mrf.mxu0
  %2742 = vmatprep.mubr.bf16.mxu0 0
  %2743 = vmatmul.mubr.bf16.gmra.mxu0 %v2685
  %v2744 = vpop.f32.mrf.mxu0
  %v2745 = vadd.f32 0.0, %v2744
  %v2746 = vpop.f32.mrf.mxu0
  %v2747 = vpop.f32.mrf.mxu0
  %v2748 = vadd.f32 0.0, %v2747
  %v2749 = vpop.f32.mrf.mxu0
  %2750 = vdwg.mxu0
  %v2752 = vlaneseq
  %v2753 = vshrl.u32 %v2752, 7
  %v2754 = vsub.s32 0, %v2753
  %v2755 = vrot.slane %v2294, %v2754
  %v2758 = vsel %vm150, %v2411, 0
  %v2761 = vsel %vm150, %v2412, 0
  %v2764 = vsel %vm150, %v2413, 0
  %v2767 = vsel %vm150, %v2414, 0
  %v2770 = vsel %vm150, %v2315, 0
  %v2773 = vsel %vm150, %v2316, 0
  %v2776 = vsel %vm150, %v2317, 0
  %v2779 = vsel %vm150, %v2318, 0
  %v2782 = vsel %vm150, %v2339, 0
  %v2785 = vsel %vm150, %v2340, 0
  %v2788 = vsel %vm150, %v2341, 0
  %v2791 = vsel %vm150, %v2342, 0
  %2793 = vmatprep.subr.bf16.mxu0 0
  %2794 = vmatpush1.bf16.xpose.msra.mxu0 %v2791
  %2795 = vmatprep.subr.bf16.mxu0 0
  %2796 = vmatpush1.bf16.xpose.msra.mxu0 %v2788
  %2797 = vmatprep.subr.bf16.mxu0 0
  %2798 = vmatpush1.bf16.xpose.msra.mxu0 %v2785
  %2799 = vmatprep.subr.bf16.mxu0 0
  %2800 = vmatpush1.bf16.xpose.msra.mxu0 %v2782
  %2801 = vmatprep.subr.bf16.mxu0 0
  %2802 = vmatpush1.bf16.xpose.msra.mxu0 %v2779
  %2803 = vmatprep.subr.bf16.mxu0 0
  %2804 = vmatpush1.bf16.xpose.msra.mxu0 %v2776
  %2805 = vmatprep.subr.bf16.mxu0 0
  %2806 = vmatpush1.bf16.xpose.msra.mxu0 %v2773
  %2807 = vmatprep.subr.bf16.mxu0 0
  %2808 = vmatpush1.bf16.xpose.msra.mxu0 %v2770
  %2809 = vmatprep.subr.bf16.mxu0 0
  %2810 = vmatpush2.bf16.xpose.msra.mxu0 0
  %2811 = vmatprep.subr.bf16.mxu0 0
  %2812 = vmatpush2.bf16.xpose.msra.mxu0 0
  %2813 = vmatprep.subr.bf16.mxu0 0
  %2814 = vmatpush2.bf16.xpose.msra.mxu0 0
  %2815 = vmatprep.subr.bf16.mxu0 0
  %2816 = vmatpush2.bf16.xpose.msra.mxu0 0
  %2817 = vmatprep.subr.bf16.mxu0 0
  %2818 = vmatpush2.bf16.xpose.msra.mxu0 0
  %2819 = vmatprep.subr.bf16.mxu0 0
  %2820 = vmatpush2.bf16.xpose.msra.mxu0 0
  %2821 = vmatprep.subr.bf16.mxu0 0
  %2822 = vmatpush2.bf16.xpose.msra.mxu0 0
  %2823 = vmatprep.subr.bf16.mxu0 0
  %2824 = vmatpush2.bf16.xpose.msra.mxu0 0
  %2825 = vmatprep.mubr.bf16.mxu0 0
  %2826 = vmatmul.mubr.bf16.gmra.mxu0 %v2758
  %v2827 = vpop.f32.mrf.mxu0
  %v2828 = vadd.f32 %v2755, %v2827
  %v2829 = vpop.f32.mrf.mxu0
  %v2830 = vpop.f32.mrf.mxu0
  %v2831 = vadd.f32 %v2755, %v2830
  %v2832 = vpop.f32.mrf.mxu0
  %2833 = vmatprep.mubr.bf16.mxu0 0
  %2834 = vmatmul.mubr.bf16.gmra.mxu0 %v2761
  %v2835 = vpop.f32.mrf.mxu0
  %v2836 = vadd.f32 %v2755, %v2835
  %v2837 = vpop.f32.mrf.mxu0
  %v2838 = vpop.f32.mrf.mxu0
  %v2839 = vadd.f32 %v2755, %v2838
  %v2840 = vpop.f32.mrf.mxu0
  %2841 = vmatprep.mubr.bf16.mxu0 0
  %2842 = vmatmul.mubr.bf16.gmra.mxu0 %v2764
  %v2843 = vpop.f32.mrf.mxu0
  %v2844 = vadd.f32 %v2755, %v2843
  %v2845 = vpop.f32.mrf.mxu0
  %v2846 = vpop.f32.mrf.mxu0
  %v2847 = vadd.f32 %v2755, %v2846
  %v2848 = vpop.f32.mrf.mxu0
  %2849 = vmatprep.mubr.bf16.mxu0 0
  %2850 = vmatmul.mubr.bf16.gmra.mxu0 %v2767
  %v2851 = vpop.f32.mrf.mxu0
  %v2852 = vadd.f32 %v2755, %v2851
  %v2853 = vpop.f32.mrf.mxu0
  %v2854 = vpop.f32.mrf.mxu0
  %v2855 = vadd.f32 %v2755, %v2854
  %v2856 = vpop.f32.mrf.mxu0
  %2857 = vdwg.mxu0
  %v2858 = vsel %vm761, %v2828, -1e+30
  %v2859 = vsel %vm761, %v2831, -1e+30
  %v2860 = vsel %vm761, %v2836, -1e+30
  %v2861 = vsel %vm761, %v2839, -1e+30
  %v2862 = vsel %vm761, %v2844, -1e+30
  %v2863 = vsel %vm761, %v2847, -1e+30
  %v2864 = vsel %vm761, %v2852, -1e+30
  %v2865 = vsel %vm761, %v2855, -1e+30
  %2866 = vmax.xlane.f32.xlu0 %v2858
  %v2867 = vpop.xlane.xlu0 %2866
  %2868 = vmax.xlane.f32.xlu0 %v2859
  %v2869 = vpop.xlane.xlu0 %2868
  %2870 = vmax.xlane.f32.xlu0 %v2860
  %v2871 = vpop.xlane.xlu0 %2870
  %2872 = vmax.xlane.f32.xlu0 %v2861
  %v2873 = vpop.xlane.xlu0 %2872
  %2874 = vmax.xlane.f32.xlu0 %v2862
  %v2875 = vpop.xlane.xlu0 %2874
  %2876 = vmax.xlane.f32.xlu0 %v2863
  %v2877 = vpop.xlane.xlu0 %2876
  %2878 = vmax.xlane.f32.xlu0 %v2864
  %v2879 = vpop.xlane.xlu0 %2878
  %2880 = vmax.xlane.f32.xlu0 %v2865
  %v2881 = vpop.xlane.xlu0 %2880
  %v2882 = vsel %vm761, -1e+30, %v2828
  %v2883 = vsel %vm761, -1e+30, %v2831
  %v2884 = vsel %vm761, -1e+30, %v2836
  %v2885 = vsel %vm761, -1e+30, %v2839
  %v2886 = vsel %vm761, -1e+30, %v2844
  %v2887 = vsel %vm761, -1e+30, %v2847
  %v2888 = vsel %vm761, -1e+30, %v2852
  %v2889 = vsel %vm761, -1e+30, %v2855
  %2890 = vmax.xlane.f32.xlu0 %v2882
  %v2891 = vpop.xlane.xlu0 %2890
  %2892 = vmax.xlane.f32.xlu0 %v2883
  %v2893 = vpop.xlane.xlu0 %2892
  %2894 = vmax.xlane.f32.xlu0 %v2884
  %v2895 = vpop.xlane.xlu0 %2894
  %2896 = vmax.xlane.f32.xlu0 %v2885
  %v2897 = vpop.xlane.xlu0 %2896
  %2898 = vmax.xlane.f32.xlu0 %v2886
  %v2899 = vpop.xlane.xlu0 %2898
  %2900 = vmax.xlane.f32.xlu0 %v2887
  %v2901 = vpop.xlane.xlu0 %2900
  %2902 = vmax.xlane.f32.xlu0 %v2888
  %v2903 = vpop.xlane.xlu0 %2902
  %2904 = vmax.xlane.f32.xlu0 %v2889
  %v2905 = vpop.xlane.xlu0 %2904
  %v2906 = vsel %vm761, %v2867, %v2891
  %v2907 = vsel %vm761, %v2869, %v2893
  %v2908 = vsel %vm761, %v2871, %v2895
  %v2909 = vsel %vm761, %v2873, %v2897
  %v2910 = vsel %vm761, %v2875, %v2899
  %v2911 = vsel %vm761, %v2877, %v2901
  %v2912 = vsel %vm761, %v2879, %v2903
  %v2913 = vsel %vm761, %v2881, %v2905
  %v2914 = vsub.f32 %v2828, %v2906
  %v2915 = vsub.f32 %v2831, %v2907
  %v2916 = vsub.f32 %v2836, %v2908
  %v2917 = vsub.f32 %v2839, %v2909
  %v2918 = vsub.f32 %v2844, %v2910
  %v2919 = vsub.f32 %v2847, %v2911
  %v2920 = vsub.f32 %v2852, %v2912
  %v2921 = vsub.f32 %v2855, %v2913
  %v2922 = vmul.f32 %v2914, 1.442695
  %v2923 = vpow.pop %v2922
  %v2924 = vmul.f32 %v2915, 1.442695
  %v2925 = vpow.pop %v2924
  %v2926 = vmul.f32 %v2916, 1.442695
  %v2927 = vpow.pop %v2926
  %v2928 = vmul.f32 %v2917, 1.442695
  %v2929 = vpow.pop %v2928
  %v2930 = vmul.f32 %v2918, 1.442695
  %v2931 = vpow.pop %v2930
  %v2932 = vmul.f32 %v2919, 1.442695
  %v2933 = vpow.pop %v2932
  %v2934 = vmul.f32 %v2920, 1.442695
  %v2935 = vpow.pop %v2934
  %v2936 = vmul.f32 %v2921, 1.442695
  %v2937 = vpow.pop %v2936
  %v2938 = vsel %vm761, %v2923, 0.0
  %v2939 = vsel %vm761, %v2925, 0.0
  %v2940 = vsel %vm761, %v2927, 0.0
  %v2941 = vsel %vm761, %v2929, 0.0
  %v2942 = vsel %vm761, %v2931, 0.0
  %v2943 = vsel %vm761, %v2933, 0.0
  %v2944 = vsel %vm761, %v2935, 0.0
  %v2945 = vsel %vm761, %v2937, 0.0
  %2946 = vadd.xlane.f32.xlu0 %v2938
  %v2947 = vpop.xlane.xlu0 %2946
  %2948 = vadd.xlane.f32.xlu0 %v2939
  %v2949 = vpop.xlane.xlu0 %2948
  %2950 = vadd.xlane.f32.xlu0 %v2940
  %v2951 = vpop.xlane.xlu0 %2950
  %2952 = vadd.xlane.f32.xlu0 %v2941
  %v2953 = vpop.xlane.xlu0 %2952
  %2954 = vadd.xlane.f32.xlu0 %v2942
  %v2955 = vpop.xlane.xlu0 %2954
  %2956 = vadd.xlane.f32.xlu0 %v2943
  %v2957 = vpop.xlane.xlu0 %2956
  %2958 = vadd.xlane.f32.xlu0 %v2944
  %v2959 = vpop.xlane.xlu0 %2958
  %2960 = vadd.xlane.f32.xlu0 %v2945
  %v2961 = vpop.xlane.xlu0 %2960
  %v2962 = vsel %vm761, 0.0, %v2923
  %v2963 = vsel %vm761, 0.0, %v2925
  %v2964 = vsel %vm761, 0.0, %v2927
  %v2965 = vsel %vm761, 0.0, %v2929
  %v2966 = vsel %vm761, 0.0, %v2931
  %v2967 = vsel %vm761, 0.0, %v2933
  %v2968 = vsel %vm761, 0.0, %v2935
  %v2969 = vsel %vm761, 0.0, %v2937
  %2970 = vadd.xlane.f32.xlu0 %v2962
  %v2971 = vpop.xlane.xlu0 %2970
  %2972 = vadd.xlane.f32.xlu0 %v2963
  %v2973 = vpop.xlane.xlu0 %2972
  %2974 = vadd.xlane.f32.xlu0 %v2964
  %v2975 = vpop.xlane.xlu0 %2974
  %2976 = vadd.xlane.f32.xlu0 %v2965
  %v2977 = vpop.xlane.xlu0 %2976
  %2978 = vadd.xlane.f32.xlu0 %v2966
  %v2979 = vpop.xlane.xlu0 %2978
  %2980 = vadd.xlane.f32.xlu0 %v2967
  %v2981 = vpop.xlane.xlu0 %2980
  %2982 = vadd.xlane.f32.xlu0 %v2968
  %v2983 = vpop.xlane.xlu0 %2982
  %2984 = vadd.xlane.f32.xlu0 %v2969
  %v2985 = vpop.xlane.xlu0 %2984
  %v2986 = vrcp.pop %v2947
  %v2987 = vrcp.pop %v2949
  %v2988 = vrcp.pop %v2951
  %v2989 = vrcp.pop %v2953
  %v2990 = vrcp.pop %v2955
  %v2991 = vrcp.pop %v2957
  %v2992 = vrcp.pop %v2959
  %v2993 = vrcp.pop %v2961
  %v2994 = vrcp.pop %v2971
  %v2995 = vrcp.pop %v2973
  %v2996 = vrcp.pop %v2975
  %v2997 = vrcp.pop %v2977
  %v2998 = vrcp.pop %v2979
  %v2999 = vrcp.pop %v2981
  %v3000 = vrcp.pop %v2983
  %v3001 = vrcp.pop %v2985
  %v3002 = vsel %vm761, %v2986, %v2994
  %v3003 = vsel %vm761, %v2987, %v2995
  %v3004 = vsel %vm761, %v2988, %v2996
  %v3005 = vsel %vm761, %v2989, %v2997
  %v3006 = vsel %vm761, %v2990, %v2998
  %v3007 = vsel %vm761, %v2991, %v2999
  %v3008 = vsel %vm761, %v2992, %v3000
  %v3009 = vsel %vm761, %v2993, %v3001
  %v3010 = vmul.f32 %v2923, %v3002
  %v3011 = vmul.f32 %v2925, %v3003
  %v3012 = vmul.f32 %v2927, %v3004
  %v3013 = vmul.f32 %v2929, %v3005
  %v3014 = vmul.f32 %v2931, %v3006
  %v3015 = vmul.f32 %v2933, %v3007
  %v3016 = vmul.f32 %v2935, %v3008
  %v3017 = vmul.f32 %v2937, %v3009
  %v3018 = vpack.c.bf16 %v3011, %v3010
  %v3019 = vpack.c.bf16 %v3013, %v3012
  %v3020 = vpack.c.bf16 %v3015, %v3014
  %v3021 = vpack.c.bf16 %v3017, %v3016
  %3022 = vmatprep.subr.bf16.mxu0 0
  %3023 = vmatpush1.bf16.msra.mxu0 %v2390
  %3024 = vmatprep.subr.bf16.mxu0 0
  %3025 = vmatpush1.bf16.msra.mxu0 %v2389
  %3026 = vmatprep.subr.bf16.mxu0 0
  %3027 = vmatpush1.bf16.msra.mxu0 %v2388
  %3028 = vmatprep.subr.bf16.mxu0 0
  %3029 = vmatpush1.bf16.msra.mxu0 %v2387
  %3030 = vmatprep.subr.bf16.mxu0 0
  %3031 = vmatpush1.bf16.msra.mxu0 %v2366
  %3032 = vmatprep.subr.bf16.mxu0 0
  %3033 = vmatpush1.bf16.msra.mxu0 %v2365
  %3034 = vmatprep.subr.bf16.mxu0 0
  %3035 = vmatpush1.bf16.msra.mxu0 %v2364
  %3036 = vmatprep.subr.bf16.mxu0 0
  %3037 = vmatpush1.bf16.msra.mxu0 %v2363
  %3038 = vmatprep.subr.bf16.mxu0 0
  %3039 = vmatpush2.bf16.msra.mxu0 0
  %3040 = vmatprep.subr.bf16.mxu0 0
  %3041 = vmatpush2.bf16.msra.mxu0 0
  %3042 = vmatprep.subr.bf16.mxu0 0
  %3043 = vmatpush2.bf16.msra.mxu0 0
  %3044 = vmatprep.subr.bf16.mxu0 0
  %3045 = vmatpush2.bf16.msra.mxu0 0
  %3046 = vmatprep.subr.bf16.mxu0 0
  %3047 = vmatpush2.bf16.msra.mxu0 0
  %3048 = vmatprep.subr.bf16.mxu0 0
  %3049 = vmatpush2.bf16.msra.mxu0 0
  %3050 = vmatprep.subr.bf16.mxu0 0
  %3051 = vmatpush2.bf16.msra.mxu0 0
  %3052 = vmatprep.subr.bf16.mxu0 0
  %3053 = vmatpush2.bf16.msra.mxu0 0
  %3054 = vmatprep.mubr.bf16.mxu0 0
  %3055 = vmatmul.mubr.bf16.gmra.mxu0 %v3018
  %v3056 = vpop.f32.mrf.mxu0
  %v3057 = vadd.f32 0.0, %v3056
  %v3058 = vpop.f32.mrf.mxu0
  %v3059 = vpop.f32.mrf.mxu0
  %v3060 = vadd.f32 0.0, %v3059
  %v3061 = vpop.f32.mrf.mxu0
  %3062 = vmatprep.mubr.bf16.mxu0 0
  %3063 = vmatmul.mubr.bf16.gmra.mxu0 %v3019
  %v3064 = vpop.f32.mrf.mxu0
  %v3065 = vadd.f32 0.0, %v3064
  %v3066 = vpop.f32.mrf.mxu0
  %v3067 = vpop.f32.mrf.mxu0
  %v3068 = vadd.f32 0.0, %v3067
  %v3069 = vpop.f32.mrf.mxu0
  %3070 = vmatprep.mubr.bf16.mxu0 0
  %3071 = vmatmul.mubr.bf16.gmra.mxu0 %v3020
  %v3072 = vpop.f32.mrf.mxu0
  %v3073 = vadd.f32 0.0, %v3072
  %v3074 = vpop.f32.mrf.mxu0
  %v3075 = vpop.f32.mrf.mxu0
  %v3076 = vadd.f32 0.0, %v3075
  %v3077 = vpop.f32.mrf.mxu0
  %3078 = vmatprep.mubr.bf16.mxu0 0
  %3079 = vmatmul.mubr.bf16.gmra.mxu0 %v3021
  %v3080 = vpop.f32.mrf.mxu0
  %v3081 = vadd.f32 0.0, %v3080
  %v3082 = vpop.f32.mrf.mxu0
  %v3083 = vpop.f32.mrf.mxu0
  %v3084 = vadd.f32 0.0, %v3083
  %v3085 = vpop.f32.mrf.mxu0
  %3086 = vdwg.mxu0
  %v3087 = vpack.c.bf16 %v2724, %v2721
  %v3088 = vpack.c.bf16 %v2732, %v2729
  %v3089 = vpack.c.bf16 %v2740, %v2737
  %v3090 = vpack.c.bf16 %v2748, %v2745
  %v3091 = vpack.c.bf16 %v3060, %v3057
  %v3092 = vpack.c.bf16 %v3068, %v3065
  %v3093 = vpack.c.bf16 %v3076, %v3073
  %v3094 = vpack.c.bf16 %v3084, %v3081
  %v3095 = vlaneseq
  %v3096 = vshrl.u32 %v3095, 7
  %v3097 = vsub.s32 1, %v3096
  %v3098 = vrot.slane %v49, %v3097
  %v3107 = vunpack.c.l.b16 %v105
  %v3108 = vunpack.c.l.b16 %v106
  %v3109 = vunpack.c.l.b16 %v107
  %v3110 = vunpack.c.l.b16 %v108
  %v3111 = vunpack.c.l.b16 %v109
  %v3112 = vunpack.c.l.b16 %v110
  %v3113 = vunpack.c.l.b16 %v111
  %v3114 = vunpack.c.l.b16 %v112
  %v3115 = vpack.c.b16 %v3108, %v3107
  %v3116 = vpack.c.b16 %v3110, %v3109
  %v3117 = vpack.c.b16 %v3112, %v3111
  %v3118 = vpack.c.b16 %v3114, %v3113
  %v3124 = vsel %vm150, %v3087, 0
  %v3127 = vsel %vm150, %v3088, 0
  %v3130 = vsel %vm150, %v3089, 0
  %v3133 = vsel %vm150, %v3090, 0
  %v3136 = vsel %vm150, %v3091, 0
  %v3139 = vsel %vm150, %v3092, 0
  %v3142 = vsel %vm150, %v3093, 0
  %v3145 = vsel %vm150, %v3094, 0
  %3147 = vmatprep.subr.bf16.mxu0 0
  %3148 = vmatpush1.bf16.msra.mxu0 0
  %3149 = vmatprep.subr.bf16.mxu0 0
  %3150 = vmatpush1.bf16.msra.mxu0 0
  %3151 = vmatprep.subr.bf16.mxu0 0
  %3152 = vmatpush1.bf16.msra.mxu0 0
  %3153 = vmatprep.subr.bf16.mxu0 0
  %3154 = vmatpush1.bf16.msra.mxu0 0
  %3155 = vmatprep.subr.bf16.mxu0 0
  %3156 = vmatpush1.bf16.msra.mxu0 %v3118
  %3157 = vmatprep.subr.bf16.mxu0 0
  %3158 = vmatpush1.bf16.msra.mxu0 %v3117
  %3159 = vmatprep.subr.bf16.mxu0 0
  %3160 = vmatpush1.bf16.msra.mxu0 %v3116
  %3161 = vmatprep.subr.bf16.mxu0 0
  %3162 = vmatpush1.bf16.msra.mxu0 %v3115
  %3163 = vmatprep.subr.bf16.mxu0 0
  %3164 = vmatpush2.bf16.msra.mxu0 0
  %3165 = vmatprep.subr.bf16.mxu0 0
  %3166 = vmatpush2.bf16.msra.mxu0 0
  %3167 = vmatprep.subr.bf16.mxu0 0
  %3168 = vmatpush2.bf16.msra.mxu0 0
  %3169 = vmatprep.subr.bf16.mxu0 0
  %3170 = vmatpush2.bf16.msra.mxu0 0
  %3171 = vmatprep.subr.bf16.mxu0 0
  %3172 = vmatpush2.bf16.msra.mxu0 0
  %3173 = vmatprep.subr.bf16.mxu0 0
  %3174 = vmatpush2.bf16.msra.mxu0 0
  %3175 = vmatprep.subr.bf16.mxu0 0
  %3176 = vmatpush2.bf16.msra.mxu0 0
  %3177 = vmatprep.subr.bf16.mxu0 0
  %3178 = vmatpush2.bf16.msra.mxu0 0
  %3179 = vmatprep.mubr.bf16.mxu0 0
  %3180 = vmatmul.mubr.bf16.gmra.mxu0 %v3124
  %v3181 = vpop.f32.mrf.mxu0
  %v3182 = vadd.f32 %v3098, %v3181
  %v3183 = vpop.f32.mrf.mxu0
  %v3184 = vpop.f32.mrf.mxu0
  %v3185 = vadd.f32 %v3098, %v3184
  %v3186 = vpop.f32.mrf.mxu0
  %3187 = vmatprep.mubr.bf16.mxu0 0
  %3188 = vmatmul.mubr.bf16.gmra.mxu0 %v3127
  %v3189 = vpop.f32.mrf.mxu0
  %v3190 = vadd.f32 %v3098, %v3189
  %v3191 = vpop.f32.mrf.mxu0
  %v3192 = vpop.f32.mrf.mxu0
  %v3193 = vadd.f32 %v3098, %v3192
  %v3194 = vpop.f32.mrf.mxu0
  %3195 = vmatprep.mubr.bf16.mxu0 0
  %3196 = vmatmul.mubr.bf16.gmra.mxu0 %v3130
  %v3197 = vpop.f32.mrf.mxu0
  %v3198 = vadd.f32 %v3098, %v3197
  %v3199 = vpop.f32.mrf.mxu0
  %v3200 = vpop.f32.mrf.mxu0
  %v3201 = vadd.f32 %v3098, %v3200
  %v3202 = vpop.f32.mrf.mxu0
  %3203 = vmatprep.mubr.bf16.mxu0 0
  %3204 = vmatmul.mubr.bf16.gmra.mxu0 %v3133
  %v3205 = vpop.f32.mrf.mxu0
  %v3206 = vadd.f32 %v3098, %v3205
  %v3207 = vpop.f32.mrf.mxu0
  %v3208 = vpop.f32.mrf.mxu0
  %v3209 = vadd.f32 %v3098, %v3208
  %v3210 = vpop.f32.mrf.mxu0
  %3211 = vmatprep.mubr.bf16.mxu0 0
  %3212 = vmatmul.mubr.bf16.gmra.mxu0 %v3136
  %v3213 = vpop.f32.mrf.mxu0
  %v3214 = vadd.f32 %v3098, %v3213
  %v3215 = vpop.f32.mrf.mxu0
  %v3216 = vpop.f32.mrf.mxu0
  %v3217 = vadd.f32 %v3098, %v3216
  %v3218 = vpop.f32.mrf.mxu0
  %3219 = vmatprep.mubr.bf16.mxu0 0
  %3220 = vmatmul.mubr.bf16.gmra.mxu0 %v3139
  %v3221 = vpop.f32.mrf.mxu0
  %v3222 = vadd.f32 %v3098, %v3221
  %v3223 = vpop.f32.mrf.mxu0
  %v3224 = vpop.f32.mrf.mxu0
  %v3225 = vadd.f32 %v3098, %v3224
  %v3226 = vpop.f32.mrf.mxu0
  %3227 = vmatprep.mubr.bf16.mxu0 0
  %3228 = vmatmul.mubr.bf16.gmra.mxu0 %v3142
  %v3229 = vpop.f32.mrf.mxu0
  %v3230 = vadd.f32 %v3098, %v3229
  %v3231 = vpop.f32.mrf.mxu0
  %v3232 = vpop.f32.mrf.mxu0
  %v3233 = vadd.f32 %v3098, %v3232
  %v3234 = vpop.f32.mrf.mxu0
  %3235 = vmatprep.mubr.bf16.mxu0 0
  %3236 = vmatmul.mubr.bf16.gmra.mxu0 %v3145
  %v3237 = vpop.f32.mrf.mxu0
  %v3238 = vadd.f32 %v3098, %v3237
  %v3239 = vpop.f32.mrf.mxu0
  %v3240 = vpop.f32.mrf.mxu0
  %v3241 = vadd.f32 %v3098, %v3240
  %v3242 = vpop.f32.mrf.mxu0
  %3243 = vdwg.mxu0
  %v3244 = vpack.c.bf16 %v3185, %v3182
  %v3245 = vpack.c.bf16 %v3193, %v3190
  %v3246 = vpack.c.bf16 %v3201, %v3198
  %v3247 = vpack.c.bf16 %v3209, %v3206
  %v3248 = vpack.c.bf16 %v3217, %v3214
  %v3249 = vpack.c.bf16 %v3225, %v3222
  %v3250 = vpack.c.bf16 %v3233, %v3230
  %v3251 = vpack.c.bf16 %v3241, %v3238
  %v3252 = vlaneseq
  %v3253 = vshrl.u32 %v3252, 7
  %v3254 = vsub.s32 2, %v3253
  %v3255 = vrot.slane %v49, %v3254
  %v3264 = vunpack.c.l.b16 %v113
  %v3265 = vunpack.c.l.b16 %v114
  %v3266 = vunpack.c.l.b16 %v115
  %v3267 = vunpack.c.l.b16 %v116
  %v3268 = vunpack.c.l.b16 %v117
  %v3269 = vunpack.c.l.b16 %v118
  %v3270 = vunpack.c.l.b16 %v119
  %v3271 = vunpack.c.l.b16 %v120
  %v3272 = vpack.c.b16 %v3265, %v3264
  %v3273 = vpack.c.b16 %v3267, %v3266
  %v3274 = vpack.c.b16 %v3269, %v3268
  %v3275 = vpack.c.b16 %v3271, %v3270
  %v3281 = vsel %vm150, %v3244, 0
  %v3284 = vsel %vm150, %v3245, 0
  %v3287 = vsel %vm150, %v3246, 0
  %v3290 = vsel %vm150, %v3247, 0
  %v3293 = vsel %vm150, %v3248, 0
  %v3296 = vsel %vm150, %v3249, 0
  %v3299 = vsel %vm150, %v3250, 0
  %v3302 = vsel %vm150, %v3251, 0
  %3304 = vmatprep.subr.bf16.mxu0 0
  %3305 = vmatpush1.bf16.msra.mxu0 0
  %3306 = vmatprep.subr.bf16.mxu0 0
  %3307 = vmatpush1.bf16.msra.mxu0 0
  %3308 = vmatprep.subr.bf16.mxu0 0
  %3309 = vmatpush1.bf16.msra.mxu0 0
  %3310 = vmatprep.subr.bf16.mxu0 0
  %3311 = vmatpush1.bf16.msra.mxu0 0
  %3312 = vmatprep.subr.bf16.mxu0 0
  %3313 = vmatpush1.bf16.msra.mxu0 %v3275
  %3314 = vmatprep.subr.bf16.mxu0 0
  %3315 = vmatpush1.bf16.msra.mxu0 %v3274
  %3316 = vmatprep.subr.bf16.mxu0 0
  %3317 = vmatpush1.bf16.msra.mxu0 %v3273
  %3318 = vmatprep.subr.bf16.mxu0 0
  %3319 = vmatpush1.bf16.msra.mxu0 %v3272
  %3320 = vmatprep.subr.bf16.mxu0 0
  %3321 = vmatpush2.bf16.msra.mxu0 0
  %3322 = vmatprep.subr.bf16.mxu0 0
  %3323 = vmatpush2.bf16.msra.mxu0 0
  %3324 = vmatprep.subr.bf16.mxu0 0
  %3325 = vmatpush2.bf16.msra.mxu0 0
  %3326 = vmatprep.subr.bf16.mxu0 0
  %3327 = vmatpush2.bf16.msra.mxu0 0
  %3328 = vmatprep.subr.bf16.mxu0 0
  %3329 = vmatpush2.bf16.msra.mxu0 0
  %3330 = vmatprep.subr.bf16.mxu0 0
  %3331 = vmatpush2.bf16.msra.mxu0 0
  %3332 = vmatprep.subr.bf16.mxu0 0
  %3333 = vmatpush2.bf16.msra.mxu0 0
  %3334 = vmatprep.subr.bf16.mxu0 0
  %3335 = vmatpush2.bf16.msra.mxu0 0
  %3336 = vmatprep.mubr.bf16.mxu0 0
  %3337 = vmatmul.mubr.bf16.gmra.mxu0 %v3281
  %v3338 = vpop.f32.mrf.mxu0
  %v3339 = vadd.f32 %v3255, %v3338
  %v3340 = vpop.f32.mrf.mxu0
  %v3341 = vpop.f32.mrf.mxu0
  %v3342 = vadd.f32 %v3255, %v3341
  %v3343 = vpop.f32.mrf.mxu0
  %3344 = vmatprep.mubr.bf16.mxu0 0
  %3345 = vmatmul.mubr.bf16.gmra.mxu0 %v3284
  %v3346 = vpop.f32.mrf.mxu0
  %v3347 = vadd.f32 %v3255, %v3346
  %v3348 = vpop.f32.mrf.mxu0
  %v3349 = vpop.f32.mrf.mxu0
  %v3350 = vadd.f32 %v3255, %v3349
  %v3351 = vpop.f32.mrf.mxu0
  %3352 = vmatprep.mubr.bf16.mxu0 0
  %3353 = vmatmul.mubr.bf16.gmra.mxu0 %v3287
  %v3354 = vpop.f32.mrf.mxu0
  %v3355 = vadd.f32 %v3255, %v3354
  %v3356 = vpop.f32.mrf.mxu0
  %v3357 = vpop.f32.mrf.mxu0
  %v3358 = vadd.f32 %v3255, %v3357
  %v3359 = vpop.f32.mrf.mxu0
  %3360 = vmatprep.mubr.bf16.mxu0 0
  %3361 = vmatmul.mubr.bf16.gmra.mxu0 %v3290
  %v3362 = vpop.f32.mrf.mxu0
  %v3363 = vadd.f32 %v3255, %v3362
  %v3364 = vpop.f32.mrf.mxu0
  %v3365 = vpop.f32.mrf.mxu0
  %v3366 = vadd.f32 %v3255, %v3365
  %v3367 = vpop.f32.mrf.mxu0
  %3368 = vmatprep.mubr.bf16.mxu0 0
  %3369 = vmatmul.mubr.bf16.gmra.mxu0 %v3293
  %v3370 = vpop.f32.mrf.mxu0
  %v3371 = vadd.f32 %v3255, %v3370
  %v3372 = vpop.f32.mrf.mxu0
  %v3373 = vpop.f32.mrf.mxu0
  %v3374 = vadd.f32 %v3255, %v3373
  %v3375 = vpop.f32.mrf.mxu0
  %3376 = vmatprep.mubr.bf16.mxu0 0
  %3377 = vmatmul.mubr.bf16.gmra.mxu0 %v3296
  %v3378 = vpop.f32.mrf.mxu0
  %v3379 = vadd.f32 %v3255, %v3378
  %v3380 = vpop.f32.mrf.mxu0
  %v3381 = vpop.f32.mrf.mxu0
  %v3382 = vadd.f32 %v3255, %v3381
  %v3383 = vpop.f32.mrf.mxu0
  %3384 = vmatprep.mubr.bf16.mxu0 0
  %3385 = vmatmul.mubr.bf16.gmra.mxu0 %v3299
  %v3386 = vpop.f32.mrf.mxu0
  %v3387 = vadd.f32 %v3255, %v3386
  %v3388 = vpop.f32.mrf.mxu0
  %v3389 = vpop.f32.mrf.mxu0
  %v3390 = vadd.f32 %v3255, %v3389
  %v3391 = vpop.f32.mrf.mxu0
  %3392 = vmatprep.mubr.bf16.mxu0 0
  %3393 = vmatmul.mubr.bf16.gmra.mxu0 %v3302
  %v3394 = vpop.f32.mrf.mxu0
  %v3395 = vadd.f32 %v3255, %v3394
  %v3396 = vpop.f32.mrf.mxu0
  %v3397 = vpop.f32.mrf.mxu0
  %v3398 = vadd.f32 %v3255, %v3397
  %v3399 = vpop.f32.mrf.mxu0
  %3400 = vdwg.mxu0
  %v3401 = vsel %vm150, %v3339, 0.0
  %3402 = vadd.xlane.f32.xlu0 %v3401
  %v3403 = vpop.xlane.xlu0 %3402
  %v3404 = vsel %vm150, %v3342, 0.0
  %3405 = vadd.xlane.f32.xlu0 %v3404
  %v3406 = vpop.xlane.xlu0 %3405
  %v3407 = vsel %vm150, %v3347, 0.0
  %3408 = vadd.xlane.f32.xlu0 %v3407
  %v3409 = vpop.xlane.xlu0 %3408
  %v3410 = vsel %vm150, %v3350, 0.0
  %3411 = vadd.xlane.f32.xlu0 %v3410
  %v3412 = vpop.xlane.xlu0 %3411
  %v3413 = vsel %vm150, %v3355, 0.0
  %3414 = vadd.xlane.f32.xlu0 %v3413
  %v3415 = vpop.xlane.xlu0 %3414
  %v3416 = vsel %vm150, %v3358, 0.0
  %3417 = vadd.xlane.f32.xlu0 %v3416
  %v3418 = vpop.xlane.xlu0 %3417
  %v3419 = vsel %vm150, %v3363, 0.0
  %3420 = vadd.xlane.f32.xlu0 %v3419
  %v3421 = vpop.xlane.xlu0 %3420
  %v3422 = vsel %vm150, %v3366, 0.0
  %3423 = vadd.xlane.f32.xlu0 %v3422
  %v3424 = vpop.xlane.xlu0 %3423
  %v3425 = vsel %vm150, %v3371, 0.0
  %3426 = vadd.xlane.f32.xlu0 %v3425
  %v3427 = vpop.xlane.xlu0 %3426
  %v3428 = vsel %vm150, %v3374, 0.0
  %3429 = vadd.xlane.f32.xlu0 %v3428
  %v3430 = vpop.xlane.xlu0 %3429
  %v3431 = vsel %vm150, %v3379, 0.0
  %3432 = vadd.xlane.f32.xlu0 %v3431
  %v3433 = vpop.xlane.xlu0 %3432
  %v3434 = vsel %vm150, %v3382, 0.0
  %3435 = vadd.xlane.f32.xlu0 %v3434
  %v3436 = vpop.xlane.xlu0 %3435
  %v3437 = vsel %vm150, %v3387, 0.0
  %3438 = vadd.xlane.f32.xlu0 %v3437
  %v3439 = vpop.xlane.xlu0 %3438
  %v3440 = vsel %vm150, %v3390, 0.0
  %3441 = vadd.xlane.f32.xlu0 %v3440
  %v3442 = vpop.xlane.xlu0 %3441
  %v3443 = vsel %vm150, %v3395, 0.0
  %3444 = vadd.xlane.f32.xlu0 %v3443
  %v3445 = vpop.xlane.xlu0 %3444
  %v3446 = vsel %vm150, %v3398, 0.0
  %3447 = vadd.xlane.f32.xlu0 %v3446
  %v3448 = vpop.xlane.xlu0 %3447
  %v3449 = vmul.f32 %v3403, %v1558
  %v3450 = vmul.f32 %v3406, %v1558
  %v3451 = vmul.f32 %v3409, %v1558
  %v3452 = vmul.f32 %v3412, %v1558
  %v3453 = vmul.f32 %v3415, %v1558
  %v3454 = vmul.f32 %v3418, %v1558
  %v3455 = vmul.f32 %v3421, %v1558
  %v3456 = vmul.f32 %v3424, %v1558
  %v3457 = vmul.f32 %v3427, %v1558
  %v3458 = vmul.f32 %v3430, %v1558
  %v3459 = vmul.f32 %v3433, %v1558
  %v3460 = vmul.f32 %v3436, %v1558
  %v3461 = vmul.f32 %v3439, %v1558
  %v3462 = vmul.f32 %v3442, %v1558
  %v3463 = vmul.f32 %v3445, %v1558
  %v3464 = vmul.f32 %v3448, %v1558
  %v3465 = vsub.f32 %v3339, %v3449
  %v3466 = vsub.f32 %v3342, %v3450
  %v3467 = vsub.f32 %v3347, %v3451
  %v3468 = vsub.f32 %v3350, %v3452
  %v3469 = vsub.f32 %v3355, %v3453
  %v3470 = vsub.f32 %v3358, %v3454
  %v3471 = vsub.f32 %v3363, %v3455
  %v3472 = vsub.f32 %v3366, %v3456
  %v3473 = vsub.f32 %v3371, %v3457
  %v3474 = vsub.f32 %v3374, %v3458
  %v3475 = vsub.f32 %v3379, %v3459
  %v3476 = vsub.f32 %v3382, %v3460
  %v3477 = vsub.f32 %v3387, %v3461
  %v3478 = vsub.f32 %v3390, %v3462
  %v3479 = vsub.f32 %v3395, %v3463
  %v3480 = vsub.f32 %v3398, %v3464
  %v3481 = vmul.f32 %v3465, %v3465
  %v3482 = vmul.f32 %v3466, %v3466
  %v3483 = vmul.f32 %v3467, %v3467
  %v3484 = vmul.f32 %v3468, %v3468
  %v3485 = vmul.f32 %v3469, %v3469
  %v3486 = vmul.f32 %v3470, %v3470
  %v3487 = vmul.f32 %v3471, %v3471
  %v3488 = vmul.f32 %v3472, %v3472
  %v3489 = vmul.f32 %v3473, %v3473
  %v3490 = vmul.f32 %v3474, %v3474
  %v3491 = vmul.f32 %v3475, %v3475
  %v3492 = vmul.f32 %v3476, %v3476
  %v3493 = vmul.f32 %v3477, %v3477
  %v3494 = vmul.f32 %v3478, %v3478
  %v3495 = vmul.f32 %v3479, %v3479
  %v3496 = vmul.f32 %v3480, %v3480
  %v3497 = vsel %vm150, %v3481, 0.0
  %3498 = vadd.xlane.f32.xlu0 %v3497
  %v3499 = vpop.xlane.xlu0 %3498
  %v3500 = vsel %vm150, %v3482, 0.0
  %3501 = vadd.xlane.f32.xlu0 %v3500
  %v3502 = vpop.xlane.xlu0 %3501
  %v3503 = vsel %vm150, %v3483, 0.0
  %3504 = vadd.xlane.f32.xlu0 %v3503
  %v3505 = vpop.xlane.xlu0 %3504
  %v3506 = vsel %vm150, %v3484, 0.0
  %3507 = vadd.xlane.f32.xlu0 %v3506
  %v3508 = vpop.xlane.xlu0 %3507
  %v3509 = vsel %vm150, %v3485, 0.0
  %3510 = vadd.xlane.f32.xlu0 %v3509
  %v3511 = vpop.xlane.xlu0 %3510
  %v3512 = vsel %vm150, %v3486, 0.0
  %3513 = vadd.xlane.f32.xlu0 %v3512
  %v3514 = vpop.xlane.xlu0 %3513
  %v3515 = vsel %vm150, %v3487, 0.0
  %3516 = vadd.xlane.f32.xlu0 %v3515
  %v3517 = vpop.xlane.xlu0 %3516
  %v3518 = vsel %vm150, %v3488, 0.0
  %3519 = vadd.xlane.f32.xlu0 %v3518
  %v3520 = vpop.xlane.xlu0 %3519
  %v3521 = vsel %vm150, %v3489, 0.0
  %3522 = vadd.xlane.f32.xlu0 %v3521
  %v3523 = vpop.xlane.xlu0 %3522
  %v3524 = vsel %vm150, %v3490, 0.0
  %3525 = vadd.xlane.f32.xlu0 %v3524
  %v3526 = vpop.xlane.xlu0 %3525
  %v3527 = vsel %vm150, %v3491, 0.0
  %3528 = vadd.xlane.f32.xlu0 %v3527
  %v3529 = vpop.xlane.xlu0 %3528
  %v3530 = vsel %vm150, %v3492, 0.0
  %3531 = vadd.xlane.f32.xlu0 %v3530
  %v3532 = vpop.xlane.xlu0 %3531
  %v3533 = vsel %vm150, %v3493, 0.0
  %3534 = vadd.xlane.f32.xlu0 %v3533
  %v3535 = vpop.xlane.xlu0 %3534
  %v3536 = vsel %vm150, %v3494, 0.0
  %3537 = vadd.xlane.f32.xlu0 %v3536
  %v3538 = vpop.xlane.xlu0 %3537
  %v3539 = vsel %vm150, %v3495, 0.0
  %3540 = vadd.xlane.f32.xlu0 %v3539
  %v3541 = vpop.xlane.xlu0 %3540
  %v3542 = vsel %vm150, %v3496, 0.0
  %3543 = vadd.xlane.f32.xlu0 %v3542
  %v3544 = vpop.xlane.xlu0 %3543
  %v3545 = vmul.f32 %v3499, %v1558
  %v3546 = vmul.f32 %v3502, %v1558
  %v3547 = vmul.f32 %v3505, %v1558
  %v3548 = vmul.f32 %v3508, %v1558
  %v3549 = vmul.f32 %v3511, %v1558
  %v3550 = vmul.f32 %v3514, %v1558
  %v3551 = vmul.f32 %v3517, %v1558
  %v3552 = vmul.f32 %v3520, %v1558
  %v3553 = vmul.f32 %v3523, %v1558
  %v3554 = vmul.f32 %v3526, %v1558
  %v3555 = vmul.f32 %v3529, %v1558
  %v3556 = vmul.f32 %v3532, %v1558
  %v3557 = vmul.f32 %v3535, %v1558
  %v3558 = vmul.f32 %v3538, %v1558
  %v3559 = vmul.f32 %v3541, %v1558
  %v3560 = vmul.f32 %v3544, %v1558
  %v3561 = vadd.f32 %v3545, 1e-05
  %v3562 = vadd.f32 %v3546, 1e-05
  %v3563 = vadd.f32 %v3547, 1e-05
  %v3564 = vadd.f32 %v3548, 1e-05
  %v3565 = vadd.f32 %v3549, 1e-05
  %v3566 = vadd.f32 %v3550, 1e-05
  %v3567 = vadd.f32 %v3551, 1e-05
  %v3568 = vadd.f32 %v3552, 1e-05
  %v3569 = vadd.f32 %v3553, 1e-05
  %v3570 = vadd.f32 %v3554, 1e-05
  %v3571 = vadd.f32 %v3555, 1e-05
  %v3572 = vadd.f32 %v3556, 1e-05
  %v3573 = vadd.f32 %v3557, 1e-05
  %v3574 = vadd.f32 %v3558, 1e-05
  %v3575 = vadd.f32 %v3559, 1e-05
  %v3576 = vadd.f32 %v3560, 1e-05
  %v3577 = vrsqrt.pop %v3561
  %v3578 = vrsqrt.pop %v3562
  %v3579 = vrsqrt.pop %v3563
  %v3580 = vrsqrt.pop %v3564
  %v3581 = vrsqrt.pop %v3565
  %v3582 = vrsqrt.pop %v3566
  %v3583 = vrsqrt.pop %v3567
  %v3584 = vrsqrt.pop %v3568
  %v3585 = vrsqrt.pop %v3569
  %v3586 = vrsqrt.pop %v3570
  %v3587 = vrsqrt.pop %v3571
  %v3588 = vrsqrt.pop %v3572
  %v3589 = vrsqrt.pop %v3573
  %v3590 = vrsqrt.pop %v3574
  %v3591 = vrsqrt.pop %v3575
  %v3592 = vrsqrt.pop %v3576
  %v3593 = vmul.f32 %v3465, %v3577
  %v3594 = vmul.f32 %v3466, %v3578
  %v3595 = vmul.f32 %v3467, %v3579
  %v3596 = vmul.f32 %v3468, %v3580
  %v3597 = vmul.f32 %v3469, %v3581
  %v3598 = vmul.f32 %v3470, %v3582
  %v3599 = vmul.f32 %v3471, %v3583
  %v3600 = vmul.f32 %v3472, %v3584
  %v3601 = vmul.f32 %v3473, %v3585
  %v3602 = vmul.f32 %v3474, %v3586
  %v3603 = vmul.f32 %v3475, %v3587
  %v3604 = vmul.f32 %v3476, %v3588
  %v3605 = vmul.f32 %v3477, %v3589
  %v3606 = vmul.f32 %v3478, %v3590
  %v3607 = vmul.f32 %v3479, %v3591
  %v3608 = vmul.f32 %v3480, %v3592
  %v3609 = vlaneseq
  %v3610 = vshrl.u32 %v3609, 7
  %v3611 = vsub.s32 3, %v3610
  %v3612 = vrot.slane %v49, %v3611
  %v3613 = vmul.f32 %v3593, %v3612
  %v3614 = vmul.f32 %v3594, %v3612
  %v3615 = vmul.f32 %v3595, %v3612
  %v3616 = vmul.f32 %v3596, %v3612
  %v3617 = vmul.f32 %v3597, %v3612
  %v3618 = vmul.f32 %v3598, %v3612
  %v3619 = vmul.f32 %v3599, %v3612
  %v3620 = vmul.f32 %v3600, %v3612
  %v3621 = vmul.f32 %v3601, %v3612
  %v3622 = vmul.f32 %v3602, %v3612
  %v3623 = vmul.f32 %v3603, %v3612
  %v3624 = vmul.f32 %v3604, %v3612
  %v3625 = vmul.f32 %v3605, %v3612
  %v3626 = vmul.f32 %v3606, %v3612
  %v3627 = vmul.f32 %v3607, %v3612
  %v3628 = vmul.f32 %v3608, %v3612
  %v3629 = vlaneseq
  %v3630 = vshrl.u32 %v3629, 7
  %v3631 = vsub.s32 4, %v3630
  %v3632 = vrot.slane %v49, %v3631
  %v3633 = vadd.f32 %v3613, %v3632
  %v3634 = vadd.f32 %v3614, %v3632
  %v3635 = vadd.f32 %v3615, %v3632
  %v3636 = vadd.f32 %v3616, %v3632
  %v3637 = vadd.f32 %v3617, %v3632
  %v3638 = vadd.f32 %v3618, %v3632
  %v3639 = vadd.f32 %v3619, %v3632
  %v3640 = vadd.f32 %v3620, %v3632
  %v3641 = vadd.f32 %v3621, %v3632
  %v3642 = vadd.f32 %v3622, %v3632
  %v3643 = vadd.f32 %v3623, %v3632
  %v3644 = vadd.f32 %v3624, %v3632
  %v3645 = vadd.f32 %v3625, %v3632
  %v3646 = vadd.f32 %v3626, %v3632
  %v3647 = vadd.f32 %v3627, %v3632
  %v3648 = vadd.f32 %v3628, %v3632
  %v3649 = vmax.f32 %v3633, 0.0
  %v3650 = vmax.f32 %v3634, 0.0
  %v3651 = vmax.f32 %v3635, 0.0
  %v3652 = vmax.f32 %v3636, 0.0
  %v3653 = vmax.f32 %v3637, 0.0
  %v3654 = vmax.f32 %v3638, 0.0
  %v3655 = vmax.f32 %v3639, 0.0
  %v3656 = vmax.f32 %v3640, 0.0
  %v3657 = vmax.f32 %v3641, 0.0
  %v3658 = vmax.f32 %v3642, 0.0
  %v3659 = vmax.f32 %v3643, 0.0
  %v3660 = vmax.f32 %v3644, 0.0
  %v3661 = vmax.f32 %v3645, 0.0
  %v3662 = vmax.f32 %v3646, 0.0
  %v3663 = vmax.f32 %v3647, 0.0
  %v3664 = vmax.f32 %v3648, 0.0
  %v3665 = vpack.c.bf16 %v49, %v49
  %v3666 = vpack.c.bf16 %v3650, %v3649
  %v3667 = vpack.c.bf16 %v3652, %v3651
  %v3668 = vpack.c.bf16 %v3654, %v3653
  %v3669 = vpack.c.bf16 %v3656, %v3655
  %v3670 = vpack.c.bf16 %v3658, %v3657
  %v3671 = vpack.c.bf16 %v3660, %v3659
  %v3672 = vpack.c.bf16 %v3662, %v3661
  %v3673 = vpack.c.bf16 %v3664, %v3663
  %v3675 = vrot.slane %v3665, 3
  %v3677 = vsel %vm150, %v3675, 0
  %v3680 = vsel %vm150, %v3666, 0
  %v3683 = vsel %vm150, %v3667, 0
  %v3686 = vsel %vm150, %v3668, 0
  %v3689 = vsel %vm150, %v3669, 0
  %v3692 = vsel %vm150, %v3670, 0
  %v3695 = vsel %vm150, %v3671, 0
  %v3698 = vsel %vm150, %v3672, 0
  %v3701 = vsel %vm150, %v3673, 0
  %3703 = vmatprep.subr.bf16.mxu0 0
  %3704 = vmatpush1.bf16.xpose.msra.mxu0 %v3701
  %3705 = vmatprep.subr.bf16.mxu0 0
  %3706 = vmatpush1.bf16.xpose.msra.mxu0 %v3698
  %3707 = vmatprep.subr.bf16.mxu0 0
  %3708 = vmatpush1.bf16.xpose.msra.mxu0 %v3695
  %3709 = vmatprep.subr.bf16.mxu0 0
  %3710 = vmatpush1.bf16.xpose.msra.mxu0 %v3692
  %3711 = vmatprep.subr.bf16.mxu0 0
  %3712 = vmatpush1.bf16.xpose.msra.mxu0 %v3689
  %3713 = vmatprep.subr.bf16.mxu0 0
  %3714 = vmatpush1.bf16.xpose.msra.mxu0 %v3686
  %3715 = vmatprep.subr.bf16.mxu0 0
  %3716 = vmatpush1.bf16.xpose.msra.mxu0 %v3683
  %3717 = vmatprep.subr.bf16.mxu0 0
  %3718 = vmatpush1.bf16.xpose.msra.mxu0 %v3680
  %3719 = vmatprep.subr.bf16.mxu0 0
  %3720 = vmatpush2.bf16.xpose.msra.mxu0 0
  %3721 = vmatprep.subr.bf16.mxu0 0
  %3722 = vmatpush2.bf16.xpose.msra.mxu0 0
  %3723 = vmatprep.subr.bf16.mxu0 0
  %3724 = vmatpush2.bf16.xpose.msra.mxu0 0
  %3725 = vmatprep.subr.bf16.mxu0 0
  %3726 = vmatpush2.bf16.xpose.msra.mxu0 0
  %3727 = vmatprep.subr.bf16.mxu0 0
  %3728 = vmatpush2.bf16.xpose.msra.mxu0 0
  %3729 = vmatprep.subr.bf16.mxu0 0
  %3730 = vmatpush2.bf16.xpose.msra.mxu0 0
  %3731 = vmatprep.subr.bf16.mxu0 0
  %3732 = vmatpush2.bf16.xpose.msra.mxu0 0
  %3733 = vmatprep.subr.bf16.mxu0 0
  %3734 = vmatpush2.bf16.xpose.msra.mxu0 0
  %3735 = vmatprep.mubr.bf16.mxu0 0
  %3736 = vmatmul.mubr.bf16.gmra.mxu0 %v3677
  %v3737 = vpop.f32.mrf.mxu0
  %v3738 = vadd.f32 0.0, %v3737
  %v3739 = vpop.f32.mrf.mxu0
  %v3740 = vpop.f32.mrf.mxu0
  %v3741 = vpop.f32.mrf.mxu0
  %3742 = vdwg.mxu0
  %v3744 = vshrl.u32 %v3665, 16
  %v3746 = vrot.slane %v3744, 2
  %v3748 = vsel %vm150, %v3746, 0
  %3750 = vmatprep.subr.bf16.mxu0 0
  %3751 = vmatpush1.bf16.xpose.msra.mxu0 %v3302
  %3752 = vmatprep.subr.bf16.mxu0 0
  %3753 = vmatpush1.bf16.xpose.msra.mxu0 %v3299
  %3754 = vmatprep.subr.bf16.mxu0 0
  %3755 = vmatpush1.bf16.xpose.msra.mxu0 %v3296
  %3756 = vmatprep.subr.bf16.mxu0 0
  %3757 = vmatpush1.bf16.xpose.msra.mxu0 %v3293
  %3758 = vmatprep.subr.bf16.mxu0 0
  %3759 = vmatpush1.bf16.xpose.msra.mxu0 %v3290
  %3760 = vmatprep.subr.bf16.mxu0 0
  %3761 = vmatpush1.bf16.xpose.msra.mxu0 %v3287
  %3762 = vmatprep.subr.bf16.mxu0 0
  %3763 = vmatpush1.bf16.xpose.msra.mxu0 %v3284
  %3764 = vmatprep.subr.bf16.mxu0 0
  %3765 = vmatpush1.bf16.xpose.msra.mxu0 %v3281
  %3766 = vmatprep.subr.bf16.mxu0 0
  %3767 = vmatpush2.bf16.xpose.msra.mxu0 0
  %3768 = vmatprep.subr.bf16.mxu0 0
  %3769 = vmatpush2.bf16.xpose.msra.mxu0 0
  %3770 = vmatprep.subr.bf16.mxu0 0
  %3771 = vmatpush2.bf16.xpose.msra.mxu0 0
  %3772 = vmatprep.subr.bf16.mxu0 0
  %3773 = vmatpush2.bf16.xpose.msra.mxu0 0
  %3774 = vmatprep.subr.bf16.mxu0 0
  %3775 = vmatpush2.bf16.xpose.msra.mxu0 0
  %3776 = vmatprep.subr.bf16.mxu0 0
  %3777 = vmatpush2.bf16.xpose.msra.mxu0 0
  %3778 = vmatprep.subr.bf16.mxu0 0
  %3779 = vmatpush2.bf16.xpose.msra.mxu0 0
  %3780 = vmatprep.subr.bf16.mxu0 0
  %3781 = vmatpush2.bf16.xpose.msra.mxu0 0
  %3782 = vmatprep.mubr.bf16.mxu0 0
  %3783 = vmatmul.mubr.bf16.gmra.mxu0 %v3748
  %v3784 = vpop.f32.mrf.mxu0
  %v3785 = vadd.f32 %v3738, %v3784
  %v3786 = vpop.f32.mrf.mxu0
  %v3787 = vpop.f32.mrf.mxu0
  %v3788 = vpop.f32.mrf.mxu0
  %3789 = vdwg.mxu0
  %3791 = vset.pattern.permute.xlu0 0
  %3792 = vperm.xlu0 %3791, %v49
  %v3793 = vpop.permute.xlu0 %3792
  %v3794 = vrot.slane %v3793, 7
  %v3796 = vadd.f32 %v3785, %v3794
  %3797 = vst [vmem:[%s6] sm:$0x1] %v3796
  // Predicated region
  $region26: #{regularize_decoder.1} parent=0 // pred_check
    _
  $region27: #{regularize_decoder.1} parent=0 // pred_check_branch
    %3799 = sbr.rel (0) target = $region29
  $region28: #{regularize_decoder.1} parent=0 // pred_region
    _
  $region29: #{regularize_decoder.1} parent=0 // pred_fallthru
    _
  // Predicated region
  $region30: #{regularize_decoder.1} parent=0 // pred_check
    _
  $region31: #{regularize_decoder.1} parent=0 // pred_check_branch
    %3801 = sbr.rel (0) target = $region33
  $region32: #{regularize_decoder.1} parent=0 // pred_region
    _
  $region33: #{regularize_decoder.1} parent=0 // pred_fallthru
    _

</llo_original>
